<compile_context>
chip_gen: v5e
topology: v5e:2x2
jax: 0.10.0
libtpu: 0.0.40
codegen_flags: <defaults>
</compile_context>

<pallas_src>
import functools

import jax
import jax.numpy as jnp
from jax import lax
from jax.experimental import pallas as pl
from jax.experimental.pallas import tpu as pltpu

LN_EPS = 1e-5

# Kernel-side parameter order (stacked as (phase=2, stream=2, ...)).
_KPARAMS = ("wq", "wkv", "wo", "w1", "w2", "vec", "b1")


# ----------------------------- in-kernel helpers -----------------------------

def _layernorm(x, gamma, beta, eps=LN_EPS):
    mu = jnp.mean(x, axis=-1, keepdims=True)
    var = jnp.mean((x - mu) ** 2, axis=-1, keepdims=True)
    return (x - mu) * lax.rsqrt(var + eps) * gamma + beta


# --------------------------------- kernel ------------------------------------

def _sgasga_kernel(x_ref, y_ref, wq_ref, wkv_ref, wo_ref, w1_ref, w2_ref,
                   vec_ref, b1_ref, out_ref, sa_out_s, sa_int_s, *, num_heads):
    phase = pl.program_id(0)      # 0: self-attention blocks, 1: guided-attention blocks
    stream = pl.program_id(1)     # 0: x-chain, 1: y-chain
    B, S, E = x_ref.shape
    H = num_heads
    hd = E // H

    wq = wq_ref[0, 0]             # (E, E)    bf16, 1/sqrt(hd) scale + folded
    wkv = wkv_ref[0, 0]           # (E, 2E)   bf16, fused K|V projection
    wo = wo_ref[0, 0]             # (E, E)    bf16
    w1 = w1_ref[0, 0]             # (E, hid)  bf16
    w2 = w2_ref[0, 0]             # (hid, E)  bf16
    vp = vec_ref[0, 0]            # (9, E)    f32 packed small vectors
    b1 = b1_ref[0, 0]             # (1, hid)  f32
    bq, bk, bv, bo, b2 = vp[0], vp[1], vp[2], vp[3], vp[4]
    g1, be1, g2, be2 = vp[5], vp[6], vp[7], vp[8]

    def attn_ln_ffn(q3, kv3):
        """MHA + norm1 + FFN of one residual block; returns (q_rows, inter, ff)."""
        T = kv3.shape[1]
        q_rows = kv_rows = None
        q_rows = q3.reshape(B * S, E)                            # f32 residual source
        kv_rows = kv3.reshape(B * T, E)

        q = jnp.dot(q_rows.astype(jnp.bfloat16), wq,
                    preferred_element_type=jnp.float32) + bq     # scale pre-folded
        kv = jnp.dot(kv_rows.astype(jnp.bfloat16), wkv,
                     preferred_element_type=jnp.float32)
        k = kv[:, :E] + bk                                       # 128-aligned lane slices
        v = kv[:, E:] + bv

        qb = q.astype(jnp.bfloat16).reshape(B, S, E)             # bf16 -> cheaper head slices
        kb = k.astype(jnp.bfloat16).reshape(B, T, E)
        vb = v.astype(jnp.bfloat16).reshape(B, T, E)

        ctx_heads = []
        for h in range(H):                                       # static unroll over heads
            sl = slice(h * hd, (h + 1) * hd)
            s = jnp.einsum('bqd,bkd->bqk', qb[:, :, sl], kb[:, :, sl],
                           preferred_element_type=jnp.float32)   # (B, S, T) f32
            s = s - jnp.max(s, axis=-1, keepdims=True)
            p = jnp.exp(s)
            p = p * pl.reciprocal(jnp.sum(p, axis=-1, keepdims=True),
                                  approx=True)                   # EUP slot
            ctx_heads.append(jnp.einsum('bqk,bkd->bqd',
                                        p.astype(jnp.bfloat16), vb[:, :, sl],
                                        preferred_element_type=jnp.float32))
        ctx = jnp.concatenate(ctx_heads, axis=-1).reshape(B * S, E)

        attn = jnp.dot(ctx.astype(jnp.bfloat16), wo,
                       preferred_element_type=jnp.float32) + bo
        inter = _layernorm(q_rows + attn, g1, be1)               # (B*S, E) f32
        hact = jnp.maximum(jnp.dot(inter.astype(jnp.bfloat16), w1,
                                   preferred_element_type=jnp.float32) + b1, 0.0)
        ff = jnp.dot(hact.astype(jnp.bfloat16), w2,
                     preferred_element_type=jnp.float32) + b2
        return q_rows, inter, ff

    @pl.when(phase == 0)
    def _sa_phase():
        # Pick this stream's input (x or y); both are VMEM-resident once.
        x3 = jnp.where(stream == 0, x_ref[...], y_ref[...])
        q_rows, inter, ff = attn_ln_ffn(x3, x3)
        # SelfAttentionBlock: out = norm2(x + ff(x_intermediate)); residual = ORIGINAL x.
        sa_out = _layernorm(q_rows + ff, g2, be2).reshape(B, S, E)
        inter3 = inter.reshape(B, S, E)

        # Static-index scratch stores (stream-branched) for lowering robustness.
        @pl.when(stream == 0)
        def _():
            sa_out_s[0] = sa_out
            sa_int_s[0] = inter3

        @pl.when(stream == 1)
        def _():
            sa_out_s[1] = sa_out
            sa_int_s[1] = inter3

        out_ref[0] = sa_out          # placeholder; overwritten by the GA phase

    @pl.when(phase == 1)
    def _ga_phase():
        q3 = sa_out_s[stream]        # own SA output (VMEM-resident)
        mem3 = sa_int_s[1 - stream]  # OTHER stream's SA intermediate (cross link)
        _, inter, ff = attn_ln_ffn(q3, mem3)
        # GuidedAttentionBlock: out = norm2(a + ff(a)); residual = post-norm1 a.
        out_ref[0] = _layernorm(inter + ff, g2, be2).reshape(B, S, E)


# --------------------------------- wrapper -----------------------------------

def _prep_block_params(p, num_heads):
    """PyTorch-layout block params -> kernel layout (transposed, packed, bf16)."""
    E = p["out_w"].shape[0]
    hd = E // num_heads
    scale = 1.0 / (hd ** 0.5)
    in_w, in_b = p["in_w"], p["in_b"]
    vec = jnp.stack([in_b[:E] * scale,          # bq (scale folded)
                     in_b[E:2 * E],             # bk
                     in_b[2 * E:],              # bv
                     p["out_b"], p["b2"],
                     p["g1"], p["be1"], p["g2"], p["be2"]], axis=0)
    return dict(
        wq=(in_w[:E].T * scale).astype(jnp.bfloat16),
        wkv=jnp.concatenate([in_w[E:2 * E].T, in_w[2 * E:].T],
                            axis=1).astype(jnp.bfloat16),
        wo=p["out_w"].T.astype(jnp.bfloat16),
        w1=p["w1"].T.astype(jnp.bfloat16),
        w2=p["w2"].T.astype(jnp.bfloat16),
        vec=vec.astype(jnp.float32),
        b1=p["b1"].reshape(1, -1).astype(jnp.float32),
    )


def _stack_params(params, num_heads):
    """Stack sa1/sa2/ga1/ga2 as leading (phase=2, stream=2) axes."""
    blk = {n: _prep_block_params(params[n], num_heads)
           for n in ("sa1", "sa2", "ga1", "ga2")}
    out = {}
    for k in _KPARAMS:
        out[k] = jnp.stack(
            [jnp.stack([blk["sa1"][k], blk["sa2"][k]], axis=0),
             jnp.stack([blk["ga1"][k], blk["ga2"][k]], axis=0)], axis=0)
    return out


def _param_spec(arr):
    tail = arr.shape[2:]
    zeros = (0,) * len(tail)
    return pl.BlockSpec((1, 1) + tail, lambda ph, st, _z=zeros: (ph, st) + _z)


def _cost_estimate(B, S, E, H, hid, param_bytes):
    rows = B * S
    blk = (2 * rows * E * E            # q projection
           + 2 * rows * E * 2 * E      # fused kv projection
           + 4 * B * S * S * E         # scores + PV over all heads
           + 2 * rows * E * E          # output projection
           + 4 * rows * E * hid)       # FFN (2 matmuls)
    flops = 4 * blk                    # 2 phases x 2 streams
    transcendentals = 4 * (B * H * S * S + 4 * rows)
    act_bytes = 8 * (B * S * E) * 4    # x,y in + 2 stream outputs (+ slack)
    return pl.CostEstimate(flops=int(flops),
                           transcendentals=int(transcendentals),
                           bytes_accessed=int(act_bytes + param_bytes))


def sgasga_forward(x_sbe, y_sbe, params, num_heads):
    """x, y: (S, B, E) seq-first, matching the PyTorch module (batch_first=False)."""
    # TODO(synk): fused path requires equal x/y shapes; pad or fall back to
    # per-stream calls for unequal sequence lengths.
    assert x_sbe.shape == y_sbe.shape, "fused SGASGA path requires equal x/y shapes"
    S, B, E = x_sbe.shape

    # Internal layout is batch-first (B,S,E): with S a multiple of 8 and E of 128
    # every activation tile is a dense (8,128) tile (seq-first with B=2 in the
    # sublane slot would waste 6/8 sublanes).  The transposes are tiny XLA copies.
    x = jnp.transpose(x_sbe, (1, 0, 2))
    y = jnp.transpose(y_sbe, (1, 0, 2))

    kp = _stack_params(params, num_heads)
    hid = kp["w1"].shape[-1]
    param_bytes = sum(int(v.size) * v.dtype.itemsize for v in kp.values())

    kernel = functools.partial(_sgasga_kernel, num_heads=num_heads)
    act_spec = pl.BlockSpec((B, S, E), lambda ph, st: (0, 0, 0))
    out_spec = pl.BlockSpec((1, B, S, E), lambda ph, st: (st, 0, 0, 0))

    out = pl.pallas_call(
        kernel,
        out_shape=jax.ShapeDtypeStruct((2, B, S, E), jnp.float32),
        grid=(2, 2),                       # (phase: SA then GA, stream: x / y)
        in_specs=[act_spec, act_spec] + [_param_spec(kp[k]) for k in _KPARAMS],
        out_specs=out_spec,
        scratch_shapes=[pltpu.VMEM((2, B, S, E), jnp.float32),   # SA outputs
                        pltpu.VMEM((2, B, S, E), jnp.float32)],  # SA intermediates
        compiler_params=pltpu.CompilerParams(
            # Both axes sequential: GA of stream s consumes SA scratch of 1-s.
            dimension_semantics=("arbitrary", "arbitrary")),
        cost_estimate=_cost_estimate(B, S, E, num_heads, hid, param_bytes),
    )(x, y, *[kp[k] for k in _KPARAMS])

    return (jnp.transpose(out[0], (1, 0, 2)),
            jnp.transpose(out[1], (1, 0, 2)))


# ----------------------------- pure-JAX reference ----------------------------

def _ref_ln(x, g, b):
    mu = x.mean(-1, keepdims=True)
    var = ((x - mu) ** 2).mean(-1, keepdims=True)
    return (x - mu) / jnp.sqrt(var + LN_EPS) * g + b


def _ref_mha(q_in, kv_in, raw, num_heads):
    E = q_in.shape[-1]
    hd = E // num_heads
    wq, wk, wv = raw["in_w"][:E], raw["in_w"][E:2 * E], raw["in_w"][2 * E:]
    bq, bk, bv = raw["in_b"][:E], raw["in_b"][E:2 * E], raw["in_b"][2 * E:]
    q = jnp.einsum('bse,fe->bsf', q_in, wq) + bq
    k = jnp.einsum('bte,fe->btf', kv_in, wk) + bk
    v = jnp.einsum('bte,fe->btf', kv_in, wv) + bv
    B, S, _ = q.shape
    T = k.shape[1]
    q = q.reshape(B, S, num_heads, hd).transpose(0, 2, 1, 3)
    k = k.reshape(B, T, num_heads, hd).transpose(0, 2, 1, 3)
    v = v.reshape(B, T, num_heads, hd).transpose(0, 2, 1, 3)
    s = jnp.einsum('bhqd,bhkd->bhqk', q, k) / (hd ** 0.5)
    p = jax.nn.softmax(s, axis=-1)
    ctx = jnp.einsum('bhqk,bhkd->bhqd', p, v).transpose(0, 2, 1, 3).reshape(B, S, E)
    return jnp.einsum('bse,fe->bsf', ctx, raw["out_w"]) + raw["out_b"]


def _ref_ffn(x, raw):
    h = jax.nn.relu(jnp.einsum('bse,fe->bsf', x, raw["w1"]) + raw["b1"])
    return jnp.einsum('bsf,ef->bse', h, raw["w2"]) + raw["b2"]


def _ref_sa(x, raw, H):
    xi = _ref_ln(x + _ref_mha(x, x, raw, H), raw["g1"], raw["be1"])
    xo = _ref_ln(x + _ref_ffn(xi, raw), raw["g2"], raw["be2"])
    return xo, xi


def _ref_ga(x, mem, raw, H):
    a = _ref_ln(x + _ref_mha(x, mem, raw, H), raw["g1"], raw["be1"])
    return _ref_ln(a + _ref_ffn(a, raw), raw["g2"], raw["be2"])


def _ref_forward(x_sbe, y_sbe, params, H):
    x = jnp.transpose(x_sbe, (1, 0, 2))
    y = jnp.transpose(y_sbe, (1, 0, 2))
    x1, xi = _ref_sa(x, params["sa1"], H)
    y1, yi = _ref_sa(y, params["sa2"], H)
    xo = _ref_ga(x1, yi, params["ga1"], H)
    yo = _ref_ga(y1, xi, params["ga2"], H)
    return jnp.transpose(xo, (1, 0, 2)), jnp.transpose(yo, (1, 0, 2))


# ----------------------------- param construction ----------------------------

def init_block_params(key, d_model, hidden, dtype=jnp.float32):
    ks = jax.random.split(key, 8)
    s = 0.05
    return dict(
        in_w=jax.random.normal(ks[0], (3 * d_model, d_model), dtype) * s,
        in_b=jax.random.normal(ks[1], (3 * d_model,), dtype) * s,
        out_w=jax.random.normal(ks[2], (d_model, d_model), dtype) * s,
        out_b=jax.random.normal(ks[3], (d_model,), dtype) * s,
        w1=jax.random.normal(ks[4], (hidden, d_model), dtype) * s,
        b1=jax.random.normal(ks[5], (hidden,), dtype) * s,
        w2=jax.random.normal(ks[6], (d_model, hidden), dtype) * s,
        b2=jax.random.normal(ks[7], (d_model,), dtype) * s,
        g1=jnp.ones((d_model,), dtype), be1=jnp.zeros((d_model,), dtype),
        g2=jnp.ones((d_model,), dtype), be2=jnp.zeros((d_model,), dtype),
    )


if __name__ == "__main__":
    D_MODEL = 128     # lane-dense last dim (multiple of 128)
    NUM_HEADS = 8     # head_dim = 16
    HIDDEN = 256
    B = 2
    S = 8             # seq len of x
    T = 8             # seq len of y (fused path requires S == T)

    key = jax.random.PRNGKey(0)
    k_x, k_y, k_p = jax.random.split(key, 3)
    x = jax.random.normal(k_x, (S, B, D_MODEL), jnp.float32)
    y = jax.random.normal(k_y, (T, B, D_MODEL), jnp.float32)

    blk_keys = jax.random.split(k_p, 4)
    params = {
        "sa1": init_block_params(blk_keys[0], D_MODEL, HIDDEN),
        "sa2": init_block_params(blk_keys[1], D_MODEL, HIDDEN),
        "ga1": init_block_params(blk_keys[2], D_MODEL, HIDDEN),
        "ga2": init_block_params(blk_keys[3], D_MODEL, HIDDEN),
    }

    fwd = jax.jit(functools.partial(sgasga_forward, num_heads=NUM_HEADS))
    x_out, y_out = fwd(x, y, params)
    jax.block_until_ready((x_out, y_out))

    assert x_out.shape == (S, B, D_MODEL) and y_out.shape == (T, B, D_MODEL)
    assert bool(jnp.all(jnp.isfinite(x_out))) and bool(jnp.all(jnp.isfinite(y_out)))

    # Sanity check vs a pure-f32 JAX reference.  Tolerance covers bf16 matmul
    # operands (f32 accumulation) + the approximate EUP reciprocal in softmax.
    x_ref, y_ref = _ref_forward(x, y, params, NUM_HEADS)
    assert bool(jnp.allclose(x_out, x_ref, atol=5e-2, rtol=5e-2))
    assert bool(jnp.allclose(y_out, y_ref, atol=5e-2, rtol=5e-2))

    print("KERNEL_OK")
</pallas_src>

<mosaic_0001>
module attributes {stable_mosaic.version = 11 : i64} {
  func.func @_sgasga_kernel(%arg0: i32, %arg1: i32, %arg2: memref<2x8x128xf32, #tpu.memory_space<vmem>>, %arg3: memref<2x8x128xf32, #tpu.memory_space<vmem>>, %arg4: memref<1x1x128x128xbf16, #tpu.memory_space<vmem>>, %arg5: memref<1x1x128x256xbf16, #tpu.memory_space<vmem>>, %arg6: memref<1x1x128x128xbf16, #tpu.memory_space<vmem>>, %arg7: memref<1x1x128x256xbf16, #tpu.memory_space<vmem>>, %arg8: memref<1x1x256x128xbf16, #tpu.memory_space<vmem>>, %arg9: memref<1x1x9x128xf32, #tpu.memory_space<vmem>>, %arg10: memref<1x1x1x256xf32, #tpu.memory_space<vmem>>, %arg11: memref<1x2x8x128xf32, #tpu.memory_space<vmem>>, %arg12: memref<2x2x8x128xf32, #tpu.memory_space<vmem>>, %arg13: memref<2x2x8x128xf32, #tpu.memory_space<vmem>>) attributes {dimension_semantics = [#tpu.dimension_semantics<arbitrary>, #tpu.dimension_semantics<arbitrary>], iteration_bounds = array<i64: 2, 2>, scalar_prefetch = 0 : i64, scratch_operands = 2 : i64, tpu.core_type = #tpu.core_type<tc>, window_params = [{pipeline_mode = #tpu.pipeline_mode<synchronous>, transform_indices = @transform_0, window_bounds = array<i64: 2, 8, 128>}, {pipeline_mode = #tpu.pipeline_mode<synchronous>, transform_indices = @transform_1, window_bounds = array<i64: 2, 8, 128>}, {transform_indices = @transform_2, window_bounds = array<i64: 1, 1, 128, 128>}, {transform_indices = @transform_3, window_bounds = array<i64: 1, 1, 128, 256>}, {transform_indices = @transform_4, window_bounds = array<i64: 1, 1, 128, 128>}, {transform_indices = @transform_5, window_bounds = array<i64: 1, 1, 128, 256>}, {transform_indices = @transform_6, window_bounds = array<i64: 1, 1, 256, 128>}, {transform_indices = @transform_7, window_bounds = array<i64: 1, 1, 9, 128>}, {transform_indices = @transform_8, window_bounds = array<i64: 1, 1, 1, 256>}, {transform_indices = @transform_9, window_bounds = array<i64: 1, 2, 8, 128>}]} {
    %c0 = arith.constant 0 : index
    %c0_0 = arith.constant 0 : index
    %c0_1 = arith.constant 0 : index
    %c0_2 = arith.constant 0 : index
    %0 = vector.load %arg4[%c0, %c0_0, %c0_1, %c0_2] : memref<1x1x128x128xbf16, #tpu.memory_space<vmem>>, vector<1x1x128x128xbf16>
    %1 = vector.shape_cast %0 : vector<1x1x128x128xbf16> to vector<128x128xbf16>
    %c0_3 = arith.constant 0 : index
    %c0_4 = arith.constant 0 : index
    %c0_5 = arith.constant 0 : index
    %c0_6 = arith.constant 0 : index
    %2 = vector.load %arg5[%c0_3, %c0_4, %c0_5, %c0_6] : memref<1x1x128x256xbf16, #tpu.memory_space<vmem>>, vector<1x1x128x256xbf16>
    %3 = vector.shape_cast %2 : vector<1x1x128x256xbf16> to vector<128x256xbf16>
    %c0_7 = arith.constant 0 : index
    %c0_8 = arith.constant 0 : index
    %c0_9 = arith.constant 0 : index
    %c0_10 = arith.constant 0 : index
    %4 = vector.load %arg6[%c0_7, %c0_8, %c0_9, %c0_10] : memref<1x1x128x128xbf16, #tpu.memory_space<vmem>>, vector<1x1x128x128xbf16>
    %5 = vector.shape_cast %4 : vector<1x1x128x128xbf16> to vector<128x128xbf16>
    %c0_11 = arith.constant 0 : index
    %c0_12 = arith.constant 0 : index
    %c0_13 = arith.constant 0 : index
    %c0_14 = arith.constant 0 : index
    %6 = vector.load %arg7[%c0_11, %c0_12, %c0_13, %c0_14] : memref<1x1x128x256xbf16, #tpu.memory_space<vmem>>, vector<1x1x128x256xbf16>
    %7 = vector.shape_cast %6 : vector<1x1x128x256xbf16> to vector<128x256xbf16>
    %c0_15 = arith.constant 0 : index
    %c0_16 = arith.constant 0 : index
    %c0_17 = arith.constant 0 : index
    %c0_18 = arith.constant 0 : index
    %8 = vector.load %arg8[%c0_15, %c0_16, %c0_17, %c0_18] : memref<1x1x256x128xbf16, #tpu.memory_space<vmem>>, vector<1x1x256x128xbf16>
    %9 = vector.shape_cast %8 : vector<1x1x256x128xbf16> to vector<256x128xbf16>
    %c0_19 = arith.constant 0 : index
    %c0_20 = arith.constant 0 : index
    %c0_21 = arith.constant 0 : index
    %c0_22 = arith.constant 0 : index
    %10 = vector.load %arg9[%c0_19, %c0_20, %c0_21, %c0_22] : memref<1x1x9x128xf32, #tpu.memory_space<vmem>>, vector<1x1x9x128xf32>
    %11 = vector.shape_cast %10 : vector<1x1x9x128xf32> to vector<9x128xf32>
    %c0_23 = arith.constant 0 : index
    %c0_24 = arith.constant 0 : index
    %c0_25 = arith.constant 0 : index
    %c0_26 = arith.constant 0 : index
    %12 = vector.load %arg10[%c0_23, %c0_24, %c0_25, %c0_26] : memref<1x1x1x256xf32, #tpu.memory_space<vmem>>, vector<1x1x1x256xf32>
    %13 = vector.shape_cast %12 : vector<1x1x1x256xf32> to vector<1x256xf32>
    %14 = vector.extract_strided_slice %11 {offsets = [0, 0], sizes = [1, 128], strides = [1, 1]} : vector<9x128xf32> to vector<1x128xf32>
    %15 = vector.shape_cast %14 : vector<1x128xf32> to vector<128xf32>
    %16 = vector.extract_strided_slice %11 {offsets = [1, 0], sizes = [1, 128], strides = [1, 1]} : vector<9x128xf32> to vector<1x128xf32>
    %17 = vector.shape_cast %16 : vector<1x128xf32> to vector<128xf32>
    %18 = vector.extract_strided_slice %11 {offsets = [2, 0], sizes = [1, 128], strides = [1, 1]} : vector<9x128xf32> to vector<1x128xf32>
    %19 = vector.shape_cast %18 : vector<1x128xf32> to vector<128xf32>
    %20 = vector.extract_strided_slice %11 {offsets = [3, 0], sizes = [1, 128], strides = [1, 1]} : vector<9x128xf32> to vector<1x128xf32>
    %21 = vector.shape_cast %20 : vector<1x128xf32> to vector<128xf32>
    %22 = vector.extract_strided_slice %11 {offsets = [4, 0], sizes = [1, 128], strides = [1, 1]} : vector<9x128xf32> to vector<1x128xf32>
    %23 = vector.shape_cast %22 : vector<1x128xf32> to vector<128xf32>
    %24 = vector.extract_strided_slice %11 {offsets = [5, 0], sizes = [1, 128], strides = [1, 1]} : vector<9x128xf32> to vector<1x128xf32>
    %25 = vector.shape_cast %24 : vector<1x128xf32> to vector<128xf32>
    %26 = vector.extract_strided_slice %11 {offsets = [6, 0], sizes = [1, 128], strides = [1, 1]} : vector<9x128xf32> to vector<1x128xf32>
    %27 = vector.shape_cast %26 : vector<1x128xf32> to vector<128xf32>
    %28 = vector.extract_strided_slice %11 {offsets = [7, 0], sizes = [1, 128], strides = [1, 1]} : vector<9x128xf32> to vector<1x128xf32>
    %29 = vector.shape_cast %28 : vector<1x128xf32> to vector<128xf32>
    %30 = vector.extract_strided_slice %11 {offsets = [8, 0], sizes = [1, 128], strides = [1, 1]} : vector<9x128xf32> to vector<1x128xf32>
    %31 = vector.shape_cast %30 : vector<1x128xf32> to vector<128xf32>
    %c0_i32 = arith.constant 0 : i32
    %32 = arith.cmpi eq, %arg0, %c0_i32 : i32
    %33 = arith.extui %32 : i1 to i32
    %c0_i32_27 = arith.constant 0 : i32
    %34 = arith.cmpi ne, %33, %c0_i32_27 : i32
    scf.if %34 {
      %c0_i32_29 = arith.constant 0 : i32
      %38 = arith.cmpi eq, %arg1, %c0_i32_29 : i32
      %c0_30 = arith.constant 0 : index
      %c0_31 = arith.constant 0 : index
      %c0_32 = arith.constant 0 : index
      %39 = vector.load %arg2[%c0_30, %c0_31, %c0_32] : memref<2x8x128xf32, #tpu.memory_space<vmem>>, vector<2x8x128xf32>
      %c0_33 = arith.constant 0 : index
      %c0_34 = arith.constant 0 : index
      %c0_35 = arith.constant 0 : index
      %40 = vector.load %arg3[%c0_33, %c0_34, %c0_35] : memref<2x8x128xf32, #tpu.memory_space<vmem>>, vector<2x8x128xf32>
      %41 = arith.select %38, %39, %40 : vector<2x8x128xf32>
      %42 = vector.shape_cast %41 : vector<2x8x128xf32> to vector<16x128xf32>
      %43 = vector.shape_cast %41 : vector<2x8x128xf32> to vector<16x128xf32>
      %44 = arith.truncf %42 : vector<16x128xf32> to vector<16x128xbf16>
      %cst = arith.constant dense<0.000000e+00> : vector<16x128xf32>
      %45 = tpu.matmul %44, %1, %cst {dimension_numbers = #tpu.dot_dimension_numbers<[1], [0], [0], [1], [0, 0, 1, 1], [], []>} : vector<16x128xbf16>, vector<128x128xbf16>, vector<16x128xf32> -> vector<16x128xf32>
      %46 = vector.shape_cast %15 : vector<128xf32> to vector<1x128xf32>
      %47 = vector.broadcast %46 : vector<1x128xf32> to vector<16x128xf32>
      %48 = arith.addf %45, %47 : vector<16x128xf32>
      %49 = arith.truncf %43 : vector<16x128xf32> to vector<16x128xbf16>
      %cst_36 = arith.constant dense<0.000000e+00> : vector<16x256xf32>
      %50 = tpu.matmul %49, %3, %cst_36 {dimension_numbers = #tpu.dot_dimension_numbers<[1], [0], [0], [1], [0, 0, 1, 1], [], []>} : vector<16x128xbf16>, vector<128x256xbf16>, vector<16x256xf32> -> vector<16x256xf32>
      %51 = vector.extract_strided_slice %50 {offsets = [0, 0], sizes = [16, 128], strides = [1, 1]} : vector<16x256xf32> to vector<16x128xf32>
      %52 = vector.shape_cast %17 : vector<128xf32> to vector<1x128xf32>
      %53 = vector.broadcast %52 : vector<1x128xf32> to vector<16x128xf32>
      %54 = arith.addf %51, %53 : vector<16x128xf32>
      %55 = vector.extract_strided_slice %50 {offsets = [0, 128], sizes = [16, 128], strides = [1, 1]} : vector<16x256xf32> to vector<16x128xf32>
      %56 = vector.shape_cast %19 : vector<128xf32> to vector<1x128xf32>
      %57 = vector.broadcast %56 : vector<1x128xf32> to vector<16x128xf32>
      %58 = arith.addf %55, %57 : vector<16x128xf32>
      %59 = arith.truncf %48 : vector<16x128xf32> to vector<16x128xbf16>
      %60 = vector.shape_cast %59 : vector<16x128xbf16> to vector<2x8x128xbf16>
      %61 = arith.truncf %54 : vector<16x128xf32> to vector<16x128xbf16>
      %62 = vector.shape_cast %61 : vector<16x128xbf16> to vector<2x8x128xbf16>
      %63 = arith.truncf %58 : vector<16x128xf32> to vector<16x128xbf16>
      %64 = vector.shape_cast %63 : vector<16x128xbf16> to vector<2x8x128xbf16>
      %65 = vector.extract_strided_slice %60 {offsets = [0, 0, 0], sizes = [2, 8, 16], strides = [1, 1, 1]} : vector<2x8x128xbf16> to vector<2x8x16xbf16>
      %66 = vector.extract_strided_slice %62 {offsets = [0, 0, 0], sizes = [2, 8, 16], strides = [1, 1, 1]} : vector<2x8x128xbf16> to vector<2x8x16xbf16>
      "tpu.trace_start"() <{level = 10 : i32, message = "bqd,bkd->bqk"}> : () -> ()
      %cst_37 = arith.constant dense<0.000000e+00> : vector<2x8x8xf32>
      %67 = tpu.matmul %65, %66, %cst_37 {dimension_numbers = #tpu.dot_dimension_numbers<[2], [2], [1], [1], [0, 0, 0, 1, 1, 1], [0], [0]>} : vector<2x8x16xbf16>, vector<2x8x16xbf16>, vector<2x8x8xf32> -> vector<2x8x8xf32>
      "tpu.trace_stop"() : () -> ()
      %cst_38 = arith.constant dense<0xFF800000> : vector<2x8xf32>
      %68 = vector.multi_reduction <maximumf>, %67, %cst_38 [2] : vector<2x8x8xf32> to vector<2x8xf32>
      %69 = vector.shape_cast %68 : vector<2x8xf32> to vector<2x8x1xf32>
      %70 = vector.broadcast %69 : vector<2x8x1xf32> to vector<2x8x8xf32>
      %71 = arith.subf %67, %70 : vector<2x8x8xf32>
      %72 = math.exp %71 : vector<2x8x8xf32>
      %cst_39 = arith.constant dense<0.000000e+00> : vector<2x8xf32>
      %73 = vector.multi_reduction <add>, %72, %cst_39 [2] : vector<2x8x8xf32> to vector<2x8xf32>
      %74 = vector.shape_cast %73 : vector<2x8xf32> to vector<2x8x1xf32>
      %75 = tpu.reciprocal %74 {approx = true} : vector<2x8x1xf32> -> vector<2x8x1xf32>
      %76 = vector.broadcast %75 : vector<2x8x1xf32> to vector<2x8x8xf32>
      %77 = arith.mulf %72, %76 : vector<2x8x8xf32>
      %78 = arith.truncf %77 : vector<2x8x8xf32> to vector<2x8x8xbf16>
      %79 = vector.extract_strided_slice %64 {offsets = [0, 0, 0], sizes = [2, 8, 16], strides = [1, 1, 1]} : vector<2x8x128xbf16> to vector<2x8x16xbf16>
      "tpu.trace_start"() <{level = 10 : i32, message = "bqk,bkd->bqd"}> : () -> ()
      %cst_40 = arith.constant dense<0.000000e+00> : vector<2x8x16xf32>
      %80 = tpu.matmul %78, %79, %cst_40 {dimension_numbers = #tpu.dot_dimension_numbers<[2], [1], [1], [2], [0, 0, 0, 1, 1, 2], [0], [0]>} : vector<2x8x8xbf16>, vector<2x8x16xbf16>, vector<2x8x16xf32> -> vector<2x8x16xf32>
      "tpu.trace_stop"() : () -> ()
      %81 = vector.extract_strided_slice %60 {offsets = [0, 0, 16], sizes = [2, 8, 16], strides = [1, 1, 1]} : vector<2x8x128xbf16> to vector<2x8x16xbf16>
      %82 = vector.extract_strided_slice %62 {offsets = [0, 0, 16], sizes = [2, 8, 16], strides = [1, 1, 1]} : vector<2x8x128xbf16> to vector<2x8x16xbf16>
      "tpu.trace_start"() <{level = 10 : i32, message = "bqd,bkd->bqk"}> : () -> ()
      %cst_41 = arith.constant dense<0.000000e+00> : vector<2x8x8xf32>
      %83 = tpu.matmul %81, %82, %cst_41 {dimension_numbers = #tpu.dot_dimension_numbers<[2], [2], [1], [1], [0, 0, 0, 1, 1, 1], [0], [0]>} : vector<2x8x16xbf16>, vector<2x8x16xbf16>, vector<2x8x8xf32> -> vector<2x8x8xf32>
      "tpu.trace_stop"() : () -> ()
      %cst_42 = arith.constant dense<0xFF800000> : vector<2x8xf32>
      %84 = vector.multi_reduction <maximumf>, %83, %cst_42 [2] : vector<2x8x8xf32> to vector<2x8xf32>
      %85 = vector.shape_cast %84 : vector<2x8xf32> to vector<2x8x1xf32>
      %86 = vector.broadcast %85 : vector<2x8x1xf32> to vector<2x8x8xf32>
      %87 = arith.subf %83, %86 : vector<2x8x8xf32>
      %88 = math.exp %87 : vector<2x8x8xf32>
      %cst_43 = arith.constant dense<0.000000e+00> : vector<2x8xf32>
      %89 = vector.multi_reduction <add>, %88, %cst_43 [2] : vector<2x8x8xf32> to vector<2x8xf32>
      %90 = vector.shape_cast %89 : vector<2x8xf32> to vector<2x8x1xf32>
      %91 = tpu.reciprocal %90 {approx = true} : vector<2x8x1xf32> -> vector<2x8x1xf32>
      %92 = vector.broadcast %91 : vector<2x8x1xf32> to vector<2x8x8xf32>
      %93 = arith.mulf %88, %92 : vector<2x8x8xf32>
      %94 = arith.truncf %93 : vector<2x8x8xf32> to vector<2x8x8xbf16>
      %95 = vector.extract_strided_slice %64 {offsets = [0, 0, 16], sizes = [2, 8, 16], strides = [1, 1, 1]} : vector<2x8x128xbf16> to vector<2x8x16xbf16>
      "tpu.trace_start"() <{level = 10 : i32, message = "bqk,bkd->bqd"}> : () -> ()
      %cst_44 = arith.constant dense<0.000000e+00> : vector<2x8x16xf32>
      %96 = tpu.matmul %94, %95, %cst_44 {dimension_numbers = #tpu.dot_dimension_numbers<[2], [1], [1], [2], [0, 0, 0, 1, 1, 2], [0], [0]>} : vector<2x8x8xbf16>, vector<2x8x16xbf16>, vector<2x8x16xf32> -> vector<2x8x16xf32>
      "tpu.trace_stop"() : () -> ()
      %97 = vector.extract_strided_slice %60 {offsets = [0, 0, 32], sizes = [2, 8, 16], strides = [1, 1, 1]} : vector<2x8x128xbf16> to vector<2x8x16xbf16>
      %98 = vector.extract_strided_slice %62 {offsets = [0, 0, 32], sizes = [2, 8, 16], strides = [1, 1, 1]} : vector<2x8x128xbf16> to vector<2x8x16xbf16>
      "tpu.trace_start"() <{level = 10 : i32, message = "bqd,bkd->bqk"}> : () -> ()
      %cst_45 = arith.constant dense<0.000000e+00> : vector<2x8x8xf32>
      %99 = tpu.matmul %97, %98, %cst_45 {dimension_numbers = #tpu.dot_dimension_numbers<[2], [2], [1], [1], [0, 0, 0, 1, 1, 1], [0], [0]>} : vector<2x8x16xbf16>, vector<2x8x16xbf16>, vector<2x8x8xf32> -> vector<2x8x8xf32>
      "tpu.trace_stop"() : () -> ()
      %cst_46 = arith.constant dense<0xFF800000> : vector<2x8xf32>
      %100 = vector.multi_reduction <maximumf>, %99, %cst_46 [2] : vector<2x8x8xf32> to vector<2x8xf32>
      %101 = vector.shape_cast %100 : vector<2x8xf32> to vector<2x8x1xf32>
      %102 = vector.broadcast %101 : vector<2x8x1xf32> to vector<2x8x8xf32>
      %103 = arith.subf %99, %102 : vector<2x8x8xf32>
      %104 = math.exp %103 : vector<2x8x8xf32>
      %cst_47 = arith.constant dense<0.000000e+00> : vector<2x8xf32>
      %105 = vector.multi_reduction <add>, %104, %cst_47 [2] : vector<2x8x8xf32> to vector<2x8xf32>
      %106 = vector.shape_cast %105 : vector<2x8xf32> to vector<2x8x1xf32>
      %107 = tpu.reciprocal %106 {approx = true} : vector<2x8x1xf32> -> vector<2x8x1xf32>
      %108 = vector.broadcast %107 : vector<2x8x1xf32> to vector<2x8x8xf32>
      %109 = arith.mulf %104, %108 : vector<2x8x8xf32>
      %110 = arith.truncf %109 : vector<2x8x8xf32> to vector<2x8x8xbf16>
      %111 = vector.extract_strided_slice %64 {offsets = [0, 0, 32], sizes = [2, 8, 16], strides = [1, 1, 1]} : vector<2x8x128xbf16> to vector<2x8x16xbf16>
      "tpu.trace_start"() <{level = 10 : i32, message = "bqk,bkd->bqd"}> : () -> ()
      %cst_48 = arith.constant dense<0.000000e+00> : vector<2x8x16xf32>
      %112 = tpu.matmul %110, %111, %cst_48 {dimension_numbers = #tpu.dot_dimension_numbers<[2], [1], [1], [2], [0, 0, 0, 1, 1, 2], [0], [0]>} : vector<2x8x8xbf16>, vector<2x8x16xbf16>, vector<2x8x16xf32> -> vector<2x8x16xf32>
      "tpu.trace_stop"() : () -> ()
      %113 = vector.extract_strided_slice %60 {offsets = [0, 0, 48], sizes = [2, 8, 16], strides = [1, 1, 1]} : vector<2x8x128xbf16> to vector<2x8x16xbf16>
      %114 = vector.extract_strided_slice %62 {offsets = [0, 0, 48], sizes = [2, 8, 16], strides = [1, 1, 1]} : vector<2x8x128xbf16> to vector<2x8x16xbf16>
      "tpu.trace_start"() <{level = 10 : i32, message = "bqd,bkd->bqk"}> : () -> ()
      %cst_49 = arith.constant dense<0.000000e+00> : vector<2x8x8xf32>
      %115 = tpu.matmul %113, %114, %cst_49 {dimension_numbers = #tpu.dot_dimension_numbers<[2], [2], [1], [1], [0, 0, 0, 1, 1, 1], [0], [0]>} : vector<2x8x16xbf16>, vector<2x8x16xbf16>, vector<2x8x8xf32> -> vector<2x8x8xf32>
      "tpu.trace_stop"() : () -> ()
      %cst_50 = arith.constant dense<0xFF800000> : vector<2x8xf32>
      %116 = vector.multi_reduction <maximumf>, %115, %cst_50 [2] : vector<2x8x8xf32> to vector<2x8xf32>
      %117 = vector.shape_cast %116 : vector<2x8xf32> to vector<2x8x1xf32>
      %118 = vector.broadcast %117 : vector<2x8x1xf32> to vector<2x8x8xf32>
      %119 = arith.subf %115, %118 : vector<2x8x8xf32>
      %120 = math.exp %119 : vector<2x8x8xf32>
      %cst_51 = arith.constant dense<0.000000e+00> : vector<2x8xf32>
      %121 = vector.multi_reduction <add>, %120, %cst_51 [2] : vector<2x8x8xf32> to vector<2x8xf32>
      %122 = vector.shape_cast %121 : vector<2x8xf32> to vector<2x8x1xf32>
      %123 = tpu.reciprocal %122 {approx = true} : vector<2x8x1xf32> -> vector<2x8x1xf32>
      %124 = vector.broadcast %123 : vector<2x8x1xf32> to vector<2x8x8xf32>
      %125 = arith.mulf %120, %124 : vector<2x8x8xf32>
      %126 = arith.truncf %125 : vector<2x8x8xf32> to vector<2x8x8xbf16>
      %127 = vector.extract_strided_slice %64 {offsets = [0, 0, 48], sizes = [2, 8, 16], strides = [1, 1, 1]} : vector<2x8x128xbf16> to vector<2x8x16xbf16>
      "tpu.trace_start"() <{level = 10 : i32, message = "bqk,bkd->bqd"}> : () -> ()
      %cst_52 = arith.constant dense<0.000000e+00> : vector<2x8x16xf32>
      %128 = tpu.matmul %126, %127, %cst_52 {dimension_numbers = #tpu.dot_dimension_numbers<[2], [1], [1], [2], [0, 0, 0, 1, 1, 2], [0], [0]>} : vector<2x8x8xbf16>, vector<2x8x16xbf16>, vector<2x8x16xf32> -> vector<2x8x16xf32>
      "tpu.trace_stop"() : () -> ()
      %129 = vector.extract_strided_slice %60 {offsets = [0, 0, 64], sizes = [2, 8, 16], strides = [1, 1, 1]} : vector<2x8x128xbf16> to vector<2x8x16xbf16>
      %130 = vector.extract_strided_slice %62 {offsets = [0, 0, 64], sizes = [2, 8, 16], strides = [1, 1, 1]} : vector<2x8x128xbf16> to vector<2x8x16xbf16>
      "tpu.trace_start"() <{level = 10 : i32, message = "bqd,bkd->bqk"}> : () -> ()
      %cst_53 = arith.constant dense<0.000000e+00> : vector<2x8x8xf32>
      %131 = tpu.matmul %129, %130, %cst_53 {dimension_numbers = #tpu.dot_dimension_numbers<[2], [2], [1], [1], [0, 0, 0, 1, 1, 1], [0], [0]>} : vector<2x8x16xbf16>, vector<2x8x16xbf16>, vector<2x8x8xf32> -> vector<2x8x8xf32>
      "tpu.trace_stop"() : () -> ()
      %cst_54 = arith.constant dense<0xFF800000> : vector<2x8xf32>
      %132 = vector.multi_reduction <maximumf>, %131, %cst_54 [2] : vector<2x8x8xf32> to vector<2x8xf32>
      %133 = vector.shape_cast %132 : vector<2x8xf32> to vector<2x8x1xf32>
      %134 = vector.broadcast %133 : vector<2x8x1xf32> to vector<2x8x8xf32>
      %135 = arith.subf %131, %134 : vector<2x8x8xf32>
      %136 = math.exp %135 : vector<2x8x8xf32>
      %cst_55 = arith.constant dense<0.000000e+00> : vector<2x8xf32>
      %137 = vector.multi_reduction <add>, %136, %cst_55 [2] : vector<2x8x8xf32> to vector<2x8xf32>
      %138 = vector.shape_cast %137 : vector<2x8xf32> to vector<2x8x1xf32>
      %139 = tpu.reciprocal %138 {approx = true} : vector<2x8x1xf32> -> vector<2x8x1xf32>
      %140 = vector.broadcast %139 : vector<2x8x1xf32> to vector<2x8x8xf32>
      %141 = arith.mulf %136, %140 : vector<2x8x8xf32>
      %142 = arith.truncf %141 : vector<2x8x8xf32> to vector<2x8x8xbf16>
      %143 = vector.extract_strided_slice %64 {offsets = [0, 0, 64], sizes = [2, 8, 16], strides = [1, 1, 1]} : vector<2x8x128xbf16> to vector<2x8x16xbf16>
      "tpu.trace_start"() <{level = 10 : i32, message = "bqk,bkd->bqd"}> : () -> ()
      %cst_56 = arith.constant dense<0.000000e+00> : vector<2x8x16xf32>
      %144 = tpu.matmul %142, %143, %cst_56 {dimension_numbers = #tpu.dot_dimension_numbers<[2], [1], [1], [2], [0, 0, 0, 1, 1, 2], [0], [0]>} : vector<2x8x8xbf16>, vector<2x8x16xbf16>, vector<2x8x16xf32> -> vector<2x8x16xf32>
      "tpu.trace_stop"() : () -> ()
      %145 = vector.extract_strided_slice %60 {offsets = [0, 0, 80], sizes = [2, 8, 16], strides = [1, 1, 1]} : vector<2x8x128xbf16> to vector<2x8x16xbf16>
      %146 = vector.extract_strided_slice %62 {offsets = [0, 0, 80], sizes = [2, 8, 16], strides = [1, 1, 1]} : vector<2x8x128xbf16> to vector<2x8x16xbf16>
      "tpu.trace_start"() <{level = 10 : i32, message = "bqd,bkd->bqk"}> : () -> ()
      %cst_57 = arith.constant dense<0.000000e+00> : vector<2x8x8xf32>
      %147 = tpu.matmul %145, %146, %cst_57 {dimension_numbers = #tpu.dot_dimension_numbers<[2], [2], [1], [1], [0, 0, 0, 1, 1, 1], [0], [0]>} : vector<2x8x16xbf16>, vector<2x8x16xbf16>, vector<2x8x8xf32> -> vector<2x8x8xf32>
      "tpu.trace_stop"() : () -> ()
      %cst_58 = arith.constant dense<0xFF800000> : vector<2x8xf32>
      %148 = vector.multi_reduction <maximumf>, %147, %cst_58 [2] : vector<2x8x8xf32> to vector<2x8xf32>
      %149 = vector.shape_cast %148 : vector<2x8xf32> to vector<2x8x1xf32>
      %150 = vector.broadcast %149 : vector<2x8x1xf32> to vector<2x8x8xf32>
      %151 = arith.subf %147, %150 : vector<2x8x8xf32>
      %152 = math.exp %151 : vector<2x8x8xf32>
      %cst_59 = arith.constant dense<0.000000e+00> : vector<2x8xf32>
      %153 = vector.multi_reduction <add>, %152, %cst_59 [2] : vector<2x8x8xf32> to vector<2x8xf32>
      %154 = vector.shape_cast %153 : vector<2x8xf32> to vector<2x8x1xf32>
      %155 = tpu.reciprocal %154 {approx = true} : vector<2x8x1xf32> -> vector<2x8x1xf32>
      %156 = vector.broadcast %155 : vector<2x8x1xf32> to vector<2x8x8xf32>
      %157 = arith.mulf %152, %156 : vector<2x8x8xf32>
      %158 = arith.truncf %157 : vector<2x8x8xf32> to vector<2x8x8xbf16>
      %159 = vector.extract_strided_slice %64 {offsets = [0, 0, 80], sizes = [2, 8, 16], strides = [1, 1, 1]} : vector<2x8x128xbf16> to vector<2x8x16xbf16>
      "tpu.trace_start"() <{level = 10 : i32, message = "bqk,bkd->bqd"}> : () -> ()
      %cst_60 = arith.constant dense<0.000000e+00> : vector<2x8x16xf32>
      %160 = tpu.matmul %158, %159, %cst_60 {dimension_numbers = #tpu.dot_dimension_numbers<[2], [1], [1], [2], [0, 0, 0, 1, 1, 2], [0], [0]>} : vector<2x8x8xbf16>, vector<2x8x16xbf16>, vector<2x8x16xf32> -> vector<2x8x16xf32>
      "tpu.trace_stop"() : () -> ()
      %161 = vector.extract_strided_slice %60 {offsets = [0, 0, 96], sizes = [2, 8, 16], strides = [1, 1, 1]} : vector<2x8x128xbf16> to vector<2x8x16xbf16>
      %162 = vector.extract_strided_slice %62 {offsets = [0, 0, 96], sizes = [2, 8, 16], strides = [1, 1, 1]} : vector<2x8x128xbf16> to vector<2x8x16xbf16>
      "tpu.trace_start"() <{level = 10 : i32, message = "bqd,bkd->bqk"}> : () -> ()
      %cst_61 = arith.constant dense<0.000000e+00> : vector<2x8x8xf32>
      %163 = tpu.matmul %161, %162, %cst_61 {dimension_numbers = #tpu.dot_dimension_numbers<[2], [2], [1], [1], [0, 0, 0, 1, 1, 1], [0], [0]>} : vector<2x8x16xbf16>, vector<2x8x16xbf16>, vector<2x8x8xf32> -> vector<2x8x8xf32>
      "tpu.trace_stop"() : () -> ()
      %cst_62 = arith.constant dense<0xFF800000> : vector<2x8xf32>
      %164 = vector.multi_reduction <maximumf>, %163, %cst_62 [2] : vector<2x8x8xf32> to vector<2x8xf32>
      %165 = vector.shape_cast %164 : vector<2x8xf32> to vector<2x8x1xf32>
      %166 = vector.broadcast %165 : vector<2x8x1xf32> to vector<2x8x8xf32>
      %167 = arith.subf %163, %166 : vector<2x8x8xf32>
      %168 = math.exp %167 : vector<2x8x8xf32>
      %cst_63 = arith.constant dense<0.000000e+00> : vector<2x8xf32>
      %169 = vector.multi_reduction <add>, %168, %cst_63 [2] : vector<2x8x8xf32> to vector<2x8xf32>
      %170 = vector.shape_cast %169 : vector<2x8xf32> to vector<2x8x1xf32>
      %171 = tpu.reciprocal %170 {approx = true} : vector<2x8x1xf32> -> vector<2x8x1xf32>
      %172 = vector.broadcast %171 : vector<2x8x1xf32> to vector<2x8x8xf32>
      %173 = arith.mulf %168, %172 : vector<2x8x8xf32>
      %174 = arith.truncf %173 : vector<2x8x8xf32> to vector<2x8x8xbf16>
      %175 = vector.extract_strided_slice %64 {offsets = [0, 0, 96], sizes = [2, 8, 16], strides = [1, 1, 1]} : vector<2x8x128xbf16> to vector<2x8x16xbf16>
      "tpu.trace_start"() <{level = 10 : i32, message = "bqk,bkd->bqd"}> : () -> ()
      %cst_64 = arith.constant dense<0.000000e+00> : vector<2x8x16xf32>
      %176 = tpu.matmul %174, %175, %cst_64 {dimension_numbers = #tpu.dot_dimension_numbers<[2], [1], [1], [2], [0, 0, 0, 1, 1, 2], [0], [0]>} : vector<2x8x8xbf16>, vector<2x8x16xbf16>, vector<2x8x16xf32> -> vector<2x8x16xf32>
      "tpu.trace_stop"() : () -> ()
      %177 = vector.extract_strided_slice %60 {offsets = [0, 0, 112], sizes = [2, 8, 16], strides = [1, 1, 1]} : vector<2x8x128xbf16> to vector<2x8x16xbf16>
      %178 = vector.extract_strided_slice %62 {offsets = [0, 0, 112], sizes = [2, 8, 16], strides = [1, 1, 1]} : vector<2x8x128xbf16> to vector<2x8x16xbf16>
      "tpu.trace_start"() <{level = 10 : i32, message = "bqd,bkd->bqk"}> : () -> ()
      %cst_65 = arith.constant dense<0.000000e+00> : vector<2x8x8xf32>
      %179 = tpu.matmul %177, %178, %cst_65 {dimension_numbers = #tpu.dot_dimension_numbers<[2], [2], [1], [1], [0, 0, 0, 1, 1, 1], [0], [0]>} : vector<2x8x16xbf16>, vector<2x8x16xbf16>, vector<2x8x8xf32> -> vector<2x8x8xf32>
      "tpu.trace_stop"() : () -> ()
      %cst_66 = arith.constant dense<0xFF800000> : vector<2x8xf32>
      %180 = vector.multi_reduction <maximumf>, %179, %cst_66 [2] : vector<2x8x8xf32> to vector<2x8xf32>
      %181 = vector.shape_cast %180 : vector<2x8xf32> to vector<2x8x1xf32>
      %182 = vector.broadcast %181 : vector<2x8x1xf32> to vector<2x8x8xf32>
      %183 = arith.subf %179, %182 : vector<2x8x8xf32>
      %184 = math.exp %183 : vector<2x8x8xf32>
      %cst_67 = arith.constant dense<0.000000e+00> : vector<2x8xf32>
      %185 = vector.multi_reduction <add>, %184, %cst_67 [2] : vector<2x8x8xf32> to vector<2x8xf32>
      %186 = vector.shape_cast %185 : vector<2x8xf32> to vector<2x8x1xf32>
      %187 = tpu.reciprocal %186 {approx = true} : vector<2x8x1xf32> -> vector<2x8x1xf32>
      %188 = vector.broadcast %187 : vector<2x8x1xf32> to vector<2x8x8xf32>
      %189 = arith.mulf %184, %188 : vector<2x8x8xf32>
      %190 = arith.truncf %189 : vector<2x8x8xf32> to vector<2x8x8xbf16>
      %191 = vector.extract_strided_slice %64 {offsets = [0, 0, 112], sizes = [2, 8, 16], strides = [1, 1, 1]} : vector<2x8x128xbf16> to vector<2x8x16xbf16>
      "tpu.trace_start"() <{level = 10 : i32, message = "bqk,bkd->bqd"}> : () -> ()
      %cst_68 = arith.constant dense<0.000000e+00> : vector<2x8x16xf32>
      %192 = tpu.matmul %190, %191, %cst_68 {dimension_numbers = #tpu.dot_dimension_numbers<[2], [1], [1], [2], [0, 0, 0, 1, 1, 2], [0], [0]>} : vector<2x8x8xbf16>, vector<2x8x16xbf16>, vector<2x8x16xf32> -> vector<2x8x16xf32>
      "tpu.trace_stop"() : () -> ()
      %193 = tpu.concatenate %80, %96, %112, %128, %144, %160, %176, %192 in 2 : vector<2x8x16xf32>, vector<2x8x16xf32>, vector<2x8x16xf32>, vector<2x8x16xf32>, vector<2x8x16xf32>, vector<2x8x16xf32>, vector<2x8x16xf32>, vector<2x8x16xf32> -> vector<2x8x128xf32>
      %194 = vector.shape_cast %193 : vector<2x8x128xf32> to vector<16x128xf32>
      %195 = arith.truncf %194 : vector<16x128xf32> to vector<16x128xbf16>
      %cst_69 = arith.constant dense<0.000000e+00> : vector<16x128xf32>
      %196 = tpu.matmul %195, %5, %cst_69 {dimension_numbers = #tpu.dot_dimension_numbers<[1], [0], [0], [1], [0, 0, 1, 1], [], []>} : vector<16x128xbf16>, vector<128x128xbf16>, vector<16x128xf32> -> vector<16x128xf32>
      %197 = vector.shape_cast %21 : vector<128xf32> to vector<1x128xf32>
      %198 = vector.broadcast %197 : vector<1x128xf32> to vector<16x128xf32>
      %199 = arith.addf %196, %198 : vector<16x128xf32>
      %200 = arith.addf %42, %199 : vector<16x128xf32>
      %cst_70 = arith.constant dense<0.000000e+00> : vector<16xf32>
      %201 = vector.multi_reduction <add>, %200, %cst_70 [1] : vector<16x128xf32> to vector<16xf32>
      %202 = vector.shape_cast %201 : vector<16xf32> to vector<16x1xf32>
      %cst_71 = arith.constant 1.280000e+02 : f32
      %203 = vector.broadcast %cst_71 : f32 to vector<16x1xf32>
      %204 = arith.divf %202, %203 : vector<16x1xf32>
      %205 = vector.broadcast %204 : vector<16x1xf32> to vector<16x128xf32>
      %206 = arith.subf %200, %205 : vector<16x128xf32>
      %207 = arith.mulf %206, %206 : vector<16x128xf32>
      %cst_72 = arith.constant dense<0.000000e+00> : vector<16xf32>
      %208 = vector.multi_reduction <add>, %207, %cst_72 [1] : vector<16x128xf32> to vector<16xf32>
      %209 = vector.shape_cast %208 : vector<16xf32> to vector<16x1xf32>
      %cst_73 = arith.constant 1.280000e+02 : f32
      %210 = vector.broadcast %cst_73 : f32 to vector<16x1xf32>
      %211 = arith.divf %209, %210 : vector<16x1xf32>
      %212 = vector.broadcast %204 : vector<16x1xf32> to vector<16x128xf32>
      %213 = arith.subf %200, %212 : vector<16x128xf32>
      %cst_74 = arith.constant 9.99999974E-6 : f32
      %214 = vector.broadcast %cst_74 : f32 to vector<16x1xf32>
      %215 = arith.addf %211, %214 : vector<16x1xf32>
      %216 = math.rsqrt %215 : vector<16x1xf32>
      %217 = vector.broadcast %216 : vector<16x1xf32> to vector<16x128xf32>
      %218 = arith.mulf %213, %217 : vector<16x128xf32>
      %219 = vector.shape_cast %25 : vector<128xf32> to vector<1x128xf32>
      %220 = vector.broadcast %219 : vector<1x128xf32> to vector<16x128xf32>
      %221 = arith.mulf %218, %220 : vector<16x128xf32>
      %222 = vector.shape_cast %27 : vector<128xf32> to vector<1x128xf32>
      %223 = vector.broadcast %222 : vector<1x128xf32> to vector<16x128xf32>
      %224 = arith.addf %221, %223 : vector<16x128xf32>
      %225 = arith.truncf %224 : vector<16x128xf32> to vector<16x128xbf16>
      %cst_75 = arith.constant dense<0.000000e+00> : vector<16x256xf32>
      %226 = tpu.matmul %225, %7, %cst_75 {dimension_numbers = #tpu.dot_dimension_numbers<[1], [0], [0], [1], [0, 0, 1, 1], [], []>} : vector<16x128xbf16>, vector<128x256xbf16>, vector<16x256xf32> -> vector<16x256xf32>
      %227 = vector.broadcast %13 : vector<1x256xf32> to vector<16x256xf32>
      %228 = arith.addf %226, %227 : vector<16x256xf32>
      %cst_76 = arith.constant 0.000000e+00 : f32
      %229 = vector.broadcast %cst_76 : f32 to vector<16x256xf32>
      %230 = arith.maximumf %228, %229 : vector<16x256xf32>
      %231 = arith.truncf %230 : vector<16x256xf32> to vector<16x256xbf16>
      %cst_77 = arith.constant dense<0.000000e+00> : vector<16x128xf32>
      %232 = tpu.matmul %231, %9, %cst_77 {dimension_numbers = #tpu.dot_dimension_numbers<[1], [0], [0], [1], [0, 0, 1, 1], [], []>} : vector<16x256xbf16>, vector<256x128xbf16>, vector<16x128xf32> -> vector<16x128xf32>
      %233 = vector.shape_cast %23 : vector<128xf32> to vector<1x128xf32>
      %234 = vector.broadcast %233 : vector<1x128xf32> to vector<16x128xf32>
      %235 = arith.addf %232, %234 : vector<16x128xf32>
      %236 = arith.addf %42, %235 : vector<16x128xf32>
      %cst_78 = arith.constant dense<0.000000e+00> : vector<16xf32>
      %237 = vector.multi_reduction <add>, %236, %cst_78 [1] : vector<16x128xf32> to vector<16xf32>
      %238 = vector.shape_cast %237 : vector<16xf32> to vector<16x1xf32>
      %cst_79 = arith.constant 1.280000e+02 : f32
      %239 = vector.broadcast %cst_79 : f32 to vector<16x1xf32>
      %240 = arith.divf %238, %239 : vector<16x1xf32>
      %241 = vector.broadcast %240 : vector<16x1xf32> to vector<16x128xf32>
      %242 = arith.subf %236, %241 : vector<16x128xf32>
      %243 = arith.mulf %242, %242 : vector<16x128xf32>
      %cst_80 = arith.constant dense<0.000000e+00> : vector<16xf32>
      %244 = vector.multi_reduction <add>, %243, %cst_80 [1] : vector<16x128xf32> to vector<16xf32>
      %245 = vector.shape_cast %244 : vector<16xf32> to vector<16x1xf32>
      %cst_81 = arith.constant 1.280000e+02 : f32
      %246 = vector.broadcast %cst_81 : f32 to vector<16x1xf32>
      %247 = arith.divf %245, %246 : vector<16x1xf32>
      %248 = vector.broadcast %240 : vector<16x1xf32> to vector<16x128xf32>
      %249 = arith.subf %236, %248 : vector<16x128xf32>
      %cst_82 = arith.constant 9.99999974E-6 : f32
      %250 = vector.broadcast %cst_82 : f32 to vector<16x1xf32>
      %251 = arith.addf %247, %250 : vector<16x1xf32>
      %252 = math.rsqrt %251 : vector<16x1xf32>
      %253 = vector.broadcast %252 : vector<16x1xf32> to vector<16x128xf32>
      %254 = arith.mulf %249, %253 : vector<16x128xf32>
      %255 = vector.shape_cast %29 : vector<128xf32> to vector<1x128xf32>
      %256 = vector.broadcast %255 : vector<1x128xf32> to vector<16x128xf32>
      %257 = arith.mulf %254, %256 : vector<16x128xf32>
      %258 = vector.shape_cast %31 : vector<128xf32> to vector<1x128xf32>
      %259 = vector.broadcast %258 : vector<1x128xf32> to vector<16x128xf32>
      %260 = arith.addf %257, %259 : vector<16x128xf32>
      %261 = vector.shape_cast %260 : vector<16x128xf32> to vector<2x8x128xf32>
      %262 = vector.shape_cast %224 : vector<16x128xf32> to vector<2x8x128xf32>
      %c0_i32_83 = arith.constant 0 : i32
      %263 = arith.cmpi eq, %arg1, %c0_i32_83 : i32
      %264 = arith.extui %263 : i1 to i32
      %c0_i32_84 = arith.constant 0 : i32
      %265 = arith.cmpi ne, %264, %c0_i32_84 : i32
      scf.if %265 {
        %c0_91 = arith.constant 0 : index
        %c0_92 = arith.constant 0 : index
        %c0_93 = arith.constant 0 : index
        %c0_94 = arith.constant 0 : index
        %272 = vector.load %arg12[%c0_91, %c0_92, %c0_93, %c0_94] : memref<2x2x8x128xf32, #tpu.memory_space<vmem>>, vector<1x2x8x128xf32>
        %273 = vector.shape_cast %272 : vector<1x2x8x128xf32> to vector<2x8x128xf32>
        %274 = vector.shape_cast %261 : vector<2x8x128xf32> to vector<1x2x8x128xf32>
        tpu.vector_store %arg12[%c0_91, %c0_92, %c0_93, %c0_94], %274 {strides = array<i32>} : memref<2x2x8x128xf32, #tpu.memory_space<vmem>>, vector<1x2x8x128xf32>,
        %c0_95 = arith.constant 0 : index
        %c0_96 = arith.constant 0 : index
        %c0_97 = arith.constant 0 : index
        %c0_98 = arith.constant 0 : index
        %275 = vector.load %arg13[%c0_95, %c0_96, %c0_97, %c0_98] : memref<2x2x8x128xf32, #tpu.memory_space<vmem>>, vector<1x2x8x128xf32>
        %276 = vector.shape_cast %275 : vector<1x2x8x128xf32> to vector<2x8x128xf32>
        %277 = vector.shape_cast %262 : vector<2x8x128xf32> to vector<1x2x8x128xf32>
        tpu.vector_store %arg13[%c0_95, %c0_96, %c0_97, %c0_98], %277 {strides = array<i32>} : memref<2x2x8x128xf32, #tpu.memory_space<vmem>>, vector<1x2x8x128xf32>,
      } else {
      }
      %c1_i32_85 = arith.constant 1 : i32
      %266 = arith.cmpi eq, %arg1, %c1_i32_85 : i32
      %267 = arith.extui %266 : i1 to i32
      %c0_i32_86 = arith.constant 0 : i32
      %268 = arith.cmpi ne, %267, %c0_i32_86 : i32
      scf.if %268 {
        %c1 = arith.constant 1 : index
        %c0_91 = arith.constant 0 : index
        %c0_92 = arith.constant 0 : index
        %c0_93 = arith.constant 0 : index
        %272 = vector.load %arg12[%c1, %c0_91, %c0_92, %c0_93] : memref<2x2x8x128xf32, #tpu.memory_space<vmem>>, vector<1x2x8x128xf32>
        %273 = vector.shape_cast %272 : vector<1x2x8x128xf32> to vector<2x8x128xf32>
        %274 = vector.shape_cast %261 : vector<2x8x128xf32> to vector<1x2x8x128xf32>
        tpu.vector_store %arg12[%c1, %c0_91, %c0_92, %c0_93], %274 {strides = array<i32>} : memref<2x2x8x128xf32, #tpu.memory_space<vmem>>, vector<1x2x8x128xf32>,
        %c1_94 = arith.constant 1 : index
        %c0_95 = arith.constant 0 : index
        %c0_96 = arith.constant 0 : index
        %c0_97 = arith.constant 0 : index
        %275 = vector.load %arg13[%c1_94, %c0_95, %c0_96, %c0_97] : memref<2x2x8x128xf32, #tpu.memory_space<vmem>>, vector<1x2x8x128xf32>
        %276 = vector.shape_cast %275 : vector<1x2x8x128xf32> to vector<2x8x128xf32>
        %277 = vector.shape_cast %262 : vector<2x8x128xf32> to vector<1x2x8x128xf32>
        tpu.vector_store %arg13[%c1_94, %c0_95, %c0_96, %c0_97], %277 {strides = array<i32>} : memref<2x2x8x128xf32, #tpu.memory_space<vmem>>, vector<1x2x8x128xf32>,
      } else {
      }
      %c0_87 = arith.constant 0 : index
      %c0_88 = arith.constant 0 : index
      %c0_89 = arith.constant 0 : index
      %c0_90 = arith.constant 0 : index
      %269 = vector.load %arg11[%c0_87, %c0_88, %c0_89, %c0_90] : memref<1x2x8x128xf32, #tpu.memory_space<vmem>>, vector<1x2x8x128xf32>
      %270 = vector.shape_cast %269 : vector<1x2x8x128xf32> to vector<2x8x128xf32>
      %271 = vector.shape_cast %261 : vector<2x8x128xf32> to vector<1x2x8x128xf32>
      tpu.vector_store %arg11[%c0_87, %c0_88, %c0_89, %c0_90], %271 {strides = array<i32>} : memref<1x2x8x128xf32, #tpu.memory_space<vmem>>, vector<1x2x8x128xf32>,
    } else {
    }
    %c1_i32 = arith.constant 1 : i32
    %35 = arith.cmpi eq, %arg0, %c1_i32 : i32
    %36 = arith.extui %35 : i1 to i32
    %c0_i32_28 = arith.constant 0 : i32
    %37 = arith.cmpi ne, %36, %c0_i32_28 : i32
    scf.if %37 {
      %38 = arith.index_cast %arg1 : i32 to index
      %c0_29 = arith.constant 0 : index
      %c0_30 = arith.constant 0 : index
      %c0_31 = arith.constant 0 : index
      %39 = vector.load %arg12[%38, %c0_29, %c0_30, %c0_31] : memref<2x2x8x128xf32, #tpu.memory_space<vmem>>, vector<1x2x8x128xf32>
      %40 = vector.shape_cast %39 : vector<1x2x8x128xf32> to vector<2x8x128xf32>
      %c1_i32_32 = arith.constant 1 : i32
      %41 = arith.subi %c1_i32_32, %arg1 : i32
      %42 = arith.index_cast %41 : i32 to index
      %c0_33 = arith.constant 0 : index
      %c0_34 = arith.constant 0 : index
      %c0_35 = arith.constant 0 : index
      %43 = vector.load %arg13[%42, %c0_33, %c0_34, %c0_35] : memref<2x2x8x128xf32, #tpu.memory_space<vmem>>, vector<1x2x8x128xf32>
      %44 = vector.shape_cast %43 : vector<1x2x8x128xf32> to vector<2x8x128xf32>
      %45 = vector.shape_cast %40 : vector<2x8x128xf32> to vector<16x128xf32>
      %46 = vector.shape_cast %44 : vector<2x8x128xf32> to vector<16x128xf32>
      %47 = arith.truncf %45 : vector<16x128xf32> to vector<16x128xbf16>
      %cst = arith.constant dense<0.000000e+00> : vector<16x128xf32>
      %48 = tpu.matmul %47, %1, %cst {dimension_numbers = #tpu.dot_dimension_numbers<[1], [0], [0], [1], [0, 0, 1, 1], [], []>} : vector<16x128xbf16>, vector<128x128xbf16>, vector<16x128xf32> -> vector<16x128xf32>
      %49 = vector.shape_cast %15 : vector<128xf32> to vector<1x128xf32>
      %50 = vector.broadcast %49 : vector<1x128xf32> to vector<16x128xf32>
      %51 = arith.addf %48, %50 : vector<16x128xf32>
      %52 = arith.truncf %46 : vector<16x128xf32> to vector<16x128xbf16>
      %cst_36 = arith.constant dense<0.000000e+00> : vector<16x256xf32>
      %53 = tpu.matmul %52, %3, %cst_36 {dimension_numbers = #tpu.dot_dimension_numbers<[1], [0], [0], [1], [0, 0, 1, 1], [], []>} : vector<16x128xbf16>, vector<128x256xbf16>, vector<16x256xf32> -> vector<16x256xf32>
      %54 = vector.extract_strided_slice %53 {offsets = [0, 0], sizes = [16, 128], strides = [1, 1]} : vector<16x256xf32> to vector<16x128xf32>
      %55 = vector.shape_cast %17 : vector<128xf32> to vector<1x128xf32>
      %56 = vector.broadcast %55 : vector<1x128xf32> to vector<16x128xf32>
      %57 = arith.addf %54, %56 : vector<16x128xf32>
      %58 = vector.extract_strided_slice %53 {offsets = [0, 128], sizes = [16, 128], strides = [1, 1]} : vector<16x256xf32> to vector<16x128xf32>
      %59 = vector.shape_cast %19 : vector<128xf32> to vector<1x128xf32>
      %60 = vector.broadcast %59 : vector<1x128xf32> to vector<16x128xf32>
      %61 = arith.addf %58, %60 : vector<16x128xf32>
      %62 = arith.truncf %51 : vector<16x128xf32> to vector<16x128xbf16>
      %63 = vector.shape_cast %62 : vector<16x128xbf16> to vector<2x8x128xbf16>
      %64 = arith.truncf %57 : vector<16x128xf32> to vector<16x128xbf16>
      %65 = vector.shape_cast %64 : vector<16x128xbf16> to vector<2x8x128xbf16>
      %66 = arith.truncf %61 : vector<16x128xf32> to vector<16x128xbf16>
      %67 = vector.shape_cast %66 : vector<16x128xbf16> to vector<2x8x128xbf16>
      %68 = vector.extract_strided_slice %63 {offsets = [0, 0, 0], sizes = [2, 8, 16], strides = [1, 1, 1]} : vector<2x8x128xbf16> to vector<2x8x16xbf16>
      %69 = vector.extract_strided_slice %65 {offsets = [0, 0, 0], sizes = [2, 8, 16], strides = [1, 1, 1]} : vector<2x8x128xbf16> to vector<2x8x16xbf16>
      "tpu.trace_start"() <{level = 10 : i32, message = "bqd,bkd->bqk"}> : () -> ()
      %cst_37 = arith.constant dense<0.000000e+00> : vector<2x8x8xf32>
      %70 = tpu.matmul %68, %69, %cst_37 {dimension_numbers = #tpu.dot_dimension_numbers<[2], [2], [1], [1], [0, 0, 0, 1, 1, 1], [0], [0]>} : vector<2x8x16xbf16>, vector<2x8x16xbf16>, vector<2x8x8xf32> -> vector<2x8x8xf32>
      "tpu.trace_stop"() : () -> ()
      %cst_38 = arith.constant dense<0xFF800000> : vector<2x8xf32>
      %71 = vector.multi_reduction <maximumf>, %70, %cst_38 [2] : vector<2x8x8xf32> to vector<2x8xf32>
      %72 = vector.shape_cast %71 : vector<2x8xf32> to vector<2x8x1xf32>
      %73 = vector.broadcast %72 : vector<2x8x1xf32> to vector<2x8x8xf32>
      %74 = arith.subf %70, %73 : vector<2x8x8xf32>
      %75 = math.exp %74 : vector<2x8x8xf32>
      %cst_39 = arith.constant dense<0.000000e+00> : vector<2x8xf32>
      %76 = vector.multi_reduction <add>, %75, %cst_39 [2] : vector<2x8x8xf32> to vector<2x8xf32>
      %77 = vector.shape_cast %76 : vector<2x8xf32> to vector<2x8x1xf32>
      %78 = tpu.reciprocal %77 {approx = true} : vector<2x8x1xf32> -> vector<2x8x1xf32>
      %79 = vector.broadcast %78 : vector<2x8x1xf32> to vector<2x8x8xf32>
      %80 = arith.mulf %75, %79 : vector<2x8x8xf32>
      %81 = arith.truncf %80 : vector<2x8x8xf32> to vector<2x8x8xbf16>
      %82 = vector.extract_strided_slice %67 {offsets = [0, 0, 0], sizes = [2, 8, 16], strides = [1, 1, 1]} : vector<2x8x128xbf16> to vector<2x8x16xbf16>
      "tpu.trace_start"() <{level = 10 : i32, message = "bqk,bkd->bqd"}> : () -> ()
      %cst_40 = arith.constant dense<0.000000e+00> : vector<2x8x16xf32>
      %83 = tpu.matmul %81, %82, %cst_40 {dimension_numbers = #tpu.dot_dimension_numbers<[2], [1], [1], [2], [0, 0, 0, 1, 1, 2], [0], [0]>} : vector<2x8x8xbf16>, vector<2x8x16xbf16>, vector<2x8x16xf32> -> vector<2x8x16xf32>
      "tpu.trace_stop"() : () -> ()
      %84 = vector.extract_strided_slice %63 {offsets = [0, 0, 16], sizes = [2, 8, 16], strides = [1, 1, 1]} : vector<2x8x128xbf16> to vector<2x8x16xbf16>
      %85 = vector.extract_strided_slice %65 {offsets = [0, 0, 16], sizes = [2, 8, 16], strides = [1, 1, 1]} : vector<2x8x128xbf16> to vector<2x8x16xbf16>
      "tpu.trace_start"() <{level = 10 : i32, message = "bqd,bkd->bqk"}> : () -> ()
      %cst_41 = arith.constant dense<0.000000e+00> : vector<2x8x8xf32>
      %86 = tpu.matmul %84, %85, %cst_41 {dimension_numbers = #tpu.dot_dimension_numbers<[2], [2], [1], [1], [0, 0, 0, 1, 1, 1], [0], [0]>} : vector<2x8x16xbf16>, vector<2x8x16xbf16>, vector<2x8x8xf32> -> vector<2x8x8xf32>
      "tpu.trace_stop"() : () -> ()
      %cst_42 = arith.constant dense<0xFF800000> : vector<2x8xf32>
      %87 = vector.multi_reduction <maximumf>, %86, %cst_42 [2] : vector<2x8x8xf32> to vector<2x8xf32>
      %88 = vector.shape_cast %87 : vector<2x8xf32> to vector<2x8x1xf32>
      %89 = vector.broadcast %88 : vector<2x8x1xf32> to vector<2x8x8xf32>
      %90 = arith.subf %86, %89 : vector<2x8x8xf32>
      %91 = math.exp %90 : vector<2x8x8xf32>
      %cst_43 = arith.constant dense<0.000000e+00> : vector<2x8xf32>
      %92 = vector.multi_reduction <add>, %91, %cst_43 [2] : vector<2x8x8xf32> to vector<2x8xf32>
      %93 = vector.shape_cast %92 : vector<2x8xf32> to vector<2x8x1xf32>
      %94 = tpu.reciprocal %93 {approx = true} : vector<2x8x1xf32> -> vector<2x8x1xf32>
      %95 = vector.broadcast %94 : vector<2x8x1xf32> to vector<2x8x8xf32>
      %96 = arith.mulf %91, %95 : vector<2x8x8xf32>
      %97 = arith.truncf %96 : vector<2x8x8xf32> to vector<2x8x8xbf16>
      %98 = vector.extract_strided_slice %67 {offsets = [0, 0, 16], sizes = [2, 8, 16], strides = [1, 1, 1]} : vector<2x8x128xbf16> to vector<2x8x16xbf16>
      "tpu.trace_start"() <{level = 10 : i32, message = "bqk,bkd->bqd"}> : () -> ()
      %cst_44 = arith.constant dense<0.000000e+00> : vector<2x8x16xf32>
      %99 = tpu.matmul %97, %98, %cst_44 {dimension_numbers = #tpu.dot_dimension_numbers<[2], [1], [1], [2], [0, 0, 0, 1, 1, 2], [0], [0]>} : vector<2x8x8xbf16>, vector<2x8x16xbf16>, vector<2x8x16xf32> -> vector<2x8x16xf32>
      "tpu.trace_stop"() : () -> ()
      %100 = vector.extract_strided_slice %63 {offsets = [0, 0, 32], sizes = [2, 8, 16], strides = [1, 1, 1]} : vector<2x8x128xbf16> to vector<2x8x16xbf16>
      %101 = vector.extract_strided_slice %65 {offsets = [0, 0, 32], sizes = [2, 8, 16], strides = [1, 1, 1]} : vector<2x8x128xbf16> to vector<2x8x16xbf16>
      "tpu.trace_start"() <{level = 10 : i32, message = "bqd,bkd->bqk"}> : () -> ()
      %cst_45 = arith.constant dense<0.000000e+00> : vector<2x8x8xf32>
      %102 = tpu.matmul %100, %101, %cst_45 {dimension_numbers = #tpu.dot_dimension_numbers<[2], [2], [1], [1], [0, 0, 0, 1, 1, 1], [0], [0]>} : vector<2x8x16xbf16>, vector<2x8x16xbf16>, vector<2x8x8xf32> -> vector<2x8x8xf32>
      "tpu.trace_stop"() : () -> ()
      %cst_46 = arith.constant dense<0xFF800000> : vector<2x8xf32>
      %103 = vector.multi_reduction <maximumf>, %102, %cst_46 [2] : vector<2x8x8xf32> to vector<2x8xf32>
      %104 = vector.shape_cast %103 : vector<2x8xf32> to vector<2x8x1xf32>
      %105 = vector.broadcast %104 : vector<2x8x1xf32> to vector<2x8x8xf32>
      %106 = arith.subf %102, %105 : vector<2x8x8xf32>
      %107 = math.exp %106 : vector<2x8x8xf32>
      %cst_47 = arith.constant dense<0.000000e+00> : vector<2x8xf32>
      %108 = vector.multi_reduction <add>, %107, %cst_47 [2] : vector<2x8x8xf32> to vector<2x8xf32>
      %109 = vector.shape_cast %108 : vector<2x8xf32> to vector<2x8x1xf32>
      %110 = tpu.reciprocal %109 {approx = true} : vector<2x8x1xf32> -> vector<2x8x1xf32>
      %111 = vector.broadcast %110 : vector<2x8x1xf32> to vector<2x8x8xf32>
      %112 = arith.mulf %107, %111 : vector<2x8x8xf32>
      %113 = arith.truncf %112 : vector<2x8x8xf32> to vector<2x8x8xbf16>
      %114 = vector.extract_strided_slice %67 {offsets = [0, 0, 32], sizes = [2, 8, 16], strides = [1, 1, 1]} : vector<2x8x128xbf16> to vector<2x8x16xbf16>
      "tpu.trace_start"() <{level = 10 : i32, message = "bqk,bkd->bqd"}> : () -> ()
      %cst_48 = arith.constant dense<0.000000e+00> : vector<2x8x16xf32>
      %115 = tpu.matmul %113, %114, %cst_48 {dimension_numbers = #tpu.dot_dimension_numbers<[2], [1], [1], [2], [0, 0, 0, 1, 1, 2], [0], [0]>} : vector<2x8x8xbf16>, vector<2x8x16xbf16>, vector<2x8x16xf32> -> vector<2x8x16xf32>
      "tpu.trace_stop"() : () -> ()
      %116 = vector.extract_strided_slice %63 {offsets = [0, 0, 48], sizes = [2, 8, 16], strides = [1, 1, 1]} : vector<2x8x128xbf16> to vector<2x8x16xbf16>
      %117 = vector.extract_strided_slice %65 {offsets = [0, 0, 48], sizes = [2, 8, 16], strides = [1, 1, 1]} : vector<2x8x128xbf16> to vector<2x8x16xbf16>
      "tpu.trace_start"() <{level = 10 : i32, message = "bqd,bkd->bqk"}> : () -> ()
      %cst_49 = arith.constant dense<0.000000e+00> : vector<2x8x8xf32>
      %118 = tpu.matmul %116, %117, %cst_49 {dimension_numbers = #tpu.dot_dimension_numbers<[2], [2], [1], [1], [0, 0, 0, 1, 1, 1], [0], [0]>} : vector<2x8x16xbf16>, vector<2x8x16xbf16>, vector<2x8x8xf32> -> vector<2x8x8xf32>
      "tpu.trace_stop"() : () -> ()
      %cst_50 = arith.constant dense<0xFF800000> : vector<2x8xf32>
      %119 = vector.multi_reduction <maximumf>, %118, %cst_50 [2] : vector<2x8x8xf32> to vector<2x8xf32>
      %120 = vector.shape_cast %119 : vector<2x8xf32> to vector<2x8x1xf32>
      %121 = vector.broadcast %120 : vector<2x8x1xf32> to vector<2x8x8xf32>
      %122 = arith.subf %118, %121 : vector<2x8x8xf32>
      %123 = math.exp %122 : vector<2x8x8xf32>
      %cst_51 = arith.constant dense<0.000000e+00> : vector<2x8xf32>
      %124 = vector.multi_reduction <add>, %123, %cst_51 [2] : vector<2x8x8xf32> to vector<2x8xf32>
      %125 = vector.shape_cast %124 : vector<2x8xf32> to vector<2x8x1xf32>
      %126 = tpu.reciprocal %125 {approx = true} : vector<2x8x1xf32> -> vector<2x8x1xf32>
      %127 = vector.broadcast %126 : vector<2x8x1xf32> to vector<2x8x8xf32>
      %128 = arith.mulf %123, %127 : vector<2x8x8xf32>
      %129 = arith.truncf %128 : vector<2x8x8xf32> to vector<2x8x8xbf16>
      %130 = vector.extract_strided_slice %67 {offsets = [0, 0, 48], sizes = [2, 8, 16], strides = [1, 1, 1]} : vector<2x8x128xbf16> to vector<2x8x16xbf16>
      "tpu.trace_start"() <{level = 10 : i32, message = "bqk,bkd->bqd"}> : () -> ()
      %cst_52 = arith.constant dense<0.000000e+00> : vector<2x8x16xf32>
      %131 = tpu.matmul %129, %130, %cst_52 {dimension_numbers = #tpu.dot_dimension_numbers<[2], [1], [1], [2], [0, 0, 0, 1, 1, 2], [0], [0]>} : vector<2x8x8xbf16>, vector<2x8x16xbf16>, vector<2x8x16xf32> -> vector<2x8x16xf32>
      "tpu.trace_stop"() : () -> ()
      %132 = vector.extract_strided_slice %63 {offsets = [0, 0, 64], sizes = [2, 8, 16], strides = [1, 1, 1]} : vector<2x8x128xbf16> to vector<2x8x16xbf16>
      %133 = vector.extract_strided_slice %65 {offsets = [0, 0, 64], sizes = [2, 8, 16], strides = [1, 1, 1]} : vector<2x8x128xbf16> to vector<2x8x16xbf16>
      "tpu.trace_start"() <{level = 10 : i32, message = "bqd,bkd->bqk"}> : () -> ()
      %cst_53 = arith.constant dense<0.000000e+00> : vector<2x8x8xf32>
      %134 = tpu.matmul %132, %133, %cst_53 {dimension_numbers = #tpu.dot_dimension_numbers<[2], [2], [1], [1], [0, 0, 0, 1, 1, 1], [0], [0]>} : vector<2x8x16xbf16>, vector<2x8x16xbf16>, vector<2x8x8xf32> -> vector<2x8x8xf32>
      "tpu.trace_stop"() : () -> ()
      %cst_54 = arith.constant dense<0xFF800000> : vector<2x8xf32>
      %135 = vector.multi_reduction <maximumf>, %134, %cst_54 [2] : vector<2x8x8xf32> to vector<2x8xf32>
      %136 = vector.shape_cast %135 : vector<2x8xf32> to vector<2x8x1xf32>
      %137 = vector.broadcast %136 : vector<2x8x1xf32> to vector<2x8x8xf32>
      %138 = arith.subf %134, %137 : vector<2x8x8xf32>
      %139 = math.exp %138 : vector<2x8x8xf32>
      %cst_55 = arith.constant dense<0.000000e+00> : vector<2x8xf32>
      %140 = vector.multi_reduction <add>, %139, %cst_55 [2] : vector<2x8x8xf32> to vector<2x8xf32>
      %141 = vector.shape_cast %140 : vector<2x8xf32> to vector<2x8x1xf32>
      %142 = tpu.reciprocal %141 {approx = true} : vector<2x8x1xf32> -> vector<2x8x1xf32>
      %143 = vector.broadcast %142 : vector<2x8x1xf32> to vector<2x8x8xf32>
      %144 = arith.mulf %139, %143 : vector<2x8x8xf32>
      %145 = arith.truncf %144 : vector<2x8x8xf32> to vector<2x8x8xbf16>
      %146 = vector.extract_strided_slice %67 {offsets = [0, 0, 64], sizes = [2, 8, 16], strides = [1, 1, 1]} : vector<2x8x128xbf16> to vector<2x8x16xbf16>
      "tpu.trace_start"() <{level = 10 : i32, message = "bqk,bkd->bqd"}> : () -> ()
      %cst_56 = arith.constant dense<0.000000e+00> : vector<2x8x16xf32>
      %147 = tpu.matmul %145, %146, %cst_56 {dimension_numbers = #tpu.dot_dimension_numbers<[2], [1], [1], [2], [0, 0, 0, 1, 1, 2], [0], [0]>} : vector<2x8x8xbf16>, vector<2x8x16xbf16>, vector<2x8x16xf32> -> vector<2x8x16xf32>
      "tpu.trace_stop"() : () -> ()
      %148 = vector.extract_strided_slice %63 {offsets = [0, 0, 80], sizes = [2, 8, 16], strides = [1, 1, 1]} : vector<2x8x128xbf16> to vector<2x8x16xbf16>
      %149 = vector.extract_strided_slice %65 {offsets = [0, 0, 80], sizes = [2, 8, 16], strides = [1, 1, 1]} : vector<2x8x128xbf16> to vector<2x8x16xbf16>
      "tpu.trace_start"() <{level = 10 : i32, message = "bqd,bkd->bqk"}> : () -> ()
      %cst_57 = arith.constant dense<0.000000e+00> : vector<2x8x8xf32>
      %150 = tpu.matmul %148, %149, %cst_57 {dimension_numbers = #tpu.dot_dimension_numbers<[2], [2], [1], [1], [0, 0, 0, 1, 1, 1], [0], [0]>} : vector<2x8x16xbf16>, vector<2x8x16xbf16>, vector<2x8x8xf32> -> vector<2x8x8xf32>
      "tpu.trace_stop"() : () -> ()
      %cst_58 = arith.constant dense<0xFF800000> : vector<2x8xf32>
      %151 = vector.multi_reduction <maximumf>, %150, %cst_58 [2] : vector<2x8x8xf32> to vector<2x8xf32>
      %152 = vector.shape_cast %151 : vector<2x8xf32> to vector<2x8x1xf32>
      %153 = vector.broadcast %152 : vector<2x8x1xf32> to vector<2x8x8xf32>
      %154 = arith.subf %150, %153 : vector<2x8x8xf32>
      %155 = math.exp %154 : vector<2x8x8xf32>
      %cst_59 = arith.constant dense<0.000000e+00> : vector<2x8xf32>
      %156 = vector.multi_reduction <add>, %155, %cst_59 [2] : vector<2x8x8xf32> to vector<2x8xf32>
      %157 = vector.shape_cast %156 : vector<2x8xf32> to vector<2x8x1xf32>
      %158 = tpu.reciprocal %157 {approx = true} : vector<2x8x1xf32> -> vector<2x8x1xf32>
      %159 = vector.broadcast %158 : vector<2x8x1xf32> to vector<2x8x8xf32>
      %160 = arith.mulf %155, %159 : vector<2x8x8xf32>
      %161 = arith.truncf %160 : vector<2x8x8xf32> to vector<2x8x8xbf16>
      %162 = vector.extract_strided_slice %67 {offsets = [0, 0, 80], sizes = [2, 8, 16], strides = [1, 1, 1]} : vector<2x8x128xbf16> to vector<2x8x16xbf16>
      "tpu.trace_start"() <{level = 10 : i32, message = "bqk,bkd->bqd"}> : () -> ()
      %cst_60 = arith.constant dense<0.000000e+00> : vector<2x8x16xf32>
      %163 = tpu.matmul %161, %162, %cst_60 {dimension_numbers = #tpu.dot_dimension_numbers<[2], [1], [1], [2], [0, 0, 0, 1, 1, 2], [0], [0]>} : vector<2x8x8xbf16>, vector<2x8x16xbf16>, vector<2x8x16xf32> -> vector<2x8x16xf32>
      "tpu.trace_stop"() : () -> ()
      %164 = vector.extract_strided_slice %63 {offsets = [0, 0, 96], sizes = [2, 8, 16], strides = [1, 1, 1]} : vector<2x8x128xbf16> to vector<2x8x16xbf16>
      %165 = vector.extract_strided_slice %65 {offsets = [0, 0, 96], sizes = [2, 8, 16], strides = [1, 1, 1]} : vector<2x8x128xbf16> to vector<2x8x16xbf16>
      "tpu.trace_start"() <{level = 10 : i32, message = "bqd,bkd->bqk"}> : () -> ()
      %cst_61 = arith.constant dense<0.000000e+00> : vector<2x8x8xf32>
      %166 = tpu.matmul %164, %165, %cst_61 {dimension_numbers = #tpu.dot_dimension_numbers<[2], [2], [1], [1], [0, 0, 0, 1, 1, 1], [0], [0]>} : vector<2x8x16xbf16>, vector<2x8x16xbf16>, vector<2x8x8xf32> -> vector<2x8x8xf32>
      "tpu.trace_stop"() : () -> ()
      %cst_62 = arith.constant dense<0xFF800000> : vector<2x8xf32>
      %167 = vector.multi_reduction <maximumf>, %166, %cst_62 [2] : vector<2x8x8xf32> to vector<2x8xf32>
      %168 = vector.shape_cast %167 : vector<2x8xf32> to vector<2x8x1xf32>
      %169 = vector.broadcast %168 : vector<2x8x1xf32> to vector<2x8x8xf32>
      %170 = arith.subf %166, %169 : vector<2x8x8xf32>
      %171 = math.exp %170 : vector<2x8x8xf32>
      %cst_63 = arith.constant dense<0.000000e+00> : vector<2x8xf32>
      %172 = vector.multi_reduction <add>, %171, %cst_63 [2] : vector<2x8x8xf32> to vector<2x8xf32>
      %173 = vector.shape_cast %172 : vector<2x8xf32> to vector<2x8x1xf32>
      %174 = tpu.reciprocal %173 {approx = true} : vector<2x8x1xf32> -> vector<2x8x1xf32>
      %175 = vector.broadcast %174 : vector<2x8x1xf32> to vector<2x8x8xf32>
      %176 = arith.mulf %171, %175 : vector<2x8x8xf32>
      %177 = arith.truncf %176 : vector<2x8x8xf32> to vector<2x8x8xbf16>
      %178 = vector.extract_strided_slice %67 {offsets = [0, 0, 96], sizes = [2, 8, 16], strides = [1, 1, 1]} : vector<2x8x128xbf16> to vector<2x8x16xbf16>
      "tpu.trace_start"() <{level = 10 : i32, message = "bqk,bkd->bqd"}> : () -> ()
      %cst_64 = arith.constant dense<0.000000e+00> : vector<2x8x16xf32>
      %179 = tpu.matmul %177, %178, %cst_64 {dimension_numbers = #tpu.dot_dimension_numbers<[2], [1], [1], [2], [0, 0, 0, 1, 1, 2], [0], [0]>} : vector<2x8x8xbf16>, vector<2x8x16xbf16>, vector<2x8x16xf32> -> vector<2x8x16xf32>
      "tpu.trace_stop"() : () -> ()
      %180 = vector.extract_strided_slice %63 {offsets = [0, 0, 112], sizes = [2, 8, 16], strides = [1, 1, 1]} : vector<2x8x128xbf16> to vector<2x8x16xbf16>
      %181 = vector.extract_strided_slice %65 {offsets = [0, 0, 112], sizes = [2, 8, 16], strides = [1, 1, 1]} : vector<2x8x128xbf16> to vector<2x8x16xbf16>
      "tpu.trace_start"() <{level = 10 : i32, message = "bqd,bkd->bqk"}> : () -> ()
      %cst_65 = arith.constant dense<0.000000e+00> : vector<2x8x8xf32>
      %182 = tpu.matmul %180, %181, %cst_65 {dimension_numbers = #tpu.dot_dimension_numbers<[2], [2], [1], [1], [0, 0, 0, 1, 1, 1], [0], [0]>} : vector<2x8x16xbf16>, vector<2x8x16xbf16>, vector<2x8x8xf32> -> vector<2x8x8xf32>
      "tpu.trace_stop"() : () -> ()
      %cst_66 = arith.constant dense<0xFF800000> : vector<2x8xf32>
      %183 = vector.multi_reduction <maximumf>, %182, %cst_66 [2] : vector<2x8x8xf32> to vector<2x8xf32>
      %184 = vector.shape_cast %183 : vector<2x8xf32> to vector<2x8x1xf32>
      %185 = vector.broadcast %184 : vector<2x8x1xf32> to vector<2x8x8xf32>
      %186 = arith.subf %182, %185 : vector<2x8x8xf32>
      %187 = math.exp %186 : vector<2x8x8xf32>
      %cst_67 = arith.constant dense<0.000000e+00> : vector<2x8xf32>
      %188 = vector.multi_reduction <add>, %187, %cst_67 [2] : vector<2x8x8xf32> to vector<2x8xf32>
      %189 = vector.shape_cast %188 : vector<2x8xf32> to vector<2x8x1xf32>
      %190 = tpu.reciprocal %189 {approx = true} : vector<2x8x1xf32> -> vector<2x8x1xf32>
      %191 = vector.broadcast %190 : vector<2x8x1xf32> to vector<2x8x8xf32>
      %192 = arith.mulf %187, %191 : vector<2x8x8xf32>
      %193 = arith.truncf %192 : vector<2x8x8xf32> to vector<2x8x8xbf16>
      %194 = vector.extract_strided_slice %67 {offsets = [0, 0, 112], sizes = [2, 8, 16], strides = [1, 1, 1]} : vector<2x8x128xbf16> to vector<2x8x16xbf16>
      "tpu.trace_start"() <{level = 10 : i32, message = "bqk,bkd->bqd"}> : () -> ()
      %cst_68 = arith.constant dense<0.000000e+00> : vector<2x8x16xf32>
      %195 = tpu.matmul %193, %194, %cst_68 {dimension_numbers = #tpu.dot_dimension_numbers<[2], [1], [1], [2], [0, 0, 0, 1, 1, 2], [0], [0]>} : vector<2x8x8xbf16>, vector<2x8x16xbf16>, vector<2x8x16xf32> -> vector<2x8x16xf32>
      "tpu.trace_stop"() : () -> ()
      %196 = tpu.concatenate %83, %99, %115, %131, %147, %163, %179, %195 in 2 : vector<2x8x16xf32>, vector<2x8x16xf32>, vector<2x8x16xf32>, vector<2x8x16xf32>, vector<2x8x16xf32>, vector<2x8x16xf32>, vector<2x8x16xf32>, vector<2x8x16xf32> -> vector<2x8x128xf32>
      %197 = vector.shape_cast %196 : vector<2x8x128xf32> to vector<16x128xf32>
      %198 = arith.truncf %197 : vector<16x128xf32> to vector<16x128xbf16>
      %cst_69 = arith.constant dense<0.000000e+00> : vector<16x128xf32>
      %199 = tpu.matmul %198, %5, %cst_69 {dimension_numbers = #tpu.dot_dimension_numbers<[1], [0], [0], [1], [0, 0, 1, 1], [], []>} : vector<16x128xbf16>, vector<128x128xbf16>, vector<16x128xf32> -> vector<16x128xf32>
      %200 = vector.shape_cast %21 : vector<128xf32> to vector<1x128xf32>
      %201 = vector.broadcast %200 : vector<1x128xf32> to vector<16x128xf32>
      %202 = arith.addf %199, %201 : vector<16x128xf32>
      %203 = arith.addf %45, %202 : vector<16x128xf32>
      %cst_70 = arith.constant dense<0.000000e+00> : vector<16xf32>
      %204 = vector.multi_reduction <add>, %203, %cst_70 [1] : vector<16x128xf32> to vector<16xf32>
      %205 = vector.shape_cast %204 : vector<16xf32> to vector<16x1xf32>
      %cst_71 = arith.constant 1.280000e+02 : f32
      %206 = vector.broadcast %cst_71 : f32 to vector<16x1xf32>
      %207 = arith.divf %205, %206 : vector<16x1xf32>
      %208 = vector.broadcast %207 : vector<16x1xf32> to vector<16x128xf32>
      %209 = arith.subf %203, %208 : vector<16x128xf32>
      %210 = arith.mulf %209, %209 : vector<16x128xf32>
      %cst_72 = arith.constant dense<0.000000e+00> : vector<16xf32>
      %211 = vector.multi_reduction <add>, %210, %cst_72 [1] : vector<16x128xf32> to vector<16xf32>
      %212 = vector.shape_cast %211 : vector<16xf32> to vector<16x1xf32>
      %cst_73 = arith.constant 1.280000e+02 : f32
      %213 = vector.broadcast %cst_73 : f32 to vector<16x1xf32>
      %214 = arith.divf %212, %213 : vector<16x1xf32>
      %215 = vector.broadcast %207 : vector<16x1xf32> to vector<16x128xf32>
      %216 = arith.subf %203, %215 : vector<16x128xf32>
      %cst_74 = arith.constant 9.99999974E-6 : f32
      %217 = vector.broadcast %cst_74 : f32 to vector<16x1xf32>
      %218 = arith.addf %214, %217 : vector<16x1xf32>
      %219 = math.rsqrt %218 : vector<16x1xf32>
      %220 = vector.broadcast %219 : vector<16x1xf32> to vector<16x128xf32>
      %221 = arith.mulf %216, %220 : vector<16x128xf32>
      %222 = vector.shape_cast %25 : vector<128xf32> to vector<1x128xf32>
      %223 = vector.broadcast %222 : vector<1x128xf32> to vector<16x128xf32>
      %224 = arith.mulf %221, %223 : vector<16x128xf32>
      %225 = vector.shape_cast %27 : vector<128xf32> to vector<1x128xf32>
      %226 = vector.broadcast %225 : vector<1x128xf32> to vector<16x128xf32>
      %227 = arith.addf %224, %226 : vector<16x128xf32>
      %228 = arith.truncf %227 : vector<16x128xf32> to vector<16x128xbf16>
      %cst_75 = arith.constant dense<0.000000e+00> : vector<16x256xf32>
      %229 = tpu.matmul %228, %7, %cst_75 {dimension_numbers = #tpu.dot_dimension_numbers<[1], [0], [0], [1], [0, 0, 1, 1], [], []>} : vector<16x128xbf16>, vector<128x256xbf16>, vector<16x256xf32> -> vector<16x256xf32>
      %230 = vector.broadcast %13 : vector<1x256xf32> to vector<16x256xf32>
      %231 = arith.addf %229, %230 : vector<16x256xf32>
      %cst_76 = arith.constant 0.000000e+00 : f32
      %232 = vector.broadcast %cst_76 : f32 to vector<16x256xf32>
      %233 = arith.maximumf %231, %232 : vector<16x256xf32>
      %234 = arith.truncf %233 : vector<16x256xf32> to vector<16x256xbf16>
      %cst_77 = arith.constant dense<0.000000e+00> : vector<16x128xf32>
      %235 = tpu.matmul %234, %9, %cst_77 {dimension_numbers = #tpu.dot_dimension_numbers<[1], [0], [0], [1], [0, 0, 1, 1], [], []>} : vector<16x256xbf16>, vector<256x128xbf16>, vector<16x128xf32> -> vector<16x128xf32>
      %236 = vector.shape_cast %23 : vector<128xf32> to vector<1x128xf32>
      %237 = vector.broadcast %236 : vector<1x128xf32> to vector<16x128xf32>
      %238 = arith.addf %235, %237 : vector<16x128xf32>
      %239 = arith.addf %227, %238 : vector<16x128xf32>
      %cst_78 = arith.constant dense<0.000000e+00> : vector<16xf32>
      %240 = vector.multi_reduction <add>, %239, %cst_78 [1] : vector<16x128xf32> to vector<16xf32>
      %241 = vector.shape_cast %240 : vector<16xf32> to vector<16x1xf32>
      %cst_79 = arith.constant 1.280000e+02 : f32
      %242 = vector.broadcast %cst_79 : f32 to vector<16x1xf32>
      %243 = arith.divf %241, %242 : vector<16x1xf32>
      %244 = vector.broadcast %243 : vector<16x1xf32> to vector<16x128xf32>
      %245 = arith.subf %239, %244 : vector<16x128xf32>
      %246 = arith.mulf %245, %245 : vector<16x128xf32>
      %cst_80 = arith.constant dense<0.000000e+00> : vector<16xf32>
      %247 = vector.multi_reduction <add>, %246, %cst_80 [1] : vector<16x128xf32> to vector<16xf32>
      %248 = vector.shape_cast %247 : vector<16xf32> to vector<16x1xf32>
      %cst_81 = arith.constant 1.280000e+02 : f32
      %249 = vector.broadcast %cst_81 : f32 to vector<16x1xf32>
      %250 = arith.divf %248, %249 : vector<16x1xf32>
      %251 = vector.broadcast %243 : vector<16x1xf32> to vector<16x128xf32>
      %252 = arith.subf %239, %251 : vector<16x128xf32>
      %cst_82 = arith.constant 9.99999974E-6 : f32
      %253 = vector.broadcast %cst_82 : f32 to vector<16x1xf32>
      %254 = arith.addf %250, %253 : vector<16x1xf32>
      %255 = math.rsqrt %254 : vector<16x1xf32>
      %256 = vector.broadcast %255 : vector<16x1xf32> to vector<16x128xf32>
      %257 = arith.mulf %252, %256 : vector<16x128xf32>
      %258 = vector.shape_cast %29 : vector<128xf32> to vector<1x128xf32>
      %259 = vector.broadcast %258 : vector<1x128xf32> to vector<16x128xf32>
      %260 = arith.mulf %257, %259 : vector<16x128xf32>
      %261 = vector.shape_cast %31 : vector<128xf32> to vector<1x128xf32>
      %262 = vector.broadcast %261 : vector<1x128xf32> to vector<16x128xf32>
      %263 = arith.addf %260, %262 : vector<16x128xf32>
      %264 = vector.shape_cast %263 : vector<16x128xf32> to vector<2x8x128xf32>
      %c0_83 = arith.constant 0 : index
      %c0_84 = arith.constant 0 : index
      %c0_85 = arith.constant 0 : index
      %c0_86 = arith.constant 0 : index
      %265 = vector.load %arg11[%c0_83, %c0_84, %c0_85, %c0_86] : memref<1x2x8x128xf32, #tpu.memory_space<vmem>>, vector<1x2x8x128xf32>
      %266 = vector.shape_cast %265 : vector<1x2x8x128xf32> to vector<2x8x128xf32>
      %267 = vector.shape_cast %264 : vector<2x8x128xf32> to vector<1x2x8x128xf32>
      tpu.vector_store %arg11[%c0_83, %c0_84, %c0_85, %c0_86], %267 {strides = array<i32>} : memref<1x2x8x128xf32, #tpu.memory_space<vmem>>, vector<1x2x8x128xf32>,
    } else {
    }
    return
  }
  func.func @transform_0(%arg0: i32, %arg1: i32) -> (i32, i32, i32) {
    %c0_i32 = arith.constant 0 : i32
    %c0_i32_0 = arith.constant 0 : i32
    %c0_i32_1 = arith.constant 0 : i32
    %c0_i32_2 = arith.constant 0 : i32
    return %c0_i32, %c0_i32_0, %c0_i32_1 : i32, i32, i32
  }
  func.func @transform_1(%arg0: i32, %arg1: i32) -> (i32, i32, i32) {
    %c0_i32 = arith.constant 0 : i32
    %c0_i32_0 = arith.constant 0 : i32
    %c0_i32_1 = arith.constant 0 : i32
    %c0_i32_2 = arith.constant 0 : i32
    return %c0_i32, %c0_i32_0, %c0_i32_1 : i32, i32, i32
  }
  func.func @transform_2(%arg0: i32, %arg1: i32) -> (i32, i32, i32, i32) {
    %c0_i32 = arith.constant 0 : i32
    %c0_i32_0 = arith.constant 0 : i32
    %c0_i32_1 = arith.constant 0 : i32
    return %arg0, %arg1, %c0_i32, %c0_i32_0 : i32, i32, i32, i32
  }
  func.func @transform_3(%arg0: i32, %arg1: i32) -> (i32, i32, i32, i32) {
    %c0_i32 = arith.constant 0 : i32
    %c0_i32_0 = arith.constant 0 : i32
    %c0_i32_1 = arith.constant 0 : i32
    return %arg0, %arg1, %c0_i32, %c0_i32_0 : i32, i32, i32, i32
  }
  func.func @transform_4(%arg0: i32, %arg1: i32) -> (i32, i32, i32, i32) {
    %c0_i32 = arith.constant 0 : i32
    %c0_i32_0 = arith.constant 0 : i32
    %c0_i32_1 = arith.constant 0 : i32
    return %arg0, %arg1, %c0_i32, %c0_i32_0 : i32, i32, i32, i32
  }
  func.func @transform_5(%arg0: i32, %arg1: i32) -> (i32, i32, i32, i32) {
    %c0_i32 = arith.constant 0 : i32
    %c0_i32_0 = arith.constant 0 : i32
    %c0_i32_1 = arith.constant 0 : i32
    return %arg0, %arg1, %c0_i32, %c0_i32_0 : i32, i32, i32, i32
  }
  func.func @transform_6(%arg0: i32, %arg1: i32) -> (i32, i32, i32, i32) {
    %c0_i32 = arith.constant 0 : i32
    %c0_i32_0 = arith.constant 0 : i32
    %c0_i32_1 = arith.constant 0 : i32
    return %arg0, %arg1, %c0_i32, %c0_i32_0 : i32, i32, i32, i32
  }
  func.func @transform_7(%arg0: i32, %arg1: i32) -> (i32, i32, i32, i32) {
    %c0_i32 = arith.constant 0 : i32
    %c0_i32_0 = arith.constant 0 : i32
    %c0_i32_1 = arith.constant 0 : i32
    return %arg0, %arg1, %c0_i32, %c0_i32_0 : i32, i32, i32, i32
  }
  func.func @transform_8(%arg0: i32, %arg1: i32) -> (i32, i32, i32, i32) {
    %c0_i32 = arith.constant 0 : i32
    %c0_i32_0 = arith.constant 0 : i32
    %c0_i32_1 = arith.constant 0 : i32
    return %arg0, %arg1, %c0_i32, %c0_i32_0 : i32, i32, i32, i32
  }
  func.func @transform_9(%arg0: i32, %arg1: i32) -> (i32, i32, i32, i32) {
    %c0_i32 = arith.constant 0 : i32
    %c0_i32_0 = arith.constant 0 : i32
    %c0_i32_1 = arith.constant 0 : i32
    %c0_i32_2 = arith.constant 0 : i32
    return %arg1, %c0_i32, %c0_i32_0, %c0_i32_1 : i32, i32, i32, i32
  }
}

</mosaic_0001>

<llo_original>
// kernel: sgasga_forward.1
$region0: #{sgasga_forward.1}
  #allocation0 [shape = 'u32[]', space=smem, size = 0x4, offset = 0x4, fixed_abs, tag = 'smem constant byte address 0x4 - core index']
  #allocation1 [shape = 'u32[72,128]{1,0:T(1,128)}', space=vmem, size = 0x9000, scoped, tag = 'internal scratch']
  #allocation2 [shape = 'f32[2,2,8,128]{3,2,1,0:T(8,128)}', space=vmem, size = 0x4000, scoped, tag = 'scratch operand']
  #allocation3 [shape = 'f32[2,2,8,128]{3,2,1,0:T(8,128)}', space=vmem, size = 0x4000, scoped, tag = 'scratch operand']
  %s0 = inlined_call_operand.vmem [shape: f32[2,8,128], index: 0, kind: input, shape index: {}]
  %s1 = inlined_call_operand.vmem [shape: f32[2,8,128], index: 1, kind: input, shape index: {}]
  %s2 = inlined_call_operand.vmem [shape: bf16[2,2,128,128], index: 2, kind: input, shape index: {}]
  %s3 = inlined_call_operand.vmem [shape: bf16[2,2,128,256], index: 3, kind: input, shape index: {}]
  %s4 = inlined_call_operand.vmem [shape: bf16[2,2,128,128], index: 4, kind: input, shape index: {}]
  %s5 = inlined_call_operand.vmem [shape: bf16[2,2,128,256], index: 5, kind: input, shape index: {}]
  %s6 = inlined_call_operand.vmem [shape: bf16[2,2,256,128], index: 6, kind: input, shape index: {}]
  %s7 = inlined_call_operand.vmem [shape: f32[2,2,9,128], index: 7, kind: input, shape index: {}]
  %s8 = inlined_call_operand.vmem [shape: f32[2,2,1,256], index: 8, kind: input, shape index: {}]
  %s9 = inlined_call_operand.vmem [shape: f32[2,2,8,128], index: 9, kind: output, shape index: {}]
  %s10 = sld [smem:[#allocation0]]
  $region85: #{sgasga_forward.1} parent=0
    _
  %s12 = ssub.s32 1, %s10
  %s13 = scalar_select 0, %s12, %s10
  loop: start=0, step=1, limit=6
  $region2: #{sgasga_forward.1} parent=0 // loop_pre_header
    _
  $region3: #{sgasga_forward.1} parent=0 // loop_header
    %s15 = sphi 0, %s19
    %p16 = scmp.ge.s32.totalorder %s15, 6
    %s22 = sphi 0, %s34
    %s23 = sphi 0, %s30
    %s24 = sphi 0, %s22
    %s25 = sphi 0, %s23
    %s26 = sphi 0, %s24
    %s27 = sphi 0, %s25
    %s35 = sphi 0, %s35
    %s37 = sphi 0, %s35
    %s38 = sphi 0, %s37
    %s52 = sphi 0, %s38
    %s56 = sphi 0, %s56
    %s58 = sphi 0, %s56
    %s59 = sphi 0, %s58
    %s73 = sphi 0, %s59
    %s81 = sphi 0, %s83
    %s84 = sphi 0, %s81
    %s85 = sphi 0, %s84
    %s101 = sphi 0, %s85
    %s109 = sphi 0, %s111
    %s112 = sphi 0, %s109
    %s113 = sphi 0, %s112
    %s129 = sphi 0, %s113
    %s137 = sphi 0, %s139
    %s140 = sphi 0, %s137
    %s141 = sphi 0, %s140
    %s157 = sphi 0, %s141
    %s165 = sphi 0, %s167
    %s168 = sphi 0, %s165
    %s169 = sphi 0, %s168
    %s185 = sphi 0, %s169
    %s193 = sphi 0, %s195
    %s196 = sphi 0, %s193
    %s197 = sphi 0, %s196
    %s213 = sphi 0, %s197
    %s221 = sphi 0, %s223
    %s224 = sphi 0, %s221
    %s225 = sphi 0, %s224
    %s241 = sphi 0, %s225
    %s249 = sphi 0, %s251
    %s252 = sphi 0, %s249
    %s253 = sphi 0, %s252
    %s269 = sphi 0, %s253
    %s275 = sphi 0, %s277
    %s278 = sphi 0, %s275
    %s279 = sphi 0, %s278
    %s295 = sphi 0, %s279
  $region4: #{sgasga_forward.1} parent=0 // loop_header_branch
    %18 = sbr.rel (%p16) target = $region8
  $region5: #{sgasga_forward.1} parent=0 // loop_body
    %s20 = ssub.s32 %s15, 1
    %s21 = ssub.s32 %s15, 2
    %s28 = sadd.s32 1, %s23
    %p29 = scmp.ge.s32.totalorder %s28, 2
    %s30 = scalar_select %p29, 0, %s28
    %s31 = sadd.s32 1, %s22
    %s32 = scalar_select %p29, %s31, %s22
    %p33 = scmp.ge.s32.totalorder %s32, 2
    %s34 = scalar_select %p33, 0, %s32
    %s36 = sadd.s32 %s35, 1
    %p39 = scmp.eq.s32.totalorder %s15, 3
    %p40 = scmp.ne.s32.totalorder %s35, %s37
    %p41 = scmp.eq.s32.totalorder %s15, 0
    %p42 = por %p40, %p41
    %p43 = scmp.ne.s32.totalorder %s35, %s37
    %p44 = scmp.eq.s32.totalorder %s20, 3
    %p45 = por %p43, %p44
    %p46 = scmp.ne.s32.totalorder %s37, %s38
    %p47 = scmp.eq.s32.totalorder %s20, 0
    %p48 = por %p46, %p47
    %p49 = scmp.ne.s32.totalorder %s37, %s38
    %p50 = scmp.eq.s32.totalorder %s21, 3
    %p51 = por %p49, %p50
    %p53 = scmp.ne.s32.totalorder %s38, %s52
    %p54 = scmp.eq.s32.totalorder %s21, 0
    %p55 = por %p53, %p54
    %s57 = sadd.s32 %s56, 1
    %p60 = scmp.eq.s32.totalorder %s15, 3
    %p61 = scmp.ne.s32.totalorder %s56, %s58
    %p62 = scmp.eq.s32.totalorder %s15, 0
    %p63 = por %p61, %p62
    %p64 = scmp.ne.s32.totalorder %s56, %s58
    %p65 = scmp.eq.s32.totalorder %s20, 3
    %p66 = por %p64, %p65
    %p67 = scmp.ne.s32.totalorder %s58, %s59
    %p68 = scmp.eq.s32.totalorder %s20, 0
    %p69 = por %p67, %p68
    %p70 = scmp.ne.s32.totalorder %s58, %s59
    %p71 = scmp.eq.s32.totalorder %s21, 3
    %p72 = por %p70, %p71
    %p74 = scmp.ne.s32.totalorder %s59, %s73
    %p75 = scmp.eq.s32.totalorder %s21, 0
    %p76 = por %p74, %p75
    %s77 = ssub.s32 %s22, %s34
    %s78 = ssub.s32 %s23, %s30
    %s79 = sor.u32 %s77, %s78
    %p80 = scmp.eq.s32.totalorder %s79, 0
    %s82 = sadd.s32 %s81, 1
    %s83 = scalar_select %p80, %s81, %s82
    %p86 = pneg %p80
    %p87 = scmp.eq.s32.totalorder %s15, 3
    %p88 = por %p86, %p87
    %p89 = scmp.ne.s32.totalorder %s81, %s84
    %p90 = scmp.eq.s32.totalorder %s15, 0
    %p91 = por %p89, %p90
    %p92 = scmp.ne.s32.totalorder %s81, %s84
    %p93 = scmp.eq.s32.totalorder %s20, 3
    %p94 = por %p92, %p93
    %p95 = scmp.ne.s32.totalorder %s84, %s85
    %p96 = scmp.eq.s32.totalorder %s20, 0
    %p97 = por %p95, %p96
    %p98 = scmp.ne.s32.totalorder %s84, %s85
    %p99 = scmp.eq.s32.totalorder %s21, 3
    %p100 = por %p98, %p99
    %p102 = scmp.ne.s32.totalorder %s85, %s101
    %p103 = scmp.eq.s32.totalorder %s21, 0
    %p104 = por %p102, %p103
    %s105 = ssub.s32 %s22, %s34
    %s106 = ssub.s32 %s23, %s30
    %s107 = sor.u32 %s105, %s106
    %p108 = scmp.eq.s32.totalorder %s107, 0
    %s110 = sadd.s32 %s109, 1
    %s111 = scalar_select %p108, %s109, %s110
    %p114 = pneg %p108
    %p115 = scmp.eq.s32.totalorder %s15, 3
    %p116 = por %p114, %p115
    %p117 = scmp.ne.s32.totalorder %s109, %s112
    %p118 = scmp.eq.s32.totalorder %s15, 0
    %p119 = por %p117, %p118
    %p120 = scmp.ne.s32.totalorder %s109, %s112
    %p121 = scmp.eq.s32.totalorder %s20, 3
    %p122 = por %p120, %p121
    %p123 = scmp.ne.s32.totalorder %s112, %s113
    %p124 = scmp.eq.s32.totalorder %s20, 0
    %p125 = por %p123, %p124
    %p126 = scmp.ne.s32.totalorder %s112, %s113
    %p127 = scmp.eq.s32.totalorder %s21, 3
    %p128 = por %p126, %p127
    %p130 = scmp.ne.s32.totalorder %s113, %s129
    %p131 = scmp.eq.s32.totalorder %s21, 0
    %p132 = por %p130, %p131
    %s133 = ssub.s32 %s22, %s34
    %s134 = ssub.s32 %s23, %s30
    %s135 = sor.u32 %s133, %s134
    %p136 = scmp.eq.s32.totalorder %s135, 0
    %s138 = sadd.s32 %s137, 1
    %s139 = scalar_select %p136, %s137, %s138
    %p142 = pneg %p136
    %p143 = scmp.eq.s32.totalorder %s15, 3
    %p144 = por %p142, %p143
    %p145 = scmp.ne.s32.totalorder %s137, %s140
    %p146 = scmp.eq.s32.totalorder %s15, 0
    %p147 = por %p145, %p146
    %p148 = scmp.ne.s32.totalorder %s137, %s140
    %p149 = scmp.eq.s32.totalorder %s20, 3
    %p150 = por %p148, %p149
    %p151 = scmp.ne.s32.totalorder %s140, %s141
    %p152 = scmp.eq.s32.totalorder %s20, 0
    %p153 = por %p151, %p152
    %p154 = scmp.ne.s32.totalorder %s140, %s141
    %p155 = scmp.eq.s32.totalorder %s21, 3
    %p156 = por %p154, %p155
    %p158 = scmp.ne.s32.totalorder %s141, %s157
    %p159 = scmp.eq.s32.totalorder %s21, 0
    %p160 = por %p158, %p159
    %s161 = ssub.s32 %s22, %s34
    %s162 = ssub.s32 %s23, %s30
    %s163 = sor.u32 %s161, %s162
    %p164 = scmp.eq.s32.totalorder %s163, 0
    %s166 = sadd.s32 %s165, 1
    %s167 = scalar_select %p164, %s165, %s166
    %p170 = pneg %p164
    %p171 = scmp.eq.s32.totalorder %s15, 3
    %p172 = por %p170, %p171
    %p173 = scmp.ne.s32.totalorder %s165, %s168
    %p174 = scmp.eq.s32.totalorder %s15, 0
    %p175 = por %p173, %p174
    %p176 = scmp.ne.s32.totalorder %s165, %s168
    %p177 = scmp.eq.s32.totalorder %s20, 3
    %p178 = por %p176, %p177
    %p179 = scmp.ne.s32.totalorder %s168, %s169
    %p180 = scmp.eq.s32.totalorder %s20, 0
    %p181 = por %p179, %p180
    %p182 = scmp.ne.s32.totalorder %s168, %s169
    %p183 = scmp.eq.s32.totalorder %s21, 3
    %p184 = por %p182, %p183
    %p186 = scmp.ne.s32.totalorder %s169, %s185
    %p187 = scmp.eq.s32.totalorder %s21, 0
    %p188 = por %p186, %p187
    %s189 = ssub.s32 %s22, %s34
    %s190 = ssub.s32 %s23, %s30
    %s191 = sor.u32 %s189, %s190
    %p192 = scmp.eq.s32.totalorder %s191, 0
    %s194 = sadd.s32 %s193, 1
    %s195 = scalar_select %p192, %s193, %s194
    %p198 = pneg %p192
    %p199 = scmp.eq.s32.totalorder %s15, 3
    %p200 = por %p198, %p199
    %p201 = scmp.ne.s32.totalorder %s193, %s196
    %p202 = scmp.eq.s32.totalorder %s15, 0
    %p203 = por %p201, %p202
    %p204 = scmp.ne.s32.totalorder %s193, %s196
    %p205 = scmp.eq.s32.totalorder %s20, 3
    %p206 = por %p204, %p205
    %p207 = scmp.ne.s32.totalorder %s196, %s197
    %p208 = scmp.eq.s32.totalorder %s20, 0
    %p209 = por %p207, %p208
    %p210 = scmp.ne.s32.totalorder %s196, %s197
    %p211 = scmp.eq.s32.totalorder %s21, 3
    %p212 = por %p210, %p211
    %p214 = scmp.ne.s32.totalorder %s197, %s213
    %p215 = scmp.eq.s32.totalorder %s21, 0
    %p216 = por %p214, %p215
    %s217 = ssub.s32 %s22, %s34
    %s218 = ssub.s32 %s23, %s30
    %s219 = sor.u32 %s217, %s218
    %p220 = scmp.eq.s32.totalorder %s219, 0
    %s222 = sadd.s32 %s221, 1
    %s223 = scalar_select %p220, %s221, %s222
    %p226 = pneg %p220
    %p227 = scmp.eq.s32.totalorder %s15, 3
    %p228 = por %p226, %p227
    %p229 = scmp.ne.s32.totalorder %s221, %s224
    %p230 = scmp.eq.s32.totalorder %s15, 0
    %p231 = por %p229, %p230
    %p232 = scmp.ne.s32.totalorder %s221, %s224
    %p233 = scmp.eq.s32.totalorder %s20, 3
    %p234 = por %p232, %p233
    %p235 = scmp.ne.s32.totalorder %s224, %s225
    %p236 = scmp.eq.s32.totalorder %s20, 0
    %p237 = por %p235, %p236
    %p238 = scmp.ne.s32.totalorder %s224, %s225
    %p239 = scmp.eq.s32.totalorder %s21, 3
    %p240 = por %p238, %p239
    %p242 = scmp.ne.s32.totalorder %s225, %s241
    %p243 = scmp.eq.s32.totalorder %s21, 0
    %p244 = por %p242, %p243
    %s245 = ssub.s32 %s22, %s34
    %s246 = ssub.s32 %s23, %s30
    %s247 = sor.u32 %s245, %s246
    %p248 = scmp.eq.s32.totalorder %s247, 0
    %s250 = sadd.s32 %s249, 1
    %s251 = scalar_select %p248, %s249, %s250
    %p254 = pneg %p248
    %p255 = scmp.eq.s32.totalorder %s15, 3
    %p256 = por %p254, %p255
    %p257 = scmp.ne.s32.totalorder %s249, %s252
    %p258 = scmp.eq.s32.totalorder %s15, 0
    %p259 = por %p257, %p258
    %p260 = scmp.ne.s32.totalorder %s249, %s252
    %p261 = scmp.eq.s32.totalorder %s20, 3
    %p262 = por %p260, %p261
    %p263 = scmp.ne.s32.totalorder %s252, %s253
    %p264 = scmp.eq.s32.totalorder %s20, 0
    %p265 = por %p263, %p264
    %p266 = scmp.ne.s32.totalorder %s252, %s253
    %p267 = scmp.eq.s32.totalorder %s21, 3
    %p268 = por %p266, %p267
    %p270 = scmp.ne.s32.totalorder %s253, %s269
    %p271 = scmp.eq.s32.totalorder %s21, 0
    %p272 = por %p270, %p271
    %s273 = ssub.s32 %s23, %s30
    %p274 = scmp.eq.s32.totalorder %s273, 0
    %s276 = sadd.s32 %s275, 1
    %s277 = scalar_select %p274, %s275, %s276
    %p280 = pneg %p274
    %p281 = scmp.eq.s32.totalorder %s15, 3
    %p282 = por %p280, %p281
    %p283 = scmp.ne.s32.totalorder %s275, %s278
    %p284 = scmp.eq.s32.totalorder %s15, 0
    %p285 = por %p283, %p284
    %p286 = scmp.ne.s32.totalorder %s275, %s278
    %p287 = scmp.eq.s32.totalorder %s20, 3
    %p288 = por %p286, %p287
    %p289 = scmp.ne.s32.totalorder %s278, %s279
    %p290 = scmp.eq.s32.totalorder %s20, 0
    %p291 = por %p289, %p290
    %p292 = scmp.ne.s32.totalorder %s278, %s279
    %p293 = scmp.eq.s32.totalorder %s21, 3
    %p294 = por %p292, %p293
    %p296 = scmp.ne.s32.totalorder %s279, %s295
    %p297 = scmp.eq.s32.totalorder %s21, 0
    %p298 = por %p296, %p297
    %p299 = scmp.le.s32.totalorder 1, %s15
    %p300 = scmp.lt.s32.totalorder %s15, 5
    %p301 = pnand %p299, %p300
    %p302 = pneg %p301
    // Predicated region
    $region9: #{sgasga_forward.1} parent=5 // pred_check
      _
    $region10: #{sgasga_forward.1} parent=5 // pred_check_branch
      %304 = sbr.rel (%p301) target = $region12
    $region11: #{sgasga_forward.1} parent=5 // pred_region
      %s305 = ssub.s32 %s15, 1
      // Predicated region
      $region13: #{sgasga_forward.1} parent=11 // pred_check
        %p306 = pneg %p48
      $region14: #{sgasga_forward.1} parent=11 // pred_check_branch
        %308 = sbr.rel (%p306) target = $region16
      $region15: #{sgasga_forward.1} parent=11 // pred_region
        _
      $region16: #{sgasga_forward.1} parent=11 // pred_fallthru
        _
      // Predicated region
      $region17: #{sgasga_forward.1} parent=11 // pred_check
        %p309 = pneg %p69
      $region18: #{sgasga_forward.1} parent=11 // pred_check_branch
        %311 = sbr.rel (%p309) target = $region20
      $region19: #{sgasga_forward.1} parent=11 // pred_region
        _
      $region20: #{sgasga_forward.1} parent=11 // pred_fallthru
        _
    $region12: #{sgasga_forward.1} parent=5 // pred_fallthru
      _
    %p312 = scmp.lt.s32.totalorder %s15, 4
    // Predicated region
    $region21: #{sgasga_forward.1} parent=5 // pred_check
      %p313 = pneg %p312
    $region22: #{sgasga_forward.1} parent=5 // pred_check_branch
      %315 = sbr.rel (%p313) target = $region24
    $region23: #{sgasga_forward.1} parent=5 // pred_region
      // Predicated region
      $region25: #{sgasga_forward.1} parent=23 // pred_check
        %p316 = pneg %p91
      $region26: #{sgasga_forward.1} parent=23 // pred_check_branch
        %318 = sbr.rel (%p316) target = $region28
      $region27: #{sgasga_forward.1} parent=23 // pred_region
        %p319 = scmp.lt.s32.totalorder %s22, 1
        %s320 = scalar_select %p319, %s22, 1
        %p321 = scmp.lt.s32.totalorder %s23, 1
        %s322 = scalar_select %p321, %s23, 1
        %s323 = smul.addr %s322, 16
        %s324 = smul.addr %s320, 32
        %s325 = sadd.s32 %s323, %s324
        %s326 = smul.addr %s325, 4
        %s327 = scalar_lea.vmem %s2, %s326
      $region28: #{sgasga_forward.1} parent=23 // pred_fallthru
        _
      // Predicated region
      $region29: #{sgasga_forward.1} parent=23 // pred_check
        %p328 = pneg %p119
      $region30: #{sgasga_forward.1} parent=23 // pred_check_branch
        %330 = sbr.rel (%p328) target = $region32
      $region31: #{sgasga_forward.1} parent=23 // pred_region
        %p331 = scmp.lt.s32.totalorder %s22, 1
        %s332 = scalar_select %p331, %s22, 1
        %p333 = scmp.lt.s32.totalorder %s23, 1
        %s334 = scalar_select %p333, %s23, 1
        %s335 = smul.addr %s334, 32
        %s336 = smul.addr %s332, 64
        %s337 = sadd.s32 %s335, %s336
        %s338 = smul.addr %s337, 4
        %s339 = scalar_lea.vmem %s3, %s338
      $region32: #{sgasga_forward.1} parent=23 // pred_fallthru
        _
      // Predicated region
      $region33: #{sgasga_forward.1} parent=23 // pred_check
        %p340 = pneg %p147
      $region34: #{sgasga_forward.1} parent=23 // pred_check_branch
        %342 = sbr.rel (%p340) target = $region36
      $region35: #{sgasga_forward.1} parent=23 // pred_region
        %p343 = scmp.lt.s32.totalorder %s22, 1
        %s344 = scalar_select %p343, %s22, 1
        %p345 = scmp.lt.s32.totalorder %s23, 1
        %s346 = scalar_select %p345, %s23, 1
        %s347 = smul.addr %s346, 16
        %s348 = smul.addr %s344, 32
        %s349 = sadd.s32 %s347, %s348
        %s350 = smul.addr %s349, 4
        %s351 = scalar_lea.vmem %s4, %s350
      $region36: #{sgasga_forward.1} parent=23 // pred_fallthru
        _
      // Predicated region
      $region37: #{sgasga_forward.1} parent=23 // pred_check
        %p352 = pneg %p175
      $region38: #{sgasga_forward.1} parent=23 // pred_check_branch
        %354 = sbr.rel (%p352) target = $region40
      $region39: #{sgasga_forward.1} parent=23 // pred_region
        %p355 = scmp.lt.s32.totalorder %s22, 1
        %s356 = scalar_select %p355, %s22, 1
        %p357 = scmp.lt.s32.totalorder %s23, 1
        %s358 = scalar_select %p357, %s23, 1
        %s359 = smul.addr %s358, 32
        %s360 = smul.addr %s356, 64
        %s361 = sadd.s32 %s359, %s360
        %s362 = smul.addr %s361, 4
        %s363 = scalar_lea.vmem %s5, %s362
      $region40: #{sgasga_forward.1} parent=23 // pred_fallthru
        _
      // Predicated region
      $region41: #{sgasga_forward.1} parent=23 // pred_check
        %p364 = pneg %p203
      $region42: #{sgasga_forward.1} parent=23 // pred_check_branch
        %366 = sbr.rel (%p364) target = $region44
      $region43: #{sgasga_forward.1} parent=23 // pred_region
        %p367 = scmp.lt.s32.totalorder %s22, 1
        %s368 = scalar_select %p367, %s22, 1
        %p369 = scmp.lt.s32.totalorder %s23, 1
        %s370 = scalar_select %p369, %s23, 1
        %s371 = smul.addr %s370, 32
        %s372 = smul.addr %s368, 64
        %s373 = sadd.s32 %s371, %s372
        %s374 = smul.addr %s373, 4
        %s375 = scalar_lea.vmem %s6, %s374
      $region44: #{sgasga_forward.1} parent=23 // pred_fallthru
        _
      // Predicated region
      $region45: #{sgasga_forward.1} parent=23 // pred_check
        %p376 = pneg %p231
      $region46: #{sgasga_forward.1} parent=23 // pred_check_branch
        %378 = sbr.rel (%p376) target = $region48
      $region47: #{sgasga_forward.1} parent=23 // pred_region
        %p379 = scmp.lt.s32.totalorder %s22, 1
        %s380 = scalar_select %p379, %s22, 1
        %p381 = scmp.lt.s32.totalorder %s23, 1
        %s382 = scalar_select %p381, %s23, 1
        %s383 = smul.addr %s382, 2
        %s384 = smul.addr %s380, 4
        %s385 = sadd.s32 %s383, %s384
        %s386 = smul.addr %s385, 8
        %s387 = scalar_lea.vmem %s7, %s386
      $region48: #{sgasga_forward.1} parent=23 // pred_fallthru
        _
      // Predicated region
      $region49: #{sgasga_forward.1} parent=23 // pred_check
        %p388 = pneg %p259
      $region50: #{sgasga_forward.1} parent=23 // pred_check_branch
        %390 = sbr.rel (%p388) target = $region52
      $region51: #{sgasga_forward.1} parent=23 // pred_region
        %p391 = scmp.lt.s32.totalorder %s22, 1
        %s392 = scalar_select %p391, %s22, 1
        %p393 = scmp.lt.s32.totalorder %s23, 1
        %s394 = scalar_select %p393, %s23, 1
        %s395 = smul.addr %s394, 2
        %s396 = smul.addr %s392, 4
        %s397 = sadd.s32 %s395, %s396
        %s398 = scalar_lea.vmem %s8, %s397
      $region52: #{sgasga_forward.1} parent=23 // pred_fallthru
        _
    $region24: #{sgasga_forward.1} parent=5 // pred_fallthru
      _
    %p399 = scmp.le.s32.totalorder 1, %s15
    %p400 = scmp.lt.s32.totalorder %s15, 5
    %p401 = pnand %p399, %p400
    %p402 = pneg %p401
    // Predicated region
    $region53: #{sgasga_forward.1} parent=5 // pred_check
      _
    $region54: #{sgasga_forward.1} parent=5 // pred_check_branch
      %404 = sbr.rel (%p401) target = $region56
    $region55: #{sgasga_forward.1} parent=5 // pred_region
      %s405 = ssub.s32 %s15, 1
      %p406 = pneg %p48
      %p407 = pneg %p45
      %p408 = pneg %p69
      %p409 = pneg %p66
      %p410 = scmp.lt.s32.totalorder %s24, 1
      %s411 = scalar_select %p410, %s24, 1
      %p412 = scmp.lt.s32.totalorder %s25, 1
      %s413 = scalar_select %p412, %s25, 1
      %s414 = smul.addr %s413, 16
      %s415 = smul.addr %s411, 32
      %s416 = sadd.s32 %s414, %s415
      %s417 = smul.addr %s416, 4
      %s418 = scalar_lea.vmem %s2, %s417
      %p419 = pneg %p97
      %p420 = pneg %p94
      %p421 = scmp.lt.s32.totalorder %s24, 1
      %s422 = scalar_select %p421, %s24, 1
      %p423 = scmp.lt.s32.totalorder %s25, 1
      %s424 = scalar_select %p423, %s25, 1
      %s425 = smul.addr %s424, 32
      %s426 = smul.addr %s422, 64
      %s427 = sadd.s32 %s425, %s426
      %s428 = smul.addr %s427, 4
      %s429 = scalar_lea.vmem %s3, %s428
      %p430 = pneg %p125
      %p431 = pneg %p122
      %p432 = scmp.lt.s32.totalorder %s24, 1
      %s433 = scalar_select %p432, %s24, 1
      %p434 = scmp.lt.s32.totalorder %s25, 1
      %s435 = scalar_select %p434, %s25, 1
      %s436 = smul.addr %s435, 16
      %s437 = smul.addr %s433, 32
      %s438 = sadd.s32 %s436, %s437
      %s439 = smul.addr %s438, 4
      %s440 = scalar_lea.vmem %s4, %s439
      %p441 = pneg %p153
      %p442 = pneg %p150
      %p443 = scmp.lt.s32.totalorder %s24, 1
      %s444 = scalar_select %p443, %s24, 1
      %p445 = scmp.lt.s32.totalorder %s25, 1
      %s446 = scalar_select %p445, %s25, 1
      %s447 = smul.addr %s446, 32
      %s448 = smul.addr %s444, 64
      %s449 = sadd.s32 %s447, %s448
      %s450 = smul.addr %s449, 4
      %s451 = scalar_lea.vmem %s5, %s450
      %p452 = pneg %p181
      %p453 = pneg %p178
      %p454 = scmp.lt.s32.totalorder %s24, 1
      %s455 = scalar_select %p454, %s24, 1
      %p456 = scmp.lt.s32.totalorder %s25, 1
      %s457 = scalar_select %p456, %s25, 1
      %s458 = smul.addr %s457, 32
      %s459 = smul.addr %s455, 64
      %s460 = sadd.s32 %s458, %s459
      %s461 = smul.addr %s460, 4
      %s462 = scalar_lea.vmem %s6, %s461
      %p463 = pneg %p209
      %p464 = pneg %p206
      %p465 = scmp.lt.s32.totalorder %s24, 1
      %s466 = scalar_select %p465, %s24, 1
      %p467 = scmp.lt.s32.totalorder %s25, 1
      %s468 = scalar_select %p467, %s25, 1
      %s469 = smul.addr %s468, 2
      %s470 = smul.addr %s466, 4
      %s471 = sadd.s32 %s469, %s470
      %s472 = smul.addr %s471, 8
      %s473 = scalar_lea.vmem %s7, %s472
      %p474 = pneg %p237
      %p475 = pneg %p234
      %p476 = scmp.lt.s32.totalorder %s24, 1
      %s477 = scalar_select %p476, %s24, 1
      %p478 = scmp.lt.s32.totalorder %s25, 1
      %s479 = scalar_select %p478, %s25, 1
      %s480 = smul.addr %s479, 2
      %s481 = smul.addr %s477, 4
      %s482 = sadd.s32 %s480, %s481
      %s483 = scalar_lea.vmem %s8, %s482
      %p484 = pneg %p265
      %p485 = pneg %p262
      %p486 = pneg %p291
      %p487 = pneg %p288
      %p488 = scmp.lt.s32.totalorder %s25, 1
      %s489 = scalar_select %p488, %s25, 1
      %s490 = smul.addr %s489, 2
      %s491 = smul.addr %s490, 8
      %s492 = scalar_lea.vmem %s9, %s491
      %p493 = scmp.lt.s32.totalorder %s24, 1
      %s494 = scalar_select %p493, %s24, 1
      %p495 = scmp.lt.s32.totalorder %s25, 1
      %s496 = scalar_select %p495, %s25, 1
      %s497 = smul.addr %s496, 16
      %s498 = smul.addr %s494, 32
      %s499 = sadd.s32 %s497, %s498
      %s500 = smul.addr %s499, 4
      %s501 = scalar_lea.vmem %s2, %s500
      %p502 = scmp.lt.s32.totalorder %s24, 1
      %s503 = scalar_select %p502, %s24, 1
      %p504 = scmp.lt.s32.totalorder %s25, 1
      %s505 = scalar_select %p504, %s25, 1
      %s506 = smul.addr %s505, 32
      %s507 = smul.addr %s503, 64
      %s508 = sadd.s32 %s506, %s507
      %s509 = smul.addr %s508, 4
      %s510 = scalar_lea.vmem %s3, %s509
      %p511 = scmp.lt.s32.totalorder %s24, 1
      %s512 = scalar_select %p511, %s24, 1
      %p513 = scmp.lt.s32.totalorder %s25, 1
      %s514 = scalar_select %p513, %s25, 1
      %s515 = smul.addr %s514, 16
      %s516 = smul.addr %s512, 32
      %s517 = sadd.s32 %s515, %s516
      %s518 = smul.addr %s517, 4
      %s519 = scalar_lea.vmem %s4, %s518
      %p520 = scmp.lt.s32.totalorder %s24, 1
      %s521 = scalar_select %p520, %s24, 1
      %p522 = scmp.lt.s32.totalorder %s25, 1
      %s523 = scalar_select %p522, %s25, 1
      %s524 = smul.addr %s523, 32
      %s525 = smul.addr %s521, 64
      %s526 = sadd.s32 %s524, %s525
      %s527 = smul.addr %s526, 4
      %s528 = scalar_lea.vmem %s5, %s527
      %p529 = scmp.lt.s32.totalorder %s24, 1
      %s530 = scalar_select %p529, %s24, 1
      %p531 = scmp.lt.s32.totalorder %s25, 1
      %s532 = scalar_select %p531, %s25, 1
      %s533 = smul.addr %s532, 32
      %s534 = smul.addr %s530, 64
      %s535 = sadd.s32 %s533, %s534
      %s536 = smul.addr %s535, 4
      %s537 = scalar_lea.vmem %s6, %s536
      %p538 = scmp.lt.s32.totalorder %s24, 1
      %s539 = scalar_select %p538, %s24, 1
      %p540 = scmp.lt.s32.totalorder %s25, 1
      %s541 = scalar_select %p540, %s25, 1
      %s542 = smul.addr %s541, 2
      %s543 = smul.addr %s539, 4
      %s544 = sadd.s32 %s542, %s543
      %s545 = smul.addr %s544, 8
      %s546 = scalar_lea.vmem %s7, %s545
      %p547 = scmp.lt.s32.totalorder %s24, 1
      %s548 = scalar_select %p547, %s24, 1
      %p549 = scmp.lt.s32.totalorder %s25, 1
      %s550 = scalar_select %p549, %s25, 1
      %s551 = smul.addr %s550, 2
      %s552 = smul.addr %s548, 4
      %s553 = sadd.s32 %s551, %s552
      %s554 = scalar_lea.vmem %s8, %s553
      %p555 = scmp.lt.s32.totalorder %s25, 1
      %s556 = scalar_select %p555, %s25, 1
      %s557 = smul.addr %s556, 2
      %s558 = smul.addr %s557, 8
      %s559 = scalar_lea.vmem %s9, %s558
      %v561 = vld [vmem:[%s501] sm:$0xf]
      %v562 = vld [vmem:[%s501 + $0x4] sm:$0xf]
      %v563 = vld [vmem:[%s501 + $0x8] sm:$0xf]
      %v564 = vld [vmem:[%s501 + $0xc] sm:$0xf]
      %v565 = vld [vmem:[%s501 + $0x10] sm:$0xf]
      %v566 = vld [vmem:[%s501 + $0x14] sm:$0xf]
      %v567 = vld [vmem:[%s501 + $0x18] sm:$0xf]
      %v568 = vld [vmem:[%s501 + $0x1c] sm:$0xf]
      %v569 = vld [vmem:[%s501 + $0x20] sm:$0xf]
      %v570 = vld [vmem:[%s501 + $0x24] sm:$0xf]
      %v571 = vld [vmem:[%s501 + $0x28] sm:$0xf]
      %v572 = vld [vmem:[%s501 + $0x2c] sm:$0xf]
      %v573 = vld [vmem:[%s501 + $0x30] sm:$0xf]
      %v574 = vld [vmem:[%s501 + $0x34] sm:$0xf]
      %v575 = vld [vmem:[%s501 + $0x38] sm:$0xf]
      %v576 = vld [vmem:[%s501 + $0x3c] sm:$0xf]
      %v577 = vld [vmem:[%s510] sm:$0xff]
      %v578 = vld [vmem:[%s510 + $0x8] sm:$0xff]
      %v579 = vld [vmem:[%s510 + $0x10] sm:$0xff]
      %v580 = vld [vmem:[%s510 + $0x18] sm:$0xff]
      %v581 = vld [vmem:[%s510 + $0x20] sm:$0xff]
      %v582 = vld [vmem:[%s510 + $0x28] sm:$0xff]
      %v583 = vld [vmem:[%s510 + $0x30] sm:$0xff]
      %v584 = vld [vmem:[%s510 + $0x38] sm:$0xff]
      %v585 = vld [vmem:[%s510 + $0x40] sm:$0xff]
      %v586 = vld [vmem:[%s510 + $0x48] sm:$0xff]
      %v587 = vld [vmem:[%s510 + $0x50] sm:$0xff]
      %v588 = vld [vmem:[%s510 + $0x58] sm:$0xff]
      %v589 = vld [vmem:[%s510 + $0x60] sm:$0xff]
      %v590 = vld [vmem:[%s510 + $0x68] sm:$0xff]
      %v591 = vld [vmem:[%s510 + $0x70] sm:$0xff]
      %v592 = vld [vmem:[%s510 + $0x78] sm:$0xff]
      %v593 = vld [vmem:[%s519] sm:$0xf]
      %v594 = vld [vmem:[%s519 + $0x4] sm:$0xf]
      %v595 = vld [vmem:[%s519 + $0x8] sm:$0xf]
      %v596 = vld [vmem:[%s519 + $0xc] sm:$0xf]
      %v597 = vld [vmem:[%s519 + $0x10] sm:$0xf]
      %v598 = vld [vmem:[%s519 + $0x14] sm:$0xf]
      %v599 = vld [vmem:[%s519 + $0x18] sm:$0xf]
      %v600 = vld [vmem:[%s519 + $0x1c] sm:$0xf]
      %v601 = vld [vmem:[%s519 + $0x20] sm:$0xf]
      %v602 = vld [vmem:[%s519 + $0x24] sm:$0xf]
      %v603 = vld [vmem:[%s519 + $0x28] sm:$0xf]
      %v604 = vld [vmem:[%s519 + $0x2c] sm:$0xf]
      %v605 = vld [vmem:[%s519 + $0x30] sm:$0xf]
      %v606 = vld [vmem:[%s519 + $0x34] sm:$0xf]
      %v607 = vld [vmem:[%s519 + $0x38] sm:$0xf]
      %v608 = vld [vmem:[%s519 + $0x3c] sm:$0xf]
      %v609 = vld [vmem:[%s528] sm:$0xff]
      %v610 = vld [vmem:[%s528 + $0x8] sm:$0xff]
      %v611 = vld [vmem:[%s528 + $0x10] sm:$0xff]
      %v612 = vld [vmem:[%s528 + $0x18] sm:$0xff]
      %v613 = vld [vmem:[%s528 + $0x20] sm:$0xff]
      %v614 = vld [vmem:[%s528 + $0x28] sm:$0xff]
      %v615 = vld [vmem:[%s528 + $0x30] sm:$0xff]
      %v616 = vld [vmem:[%s528 + $0x38] sm:$0xff]
      %v617 = vld [vmem:[%s528 + $0x40] sm:$0xff]
      %v618 = vld [vmem:[%s528 + $0x48] sm:$0xff]
      %v619 = vld [vmem:[%s528 + $0x50] sm:$0xff]
      %v620 = vld [vmem:[%s528 + $0x58] sm:$0xff]
      %v621 = vld [vmem:[%s528 + $0x60] sm:$0xff]
      %v622 = vld [vmem:[%s528 + $0x68] sm:$0xff]
      %v623 = vld [vmem:[%s528 + $0x70] sm:$0xff]
      %v624 = vld [vmem:[%s528 + $0x78] sm:$0xff]
      %v625 = vld [vmem:[%s537] sm:$0xf]
      %v626 = vld [vmem:[%s537 + $0x4] sm:$0xf]
      %v627 = vld [vmem:[%s537 + $0x8] sm:$0xf]
      %v628 = vld [vmem:[%s537 + $0xc] sm:$0xf]
      %v629 = vld [vmem:[%s537 + $0x10] sm:$0xf]
      %v630 = vld [vmem:[%s537 + $0x14] sm:$0xf]
      %v631 = vld [vmem:[%s537 + $0x18] sm:$0xf]
      %v632 = vld [vmem:[%s537 + $0x1c] sm:$0xf]
      %v633 = vld [vmem:[%s537 + $0x20] sm:$0xf]
      %v634 = vld [vmem:[%s537 + $0x24] sm:$0xf]
      %v635 = vld [vmem:[%s537 + $0x28] sm:$0xf]
      %v636 = vld [vmem:[%s537 + $0x2c] sm:$0xf]
      %v637 = vld [vmem:[%s537 + $0x30] sm:$0xf]
      %v638 = vld [vmem:[%s537 + $0x34] sm:$0xf]
      %v639 = vld [vmem:[%s537 + $0x38] sm:$0xf]
      %v640 = vld [vmem:[%s537 + $0x3c] sm:$0xf]
      %v641 = vld [vmem:[%s537 + $0x40] sm:$0xf]
      %v642 = vld [vmem:[%s537 + $0x44] sm:$0xf]
      %v643 = vld [vmem:[%s537 + $0x48] sm:$0xf]
      %v644 = vld [vmem:[%s537 + $0x4c] sm:$0xf]
      %v645 = vld [vmem:[%s537 + $0x50] sm:$0xf]
      %v646 = vld [vmem:[%s537 + $0x54] sm:$0xf]
      %v647 = vld [vmem:[%s537 + $0x58] sm:$0xf]
      %v648 = vld [vmem:[%s537 + $0x5c] sm:$0xf]
      %v649 = vld [vmem:[%s537 + $0x60] sm:$0xf]
      %v650 = vld [vmem:[%s537 + $0x64] sm:$0xf]
      %v651 = vld [vmem:[%s537 + $0x68] sm:$0xf]
      %v652 = vld [vmem:[%s537 + $0x6c] sm:$0xf]
      %v653 = vld [vmem:[%s537 + $0x70] sm:$0xf]
      %v654 = vld [vmem:[%s537 + $0x74] sm:$0xf]
      %v655 = vld [vmem:[%s537 + $0x78] sm:$0xf]
      %v656 = vld [vmem:[%s537 + $0x7c] sm:$0xf]
      %v657 = vld [vmem:[%s546] sm:$0xff]
      %v658 = vld [vmem:[%s546 + $0x8] sm:$0x1]
      %v659 = vld [vmem:[%s554] sm:$0x3]
      %p660 = scmp.eq.s32.totalorder %s24, 0
      // Predicated region
      $region57: #{sgasga_forward.1} parent=55 // pred_check
        %p661 = pneg %p660
      $region58: #{sgasga_forward.1} parent=55 // pred_check_branch
        %663 = sbr.rel (%p661) target = $region60
      $region59: #{sgasga_forward.1} parent=55 // pred_region
        %p664 = scmp.eq.s32.totalorder %s25, 0
        %v665 = vld [vmem:[%s0] sm:$0xff]
        %v666 = vld [vmem:[%s0 + $0x8] sm:$0xff]
        %v667 = vld [vmem:[%s1] sm:$0xff]
        %v668 = vld [vmem:[%s1 + $0x8] sm:$0xff]
        %s669 = scalar_select %p664, 1, 0
        %v670 = vstv %s669
        %vm671 = vcmp.eq.s32.totalorder %v670, 1
        %v672 = vsel %vm671, %v665, %v667
        %v673 = vsel %vm671, %v666, %v668
        %v674 = vpack.c.bf16 %v673, %v672
        %v675 = vperm.slane %v657, 0
        %v692 = vunpack.c.l.b16 %v561
        %v693 = vunpack.c.l.b16 %v562
        %v694 = vunpack.c.l.b16 %v563
        %v695 = vunpack.c.l.b16 %v564
        %v696 = vunpack.c.l.b16 %v565
        %v697 = vunpack.c.l.b16 %v566
        %v698 = vunpack.c.l.b16 %v567
        %v699 = vunpack.c.l.b16 %v568
        %v700 = vunpack.c.l.b16 %v569
        %v701 = vunpack.c.l.b16 %v570
        %v702 = vunpack.c.l.b16 %v571
        %v703 = vunpack.c.l.b16 %v572
        %v704 = vunpack.c.l.b16 %v573
        %v705 = vunpack.c.l.b16 %v574
        %v706 = vunpack.c.l.b16 %v575
        %v707 = vunpack.c.l.b16 %v576
        %v708 = vpack.c.b16 %v693, %v692
        %v709 = vpack.c.b16 %v695, %v694
        %v710 = vpack.c.b16 %v697, %v696
        %v711 = vpack.c.b16 %v699, %v698
        %v712 = vpack.c.b16 %v701, %v700
        %v713 = vpack.c.b16 %v703, %v702
        %v714 = vpack.c.b16 %v705, %v704
        %v715 = vpack.c.b16 %v707, %v706
        %724 = vmatpush.bf16.msra.mxu0 %v715
        %725 = vmatpush.bf16.msra.mxu0 %v714
        %726 = vmatpush.bf16.msra.mxu0 %v713
        %727 = vmatpush.bf16.msra.mxu0 %v712
        %728 = vmatpush.bf16.msra.mxu0 %v711
        %729 = vmatpush.bf16.msra.mxu0 %v710
        %730 = vmatpush.bf16.msra.mxu0 %v709
        %731 = vmatpush.bf16.msra.mxu0 %v708
        %732 = vmatmul.bf16.gmra.mxu0 %v674
        %v733 = vpop.f32.mrf.mxu0
        %v734 = vadd.f32 %v675, %v733
        %v735 = vpop.f32.mrf.mxu0
        %v736 = vadd.f32 %v675, %v735
        %737 = vdwg.mxu0
        %v754 = vunpack.c.l.b16 %v577
        %v755 = vunpack.c.h.b16 %v577
        %v756 = vunpack.c.l.b16 %v578
        %v757 = vunpack.c.h.b16 %v578
        %v758 = vunpack.c.l.b16 %v579
        %v759 = vunpack.c.h.b16 %v579
        %v760 = vunpack.c.l.b16 %v580
        %v761 = vunpack.c.h.b16 %v580
        %v762 = vunpack.c.l.b16 %v581
        %v763 = vunpack.c.h.b16 %v581
        %v764 = vunpack.c.l.b16 %v582
        %v765 = vunpack.c.h.b16 %v582
        %v766 = vunpack.c.l.b16 %v583
        %v767 = vunpack.c.h.b16 %v583
        %v768 = vunpack.c.l.b16 %v584
        %v769 = vunpack.c.h.b16 %v584
        %v770 = vunpack.c.l.b16 %v585
        %v771 = vunpack.c.h.b16 %v585
        %v772 = vunpack.c.l.b16 %v586
        %v773 = vunpack.c.h.b16 %v586
        %v774 = vunpack.c.l.b16 %v587
        %v775 = vunpack.c.h.b16 %v587
        %v776 = vunpack.c.l.b16 %v588
        %v777 = vunpack.c.h.b16 %v588
        %v778 = vunpack.c.l.b16 %v589
        %v779 = vunpack.c.h.b16 %v589
        %v780 = vunpack.c.l.b16 %v590
        %v781 = vunpack.c.h.b16 %v590
        %v782 = vunpack.c.l.b16 %v591
        %v783 = vunpack.c.h.b16 %v591
        %v784 = vunpack.c.l.b16 %v592
        %v785 = vunpack.c.h.b16 %v592
        %v786 = vpack.c.b16 %v756, %v754
        %v787 = vpack.c.b16 %v757, %v755
        %v788 = vpack.c.b16 %v760, %v758
        %v789 = vpack.c.b16 %v761, %v759
        %v790 = vpack.c.b16 %v764, %v762
        %v791 = vpack.c.b16 %v765, %v763
        %v792 = vpack.c.b16 %v768, %v766
        %v793 = vpack.c.b16 %v769, %v767
        %v794 = vpack.c.b16 %v772, %v770
        %v795 = vpack.c.b16 %v773, %v771
        %v796 = vpack.c.b16 %v776, %v774
        %v797 = vpack.c.b16 %v777, %v775
        %v798 = vpack.c.b16 %v780, %v778
        %v799 = vpack.c.b16 %v781, %v779
        %v800 = vpack.c.b16 %v784, %v782
        %v801 = vpack.c.b16 %v785, %v783
        %818 = vmatpush.bf16.msra.mxu0 %v800
        %819 = vmatpush.bf16.msra.mxu0 %v798
        %820 = vmatpush.bf16.msra.mxu0 %v796
        %821 = vmatpush.bf16.msra.mxu0 %v794
        %822 = vmatpush.bf16.msra.mxu0 %v792
        %823 = vmatpush.bf16.msra.mxu0 %v790
        %824 = vmatpush.bf16.msra.mxu0 %v788
        %825 = vmatpush.bf16.msra.mxu0 %v786
        %826 = vmatmul.bf16.gmra.mxu0 %v674
        %v827 = vpop.f32.mrf.mxu0
        %v828 = vadd.f32 0.0, %v827
        %v829 = vpop.f32.mrf.mxu0
        %v830 = vadd.f32 0.0, %v829
        %831 = vdwg.mxu0
        %832 = vmatpush.bf16.msra.mxu0 %v801
        %833 = vmatpush.bf16.msra.mxu0 %v799
        %834 = vmatpush.bf16.msra.mxu0 %v797
        %835 = vmatpush.bf16.msra.mxu0 %v795
        %836 = vmatpush.bf16.msra.mxu0 %v793
        %837 = vmatpush.bf16.msra.mxu0 %v791
        %838 = vmatpush.bf16.msra.mxu0 %v789
        %839 = vmatpush.bf16.msra.mxu0 %v787
        %840 = vmatmul.bf16.gmra.mxu0 %v674
        %v841 = vpop.f32.mrf.mxu0
        %v842 = vadd.f32 0.0, %v841
        %v843 = vpop.f32.mrf.mxu0
        %v844 = vadd.f32 0.0, %v843
        %845 = vdwg.mxu0
        %v846 = vperm.slane %v657, 1
        %v847 = vadd.f32 %v828, %v846
        %v848 = vadd.f32 %v830, %v846
        %v849 = vperm.slane %v657, 2
        %v850 = vadd.f32 %v842, %v849
        %v851 = vadd.f32 %v844, %v849
        %v852 = vpack.c.bf16 %v734, %v734
        %v853 = vpack.c.bf16 %v736, %v736
        %v854 = vpack.c.bf16 %v847, %v847
        %v855 = vpack.c.bf16 %v848, %v848
        %v856 = vpack.c.bf16 %v850, %v850
        %v857 = vpack.c.bf16 %v851, %v851
        %vm858 = vcmask 130048
        %v860 = vsel %vm858, %v852, 0
        %v863 = vsel %vm858, %v854, 0
        %865 = vmatpush.bf16.xpose.msra.mxu0 0
        %866 = vmatpush.bf16.xpose.msra.mxu0 0
        %867 = vmatpush.bf16.xpose.msra.mxu0 0
        %868 = vmatpush.bf16.xpose.msra.mxu0 0
        %869 = vmatpush.bf16.xpose.msra.mxu0 0
        %870 = vmatpush.bf16.xpose.msra.mxu0 0
        %871 = vmatpush.bf16.xpose.msra.mxu0 0
        %872 = vmatpush.bf16.xpose.msra.mxu0 %v863
        %873 = vmatmul.bf16.gmra.mxu0 %v860
        %v874 = vpop.f32.mrf.mxu0
        %v875 = vadd.f32 0.0, %v874
        %v876 = vpop.f32.mrf.mxu0
        %877 = vdwg.mxu0
        %v879 = vsel %vm858, %v853, 0
        %v882 = vsel %vm858, %v855, 0
        %884 = vmatpush.bf16.xpose.msra.mxu0 0
        %885 = vmatpush.bf16.xpose.msra.mxu0 0
        %886 = vmatpush.bf16.xpose.msra.mxu0 0
        %887 = vmatpush.bf16.xpose.msra.mxu0 0
        %888 = vmatpush.bf16.xpose.msra.mxu0 0
        %889 = vmatpush.bf16.xpose.msra.mxu0 0
        %890 = vmatpush.bf16.xpose.msra.mxu0 0
        %891 = vmatpush.bf16.xpose.msra.mxu0 %v882
        %892 = vmatmul.bf16.gmra.mxu0 %v879
        %v893 = vpop.f32.mrf.mxu0
        %v894 = vadd.f32 0.0, %v893
        %v895 = vpop.f32.mrf.mxu0
        %896 = vdwg.mxu0
        %vm897 = vcmask 64512
        %v898 = vsel %vm897, %v875, -inf
        %899 = vmax.xlane.f32.xlu0 %v898
        %v900 = vpop.xlane.xlu0 %899
        %v901 = vsel %vm897, %v894, -inf
        %902 = vmax.xlane.f32.xlu0 %v901
        %v903 = vpop.xlane.xlu0 %902
        %v904 = vsub.f32 %v875, %v900
        %v905 = vsub.f32 %v894, %v903
        %v906 = vmul.f32 %v904, 1.442695
        %v907 = vpow.pop %v906
        %v908 = vmul.f32 %v905, 1.442695
        %v909 = vpow.pop %v908
        %v910 = vsel %vm897, %v907, 0.0
        %911 = vadd.xlane.f32.xlu0 %v910
        %v912 = vpop.xlane.xlu0 %911
        %v913 = vsel %vm897, %v909, 0.0
        %914 = vadd.xlane.f32.xlu0 %v913
        %v915 = vpop.xlane.xlu0 %914
        %v916 = vrcp.pop %v912
        %v917 = vrcp.pop %v915
        %v918 = vmul.f32 %v907, %v916
        %v919 = vmul.f32 %v909, %v917
        %v920 = vpack.c.bf16 %v918, %v918
        %v921 = vpack.c.bf16 %v919, %v919
        %v923 = vsel %vm897, %v920, 0
        %vm925 = vcmask 1043456
        %v927 = vsel %vm925, %v856, 0
        %929 = vmatpush.bf16.msra.mxu0 0
        %930 = vmatpush.bf16.msra.mxu0 0
        %931 = vmatpush.bf16.msra.mxu0 0
        %932 = vmatpush.bf16.msra.mxu0 0
        %933 = vmatpush.bf16.msra.mxu0 0
        %934 = vmatpush.bf16.msra.mxu0 0
        %935 = vmatpush.bf16.msra.mxu0 0
        %936 = vmatpush.bf16.msra.mxu0 %v927
        %937 = vmatmul.bf16.gmra.mxu0 %v923
        %v938 = vpop.f32.mrf.mxu0
        %v939 = vadd.f32 0.0, %v938
        %v940 = vpop.f32.mrf.mxu0
        %941 = vdwg.mxu0
        %v943 = vsel %vm897, %v921, 0
        %v946 = vsel %vm925, %v857, 0
        %948 = vmatpush.bf16.msra.mxu0 0
        %949 = vmatpush.bf16.msra.mxu0 0
        %950 = vmatpush.bf16.msra.mxu0 0
        %951 = vmatpush.bf16.msra.mxu0 0
        %952 = vmatpush.bf16.msra.mxu0 0
        %953 = vmatpush.bf16.msra.mxu0 0
        %954 = vmatpush.bf16.msra.mxu0 0
        %955 = vmatpush.bf16.msra.mxu0 %v946
        %956 = vmatmul.bf16.gmra.mxu0 %v943
        %v957 = vpop.f32.mrf.mxu0
        %v958 = vadd.f32 0.0, %v957
        %v959 = vpop.f32.mrf.mxu0
        %960 = vdwg.mxu0
        %v962 = vunpack.c.l.b16 %v852
        %v963 = vpack.c.b16 %v962, %v962
        %964 = vrot.lane.b32.xlu0 %v963, 112
        %v965 = vpop.permute.xlu0 %964
        %v967 = vunpack.c.l.b16 %v854
        %v968 = vpack.c.b16 %v967, %v967
        %969 = vrot.lane.b32.xlu0 %v968, 112
        %v970 = vpop.permute.xlu0 %969
        %v972 = vsel %vm858, %v965, 0
        %v975 = vsel %vm858, %v970, 0
        %977 = vmatpush.bf16.xpose.msra.mxu0 0
        %978 = vmatpush.bf16.xpose.msra.mxu0 0
        %979 = vmatpush.bf16.xpose.msra.mxu0 0
        %980 = vmatpush.bf16.xpose.msra.mxu0 0
        %981 = vmatpush.bf16.xpose.msra.mxu0 0
        %982 = vmatpush.bf16.xpose.msra.mxu0 0
        %983 = vmatpush.bf16.xpose.msra.mxu0 0
        %984 = vmatpush.bf16.xpose.msra.mxu0 %v975
        %985 = vmatmul.bf16.gmra.mxu0 %v972
        %v986 = vpop.f32.mrf.mxu0
        %v987 = vadd.f32 0.0, %v986
        %v988 = vpop.f32.mrf.mxu0
        %989 = vdwg.mxu0
        %v991 = vunpack.c.l.b16 %v853
        %v992 = vpack.c.b16 %v991, %v991
        %993 = vrot.lane.b32.xlu0 %v992, 112
        %v994 = vpop.permute.xlu0 %993
        %v996 = vunpack.c.l.b16 %v855
        %v997 = vpack.c.b16 %v996, %v996
        %998 = vrot.lane.b32.xlu0 %v997, 112
        %v999 = vpop.permute.xlu0 %998
        %v1001 = vsel %vm858, %v994, 0
        %v1004 = vsel %vm858, %v999, 0
        %1006 = vmatpush.bf16.xpose.msra.mxu0 0
        %1007 = vmatpush.bf16.xpose.msra.mxu0 0
        %1008 = vmatpush.bf16.xpose.msra.mxu0 0
        %1009 = vmatpush.bf16.xpose.msra.mxu0 0
        %1010 = vmatpush.bf16.xpose.msra.mxu0 0
        %1011 = vmatpush.bf16.xpose.msra.mxu0 0
        %1012 = vmatpush.bf16.xpose.msra.mxu0 0
        %1013 = vmatpush.bf16.xpose.msra.mxu0 %v1004
        %1014 = vmatmul.bf16.gmra.mxu0 %v1001
        %v1015 = vpop.f32.mrf.mxu0
        %v1016 = vadd.f32 0.0, %v1015
        %v1017 = vpop.f32.mrf.mxu0
        %1018 = vdwg.mxu0
        %v1019 = vsel %vm897, %v987, -inf
        %1020 = vmax.xlane.f32.xlu0 %v1019
        %v1021 = vpop.xlane.xlu0 %1020
        %v1022 = vsel %vm897, %v1016, -inf
        %1023 = vmax.xlane.f32.xlu0 %v1022
        %v1024 = vpop.xlane.xlu0 %1023
        %v1025 = vsub.f32 %v987, %v1021
        %v1026 = vsub.f32 %v1016, %v1024
        %v1027 = vmul.f32 %v1025, 1.442695
        %v1028 = vpow.pop %v1027
        %v1029 = vmul.f32 %v1026, 1.442695
        %v1030 = vpow.pop %v1029
        %v1031 = vsel %vm897, %v1028, 0.0
        %1032 = vadd.xlane.f32.xlu0 %v1031
        %v1033 = vpop.xlane.xlu0 %1032
        %v1034 = vsel %vm897, %v1030, 0.0
        %1035 = vadd.xlane.f32.xlu0 %v1034
        %v1036 = vpop.xlane.xlu0 %1035
        %v1037 = vrcp.pop %v1033
        %v1038 = vrcp.pop %v1036
        %v1039 = vmul.f32 %v1028, %v1037
        %v1040 = vmul.f32 %v1030, %v1038
        %v1041 = vpack.c.bf16 %v1039, %v1039
        %v1042 = vpack.c.bf16 %v1040, %v1040
        %v1044 = vunpack.c.l.b16 %v856
        %v1045 = vpack.c.b16 %v1044, %v1044
        %1046 = vrot.lane.b32.xlu0 %v1045, 112
        %v1047 = vpop.permute.xlu0 %1046
        %v1049 = vsel %vm897, %v1041, 0
        %v1052 = vsel %vm925, %v1047, 0
        %1054 = vmatpush.bf16.msra.mxu0 0
        %1055 = vmatpush.bf16.msra.mxu0 0
        %1056 = vmatpush.bf16.msra.mxu0 0
        %1057 = vmatpush.bf16.msra.mxu0 0
        %1058 = vmatpush.bf16.msra.mxu0 0
        %1059 = vmatpush.bf16.msra.mxu0 0
        %1060 = vmatpush.bf16.msra.mxu0 0
        %1061 = vmatpush.bf16.msra.mxu0 %v1052
        %1062 = vmatmul.bf16.gmra.mxu0 %v1049
        %v1063 = vpop.f32.mrf.mxu0
        %v1064 = vadd.f32 0.0, %v1063
        %v1065 = vpop.f32.mrf.mxu0
        %1066 = vdwg.mxu0
        %v1068 = vunpack.c.l.b16 %v857
        %v1069 = vpack.c.b16 %v1068, %v1068
        %1070 = vrot.lane.b32.xlu0 %v1069, 112
        %v1071 = vpop.permute.xlu0 %1070
        %v1073 = vsel %vm897, %v1042, 0
        %v1076 = vsel %vm925, %v1071, 0
        %1078 = vmatpush.bf16.msra.mxu0 0
        %1079 = vmatpush.bf16.msra.mxu0 0
        %1080 = vmatpush.bf16.msra.mxu0 0
        %1081 = vmatpush.bf16.msra.mxu0 0
        %1082 = vmatpush.bf16.msra.mxu0 0
        %1083 = vmatpush.bf16.msra.mxu0 0
        %1084 = vmatpush.bf16.msra.mxu0 0
        %1085 = vmatpush.bf16.msra.mxu0 %v1076
        %1086 = vmatmul.bf16.gmra.mxu0 %v1073
        %v1087 = vpop.f32.mrf.mxu0
        %v1088 = vadd.f32 0.0, %v1087
        %v1089 = vpop.f32.mrf.mxu0
        %1090 = vdwg.mxu0
        %1091 = vrot.lane.b32.xlu0 %v963, 96
        %v1092 = vpop.permute.xlu0 %1091
        %1093 = vrot.lane.b32.xlu0 %v968, 96
        %v1094 = vpop.permute.xlu0 %1093
        %v1096 = vsel %vm858, %v1092, 0
        %v1099 = vsel %vm858, %v1094, 0
        %1101 = vmatpush.bf16.xpose.msra.mxu0 0
        %1102 = vmatpush.bf16.xpose.msra.mxu0 0
        %1103 = vmatpush.bf16.xpose.msra.mxu0 0
        %1104 = vmatpush.bf16.xpose.msra.mxu0 0
        %1105 = vmatpush.bf16.xpose.msra.mxu0 0
        %1106 = vmatpush.bf16.xpose.msra.mxu0 0
        %1107 = vmatpush.bf16.xpose.msra.mxu0 0
        %1108 = vmatpush.bf16.xpose.msra.mxu0 %v1099
        %1109 = vmatmul.bf16.gmra.mxu0 %v1096
        %v1110 = vpop.f32.mrf.mxu0
        %v1111 = vadd.f32 0.0, %v1110
        %v1112 = vpop.f32.mrf.mxu0
        %1113 = vdwg.mxu0
        %1114 = vrot.lane.b32.xlu0 %v992, 96
        %v1115 = vpop.permute.xlu0 %1114
        %1116 = vrot.lane.b32.xlu0 %v997, 96
        %v1117 = vpop.permute.xlu0 %1116
        %v1119 = vsel %vm858, %v1115, 0
        %v1122 = vsel %vm858, %v1117, 0
        %1124 = vmatpush.bf16.xpose.msra.mxu0 0
        %1125 = vmatpush.bf16.xpose.msra.mxu0 0
        %1126 = vmatpush.bf16.xpose.msra.mxu0 0
        %1127 = vmatpush.bf16.xpose.msra.mxu0 0
        %1128 = vmatpush.bf16.xpose.msra.mxu0 0
        %1129 = vmatpush.bf16.xpose.msra.mxu0 0
        %1130 = vmatpush.bf16.xpose.msra.mxu0 0
        %1131 = vmatpush.bf16.xpose.msra.mxu0 %v1122
        %1132 = vmatmul.bf16.gmra.mxu0 %v1119
        %v1133 = vpop.f32.mrf.mxu0
        %v1134 = vadd.f32 0.0, %v1133
        %v1135 = vpop.f32.mrf.mxu0
        %1136 = vdwg.mxu0
        %v1137 = vsel %vm897, %v1111, -inf
        %1138 = vmax.xlane.f32.xlu0 %v1137
        %v1139 = vpop.xlane.xlu0 %1138
        %v1140 = vsel %vm897, %v1134, -inf
        %1141 = vmax.xlane.f32.xlu0 %v1140
        %v1142 = vpop.xlane.xlu0 %1141
        %v1143 = vsub.f32 %v1111, %v1139
        %v1144 = vsub.f32 %v1134, %v1142
        %v1145 = vmul.f32 %v1143, 1.442695
        %v1146 = vpow.pop %v1145
        %v1147 = vmul.f32 %v1144, 1.442695
        %v1148 = vpow.pop %v1147
        %v1149 = vsel %vm897, %v1146, 0.0
        %1150 = vadd.xlane.f32.xlu0 %v1149
        %v1151 = vpop.xlane.xlu0 %1150
        %v1152 = vsel %vm897, %v1148, 0.0
        %1153 = vadd.xlane.f32.xlu0 %v1152
        %v1154 = vpop.xlane.xlu0 %1153
        %v1155 = vrcp.pop %v1151
        %v1156 = vrcp.pop %v1154
        %v1157 = vmul.f32 %v1146, %v1155
        %v1158 = vmul.f32 %v1148, %v1156
        %v1159 = vpack.c.bf16 %v1157, %v1157
        %v1160 = vpack.c.bf16 %v1158, %v1158
        %1161 = vrot.lane.b32.xlu0 %v1045, 96
        %v1162 = vpop.permute.xlu0 %1161
        %v1164 = vsel %vm897, %v1159, 0
        %v1167 = vsel %vm925, %v1162, 0
        %1169 = vmatpush.bf16.msra.mxu0 0
        %1170 = vmatpush.bf16.msra.mxu0 0
        %1171 = vmatpush.bf16.msra.mxu0 0
        %1172 = vmatpush.bf16.msra.mxu0 0
        %1173 = vmatpush.bf16.msra.mxu0 0
        %1174 = vmatpush.bf16.msra.mxu0 0
        %1175 = vmatpush.bf16.msra.mxu0 0
        %1176 = vmatpush.bf16.msra.mxu0 %v1167
        %1177 = vmatmul.bf16.gmra.mxu0 %v1164
        %v1178 = vpop.f32.mrf.mxu0
        %v1179 = vadd.f32 0.0, %v1178
        %v1180 = vpop.f32.mrf.mxu0
        %1181 = vdwg.mxu0
        %1182 = vrot.lane.b32.xlu0 %v1069, 96
        %v1183 = vpop.permute.xlu0 %1182
        %v1185 = vsel %vm897, %v1160, 0
        %v1188 = vsel %vm925, %v1183, 0
        %1190 = vmatpush.bf16.msra.mxu0 0
        %1191 = vmatpush.bf16.msra.mxu0 0
        %1192 = vmatpush.bf16.msra.mxu0 0
        %1193 = vmatpush.bf16.msra.mxu0 0
        %1194 = vmatpush.bf16.msra.mxu0 0
        %1195 = vmatpush.bf16.msra.mxu0 0
        %1196 = vmatpush.bf16.msra.mxu0 0
        %1197 = vmatpush.bf16.msra.mxu0 %v1188
        %1198 = vmatmul.bf16.gmra.mxu0 %v1185
        %v1199 = vpop.f32.mrf.mxu0
        %v1200 = vadd.f32 0.0, %v1199
        %v1201 = vpop.f32.mrf.mxu0
        %1202 = vdwg.mxu0
        %1203 = vrot.lane.b32.xlu0 %v963, 80
        %v1204 = vpop.permute.xlu0 %1203
        %1205 = vrot.lane.b32.xlu0 %v968, 80
        %v1206 = vpop.permute.xlu0 %1205
        %v1208 = vsel %vm858, %v1204, 0
        %v1211 = vsel %vm858, %v1206, 0
        %1213 = vmatpush.bf16.xpose.msra.mxu0 0
        %1214 = vmatpush.bf16.xpose.msra.mxu0 0
        %1215 = vmatpush.bf16.xpose.msra.mxu0 0
        %1216 = vmatpush.bf16.xpose.msra.mxu0 0
        %1217 = vmatpush.bf16.xpose.msra.mxu0 0
        %1218 = vmatpush.bf16.xpose.msra.mxu0 0
        %1219 = vmatpush.bf16.xpose.msra.mxu0 0
        %1220 = vmatpush.bf16.xpose.msra.mxu0 %v1211
        %1221 = vmatmul.bf16.gmra.mxu0 %v1208
        %v1222 = vpop.f32.mrf.mxu0
        %v1223 = vadd.f32 0.0, %v1222
        %v1224 = vpop.f32.mrf.mxu0
        %1225 = vdwg.mxu0
        %1226 = vrot.lane.b32.xlu0 %v992, 80
        %v1227 = vpop.permute.xlu0 %1226
        %1228 = vrot.lane.b32.xlu0 %v997, 80
        %v1229 = vpop.permute.xlu0 %1228
        %v1231 = vsel %vm858, %v1227, 0
        %v1234 = vsel %vm858, %v1229, 0
        %1236 = vmatpush.bf16.xpose.msra.mxu0 0
        %1237 = vmatpush.bf16.xpose.msra.mxu0 0
        %1238 = vmatpush.bf16.xpose.msra.mxu0 0
        %1239 = vmatpush.bf16.xpose.msra.mxu0 0
        %1240 = vmatpush.bf16.xpose.msra.mxu0 0
        %1241 = vmatpush.bf16.xpose.msra.mxu0 0
        %1242 = vmatpush.bf16.xpose.msra.mxu0 0
        %1243 = vmatpush.bf16.xpose.msra.mxu0 %v1234
        %1244 = vmatmul.bf16.gmra.mxu0 %v1231
        %v1245 = vpop.f32.mrf.mxu0
        %v1246 = vadd.f32 0.0, %v1245
        %v1247 = vpop.f32.mrf.mxu0
        %1248 = vdwg.mxu0
        %v1249 = vsel %vm897, %v1223, -inf
        %1250 = vmax.xlane.f32.xlu0 %v1249
        %v1251 = vpop.xlane.xlu0 %1250
        %v1252 = vsel %vm897, %v1246, -inf
        %1253 = vmax.xlane.f32.xlu0 %v1252
        %v1254 = vpop.xlane.xlu0 %1253
        %v1255 = vsub.f32 %v1223, %v1251
        %v1256 = vsub.f32 %v1246, %v1254
        %v1257 = vmul.f32 %v1255, 1.442695
        %v1258 = vpow.pop %v1257
        %v1259 = vmul.f32 %v1256, 1.442695
        %v1260 = vpow.pop %v1259
        %v1261 = vsel %vm897, %v1258, 0.0
        %1262 = vadd.xlane.f32.xlu0 %v1261
        %v1263 = vpop.xlane.xlu0 %1262
        %v1264 = vsel %vm897, %v1260, 0.0
        %1265 = vadd.xlane.f32.xlu0 %v1264
        %v1266 = vpop.xlane.xlu0 %1265
        %v1267 = vrcp.pop %v1263
        %v1268 = vrcp.pop %v1266
        %v1269 = vmul.f32 %v1258, %v1267
        %v1270 = vmul.f32 %v1260, %v1268
        %v1271 = vpack.c.bf16 %v1269, %v1269
        %v1272 = vpack.c.bf16 %v1270, %v1270
        %1273 = vrot.lane.b32.xlu0 %v1045, 80
        %v1274 = vpop.permute.xlu0 %1273
        %v1276 = vsel %vm897, %v1271, 0
        %v1279 = vsel %vm925, %v1274, 0
        %1281 = vmatpush.bf16.msra.mxu0 0
        %1282 = vmatpush.bf16.msra.mxu0 0
        %1283 = vmatpush.bf16.msra.mxu0 0
        %1284 = vmatpush.bf16.msra.mxu0 0
        %1285 = vmatpush.bf16.msra.mxu0 0
        %1286 = vmatpush.bf16.msra.mxu0 0
        %1287 = vmatpush.bf16.msra.mxu0 0
        %1288 = vmatpush.bf16.msra.mxu0 %v1279
        %1289 = vmatmul.bf16.gmra.mxu0 %v1276
        %v1290 = vpop.f32.mrf.mxu0
        %v1291 = vadd.f32 0.0, %v1290
        %v1292 = vpop.f32.mrf.mxu0
        %1293 = vdwg.mxu0
        %1294 = vrot.lane.b32.xlu0 %v1069, 80
        %v1295 = vpop.permute.xlu0 %1294
        %v1297 = vsel %vm897, %v1272, 0
        %v1300 = vsel %vm925, %v1295, 0
        %1302 = vmatpush.bf16.msra.mxu0 0
        %1303 = vmatpush.bf16.msra.mxu0 0
        %1304 = vmatpush.bf16.msra.mxu0 0
        %1305 = vmatpush.bf16.msra.mxu0 0
        %1306 = vmatpush.bf16.msra.mxu0 0
        %1307 = vmatpush.bf16.msra.mxu0 0
        %1308 = vmatpush.bf16.msra.mxu0 0
        %1309 = vmatpush.bf16.msra.mxu0 %v1300
        %1310 = vmatmul.bf16.gmra.mxu0 %v1297
        %v1311 = vpop.f32.mrf.mxu0
        %v1312 = vadd.f32 0.0, %v1311
        %v1313 = vpop.f32.mrf.mxu0
        %1314 = vdwg.mxu0
        %1315 = vrot.lane.b32.xlu0 %v963, 64
        %v1316 = vpop.permute.xlu0 %1315
        %1317 = vrot.lane.b32.xlu0 %v968, 64
        %v1318 = vpop.permute.xlu0 %1317
        %v1320 = vsel %vm858, %v1316, 0
        %v1323 = vsel %vm858, %v1318, 0
        %1325 = vmatpush.bf16.xpose.msra.mxu0 0
        %1326 = vmatpush.bf16.xpose.msra.mxu0 0
        %1327 = vmatpush.bf16.xpose.msra.mxu0 0
        %1328 = vmatpush.bf16.xpose.msra.mxu0 0
        %1329 = vmatpush.bf16.xpose.msra.mxu0 0
        %1330 = vmatpush.bf16.xpose.msra.mxu0 0
        %1331 = vmatpush.bf16.xpose.msra.mxu0 0
        %1332 = vmatpush.bf16.xpose.msra.mxu0 %v1323
        %1333 = vmatmul.bf16.gmra.mxu0 %v1320
        %v1334 = vpop.f32.mrf.mxu0
        %v1335 = vadd.f32 0.0, %v1334
        %v1336 = vpop.f32.mrf.mxu0
        %1337 = vdwg.mxu0
        %1338 = vrot.lane.b32.xlu0 %v992, 64
        %v1339 = vpop.permute.xlu0 %1338
        %1340 = vrot.lane.b32.xlu0 %v997, 64
        %v1341 = vpop.permute.xlu0 %1340
        %v1343 = vsel %vm858, %v1339, 0
        %v1346 = vsel %vm858, %v1341, 0
        %1348 = vmatpush.bf16.xpose.msra.mxu0 0
        %1349 = vmatpush.bf16.xpose.msra.mxu0 0
        %1350 = vmatpush.bf16.xpose.msra.mxu0 0
        %1351 = vmatpush.bf16.xpose.msra.mxu0 0
        %1352 = vmatpush.bf16.xpose.msra.mxu0 0
        %1353 = vmatpush.bf16.xpose.msra.mxu0 0
        %1354 = vmatpush.bf16.xpose.msra.mxu0 0
        %1355 = vmatpush.bf16.xpose.msra.mxu0 %v1346
        %1356 = vmatmul.bf16.gmra.mxu0 %v1343
        %v1357 = vpop.f32.mrf.mxu0
        %v1358 = vadd.f32 0.0, %v1357
        %v1359 = vpop.f32.mrf.mxu0
        %1360 = vdwg.mxu0
        %v1361 = vsel %vm897, %v1335, -inf
        %1362 = vmax.xlane.f32.xlu0 %v1361
        %v1363 = vpop.xlane.xlu0 %1362
        %v1364 = vsel %vm897, %v1358, -inf
        %1365 = vmax.xlane.f32.xlu0 %v1364
        %v1366 = vpop.xlane.xlu0 %1365
        %v1367 = vsub.f32 %v1335, %v1363
        %v1368 = vsub.f32 %v1358, %v1366
        %v1369 = vmul.f32 %v1367, 1.442695
        %v1370 = vpow.pop %v1369
        %v1371 = vmul.f32 %v1368, 1.442695
        %v1372 = vpow.pop %v1371
        %v1373 = vsel %vm897, %v1370, 0.0
        %1374 = vadd.xlane.f32.xlu0 %v1373
        %v1375 = vpop.xlane.xlu0 %1374
        %v1376 = vsel %vm897, %v1372, 0.0
        %1377 = vadd.xlane.f32.xlu0 %v1376
        %v1378 = vpop.xlane.xlu0 %1377
        %v1379 = vrcp.pop %v1375
        %v1380 = vrcp.pop %v1378
        %v1381 = vmul.f32 %v1370, %v1379
        %v1382 = vmul.f32 %v1372, %v1380
        %v1383 = vpack.c.bf16 %v1381, %v1381
        %v1384 = vpack.c.bf16 %v1382, %v1382
        %1385 = vrot.lane.b32.xlu0 %v1045, 64
        %v1386 = vpop.permute.xlu0 %1385
        %v1388 = vsel %vm897, %v1383, 0
        %v1391 = vsel %vm925, %v1386, 0
        %1393 = vmatpush.bf16.msra.mxu0 0
        %1394 = vmatpush.bf16.msra.mxu0 0
        %1395 = vmatpush.bf16.msra.mxu0 0
        %1396 = vmatpush.bf16.msra.mxu0 0
        %1397 = vmatpush.bf16.msra.mxu0 0
        %1398 = vmatpush.bf16.msra.mxu0 0
        %1399 = vmatpush.bf16.msra.mxu0 0
        %1400 = vmatpush.bf16.msra.mxu0 %v1391
        %1401 = vmatmul.bf16.gmra.mxu0 %v1388
        %v1402 = vpop.f32.mrf.mxu0
        %v1403 = vadd.f32 0.0, %v1402
        %v1404 = vpop.f32.mrf.mxu0
        %1405 = vdwg.mxu0
        %1406 = vrot.lane.b32.xlu0 %v1069, 64
        %v1407 = vpop.permute.xlu0 %1406
        %v1409 = vsel %vm897, %v1384, 0
        %v1412 = vsel %vm925, %v1407, 0
        %1414 = vmatpush.bf16.msra.mxu0 0
        %1415 = vmatpush.bf16.msra.mxu0 0
        %1416 = vmatpush.bf16.msra.mxu0 0
        %1417 = vmatpush.bf16.msra.mxu0 0
        %1418 = vmatpush.bf16.msra.mxu0 0
        %1419 = vmatpush.bf16.msra.mxu0 0
        %1420 = vmatpush.bf16.msra.mxu0 0
        %1421 = vmatpush.bf16.msra.mxu0 %v1412
        %1422 = vmatmul.bf16.gmra.mxu0 %v1409
        %v1423 = vpop.f32.mrf.mxu0
        %v1424 = vadd.f32 0.0, %v1423
        %v1425 = vpop.f32.mrf.mxu0
        %1426 = vdwg.mxu0
        %1427 = vrot.lane.b32.xlu0 %v963, 48
        %v1428 = vpop.permute.xlu0 %1427
        %1429 = vrot.lane.b32.xlu0 %v968, 48
        %v1430 = vpop.permute.xlu0 %1429
        %v1432 = vsel %vm858, %v1428, 0
        %v1435 = vsel %vm858, %v1430, 0
        %1437 = vmatpush.bf16.xpose.msra.mxu0 0
        %1438 = vmatpush.bf16.xpose.msra.mxu0 0
        %1439 = vmatpush.bf16.xpose.msra.mxu0 0
        %1440 = vmatpush.bf16.xpose.msra.mxu0 0
        %1441 = vmatpush.bf16.xpose.msra.mxu0 0
        %1442 = vmatpush.bf16.xpose.msra.mxu0 0
        %1443 = vmatpush.bf16.xpose.msra.mxu0 0
        %1444 = vmatpush.bf16.xpose.msra.mxu0 %v1435
        %1445 = vmatmul.bf16.gmra.mxu0 %v1432
        %v1446 = vpop.f32.mrf.mxu0
        %v1447 = vadd.f32 0.0, %v1446
        %v1448 = vpop.f32.mrf.mxu0
        %1449 = vdwg.mxu0
        %1450 = vrot.lane.b32.xlu0 %v992, 48
        %v1451 = vpop.permute.xlu0 %1450
        %1452 = vrot.lane.b32.xlu0 %v997, 48
        %v1453 = vpop.permute.xlu0 %1452
        %v1455 = vsel %vm858, %v1451, 0
        %v1458 = vsel %vm858, %v1453, 0
        %1460 = vmatpush.bf16.xpose.msra.mxu0 0
        %1461 = vmatpush.bf16.xpose.msra.mxu0 0
        %1462 = vmatpush.bf16.xpose.msra.mxu0 0
        %1463 = vmatpush.bf16.xpose.msra.mxu0 0
        %1464 = vmatpush.bf16.xpose.msra.mxu0 0
        %1465 = vmatpush.bf16.xpose.msra.mxu0 0
        %1466 = vmatpush.bf16.xpose.msra.mxu0 0
        %1467 = vmatpush.bf16.xpose.msra.mxu0 %v1458
        %1468 = vmatmul.bf16.gmra.mxu0 %v1455
        %v1469 = vpop.f32.mrf.mxu0
        %v1470 = vadd.f32 0.0, %v1469
        %v1471 = vpop.f32.mrf.mxu0
        %1472 = vdwg.mxu0
        %v1473 = vsel %vm897, %v1447, -inf
        %1474 = vmax.xlane.f32.xlu0 %v1473
        %v1475 = vpop.xlane.xlu0 %1474
        %v1476 = vsel %vm897, %v1470, -inf
        %1477 = vmax.xlane.f32.xlu0 %v1476
        %v1478 = vpop.xlane.xlu0 %1477
        %v1479 = vsub.f32 %v1447, %v1475
        %v1480 = vsub.f32 %v1470, %v1478
        %v1481 = vmul.f32 %v1479, 1.442695
        %v1482 = vpow.pop %v1481
        %v1483 = vmul.f32 %v1480, 1.442695
        %v1484 = vpow.pop %v1483
        %v1485 = vsel %vm897, %v1482, 0.0
        %1486 = vadd.xlane.f32.xlu0 %v1485
        %v1487 = vpop.xlane.xlu0 %1486
        %v1488 = vsel %vm897, %v1484, 0.0
        %1489 = vadd.xlane.f32.xlu0 %v1488
        %v1490 = vpop.xlane.xlu0 %1489
        %v1491 = vrcp.pop %v1487
        %v1492 = vrcp.pop %v1490
        %v1493 = vmul.f32 %v1482, %v1491
        %v1494 = vmul.f32 %v1484, %v1492
        %v1495 = vpack.c.bf16 %v1493, %v1493
        %v1496 = vpack.c.bf16 %v1494, %v1494
        %1497 = vrot.lane.b32.xlu0 %v1045, 48
        %v1498 = vpop.permute.xlu0 %1497
        %v1500 = vsel %vm897, %v1495, 0
        %v1503 = vsel %vm925, %v1498, 0
        %1505 = vmatpush.bf16.msra.mxu0 0
        %1506 = vmatpush.bf16.msra.mxu0 0
        %1507 = vmatpush.bf16.msra.mxu0 0
        %1508 = vmatpush.bf16.msra.mxu0 0
        %1509 = vmatpush.bf16.msra.mxu0 0
        %1510 = vmatpush.bf16.msra.mxu0 0
        %1511 = vmatpush.bf16.msra.mxu0 0
        %1512 = vmatpush.bf16.msra.mxu0 %v1503
        %1513 = vmatmul.bf16.gmra.mxu0 %v1500
        %v1514 = vpop.f32.mrf.mxu0
        %v1515 = vadd.f32 0.0, %v1514
        %v1516 = vpop.f32.mrf.mxu0
        %1517 = vdwg.mxu0
        %1518 = vrot.lane.b32.xlu0 %v1069, 48
        %v1519 = vpop.permute.xlu0 %1518
        %v1521 = vsel %vm897, %v1496, 0
        %v1524 = vsel %vm925, %v1519, 0
        %1526 = vmatpush.bf16.msra.mxu0 0
        %1527 = vmatpush.bf16.msra.mxu0 0
        %1528 = vmatpush.bf16.msra.mxu0 0
        %1529 = vmatpush.bf16.msra.mxu0 0
        %1530 = vmatpush.bf16.msra.mxu0 0
        %1531 = vmatpush.bf16.msra.mxu0 0
        %1532 = vmatpush.bf16.msra.mxu0 0
        %1533 = vmatpush.bf16.msra.mxu0 %v1524
        %1534 = vmatmul.bf16.gmra.mxu0 %v1521
        %v1535 = vpop.f32.mrf.mxu0
        %v1536 = vadd.f32 0.0, %v1535
        %v1537 = vpop.f32.mrf.mxu0
        %1538 = vdwg.mxu0
        %1539 = vrot.lane.b32.xlu0 %v963, 32
        %v1540 = vpop.permute.xlu0 %1539
        %1541 = vrot.lane.b32.xlu0 %v968, 32
        %v1542 = vpop.permute.xlu0 %1541
        %v1544 = vsel %vm858, %v1540, 0
        %v1547 = vsel %vm858, %v1542, 0
        %1549 = vmatpush.bf16.xpose.msra.mxu0 0
        %1550 = vmatpush.bf16.xpose.msra.mxu0 0
        %1551 = vmatpush.bf16.xpose.msra.mxu0 0
        %1552 = vmatpush.bf16.xpose.msra.mxu0 0
        %1553 = vmatpush.bf16.xpose.msra.mxu0 0
        %1554 = vmatpush.bf16.xpose.msra.mxu0 0
        %1555 = vmatpush.bf16.xpose.msra.mxu0 0
        %1556 = vmatpush.bf16.xpose.msra.mxu0 %v1547
        %1557 = vmatmul.bf16.gmra.mxu0 %v1544
        %v1558 = vpop.f32.mrf.mxu0
        %v1559 = vadd.f32 0.0, %v1558
        %v1560 = vpop.f32.mrf.mxu0
        %1561 = vdwg.mxu0
        %1562 = vrot.lane.b32.xlu0 %v992, 32
        %v1563 = vpop.permute.xlu0 %1562
        %1564 = vrot.lane.b32.xlu0 %v997, 32
        %v1565 = vpop.permute.xlu0 %1564
        %v1567 = vsel %vm858, %v1563, 0
        %v1570 = vsel %vm858, %v1565, 0
        %1572 = vmatpush.bf16.xpose.msra.mxu0 0
        %1573 = vmatpush.bf16.xpose.msra.mxu0 0
        %1574 = vmatpush.bf16.xpose.msra.mxu0 0
        %1575 = vmatpush.bf16.xpose.msra.mxu0 0
        %1576 = vmatpush.bf16.xpose.msra.mxu0 0
        %1577 = vmatpush.bf16.xpose.msra.mxu0 0
        %1578 = vmatpush.bf16.xpose.msra.mxu0 0
        %1579 = vmatpush.bf16.xpose.msra.mxu0 %v1570
        %1580 = vmatmul.bf16.gmra.mxu0 %v1567
        %v1581 = vpop.f32.mrf.mxu0
        %v1582 = vadd.f32 0.0, %v1581
        %v1583 = vpop.f32.mrf.mxu0
        %1584 = vdwg.mxu0
        %v1585 = vsel %vm897, %v1559, -inf
        %1586 = vmax.xlane.f32.xlu0 %v1585
        %v1587 = vpop.xlane.xlu0 %1586
        %v1588 = vsel %vm897, %v1582, -inf
        %1589 = vmax.xlane.f32.xlu0 %v1588
        %v1590 = vpop.xlane.xlu0 %1589
        %v1591 = vsub.f32 %v1559, %v1587
        %v1592 = vsub.f32 %v1582, %v1590
        %v1593 = vmul.f32 %v1591, 1.442695
        %v1594 = vpow.pop %v1593
        %v1595 = vmul.f32 %v1592, 1.442695
        %v1596 = vpow.pop %v1595
        %v1597 = vsel %vm897, %v1594, 0.0
        %1598 = vadd.xlane.f32.xlu0 %v1597
        %v1599 = vpop.xlane.xlu0 %1598
        %v1600 = vsel %vm897, %v1596, 0.0
        %1601 = vadd.xlane.f32.xlu0 %v1600
        %v1602 = vpop.xlane.xlu0 %1601
        %v1603 = vrcp.pop %v1599
        %v1604 = vrcp.pop %v1602
        %v1605 = vmul.f32 %v1594, %v1603
        %v1606 = vmul.f32 %v1596, %v1604
        %v1607 = vpack.c.bf16 %v1605, %v1605
        %v1608 = vpack.c.bf16 %v1606, %v1606
        %1609 = vrot.lane.b32.xlu0 %v1045, 32
        %v1610 = vpop.permute.xlu0 %1609
        %v1612 = vsel %vm897, %v1607, 0
        %v1615 = vsel %vm925, %v1610, 0
        %1617 = vmatpush.bf16.msra.mxu0 0
        %1618 = vmatpush.bf16.msra.mxu0 0
        %1619 = vmatpush.bf16.msra.mxu0 0
        %1620 = vmatpush.bf16.msra.mxu0 0
        %1621 = vmatpush.bf16.msra.mxu0 0
        %1622 = vmatpush.bf16.msra.mxu0 0
        %1623 = vmatpush.bf16.msra.mxu0 0
        %1624 = vmatpush.bf16.msra.mxu0 %v1615
        %1625 = vmatmul.bf16.gmra.mxu0 %v1612
        %v1626 = vpop.f32.mrf.mxu0
        %v1627 = vadd.f32 0.0, %v1626
        %v1628 = vpop.f32.mrf.mxu0
        %1629 = vdwg.mxu0
        %1630 = vrot.lane.b32.xlu0 %v1069, 32
        %v1631 = vpop.permute.xlu0 %1630
        %v1633 = vsel %vm897, %v1608, 0
        %v1636 = vsel %vm925, %v1631, 0
        %1638 = vmatpush.bf16.msra.mxu0 0
        %1639 = vmatpush.bf16.msra.mxu0 0
        %1640 = vmatpush.bf16.msra.mxu0 0
        %1641 = vmatpush.bf16.msra.mxu0 0
        %1642 = vmatpush.bf16.msra.mxu0 0
        %1643 = vmatpush.bf16.msra.mxu0 0
        %1644 = vmatpush.bf16.msra.mxu0 0
        %1645 = vmatpush.bf16.msra.mxu0 %v1636
        %1646 = vmatmul.bf16.gmra.mxu0 %v1633
        %v1647 = vpop.f32.mrf.mxu0
        %v1648 = vadd.f32 0.0, %v1647
        %v1649 = vpop.f32.mrf.mxu0
        %1650 = vdwg.mxu0
        %1651 = vrot.lane.b32.xlu0 %v963, 16
        %v1652 = vpop.permute.xlu0 %1651
        %1653 = vrot.lane.b32.xlu0 %v968, 16
        %v1654 = vpop.permute.xlu0 %1653
        %v1656 = vsel %vm858, %v1652, 0
        %v1659 = vsel %vm858, %v1654, 0
        %1661 = vmatpush.bf16.xpose.msra.mxu0 0
        %1662 = vmatpush.bf16.xpose.msra.mxu0 0
        %1663 = vmatpush.bf16.xpose.msra.mxu0 0
        %1664 = vmatpush.bf16.xpose.msra.mxu0 0
        %1665 = vmatpush.bf16.xpose.msra.mxu0 0
        %1666 = vmatpush.bf16.xpose.msra.mxu0 0
        %1667 = vmatpush.bf16.xpose.msra.mxu0 0
        %1668 = vmatpush.bf16.xpose.msra.mxu0 %v1659
        %1669 = vmatmul.bf16.gmra.mxu0 %v1656
        %v1670 = vpop.f32.mrf.mxu0
        %v1671 = vadd.f32 0.0, %v1670
        %v1672 = vpop.f32.mrf.mxu0
        %1673 = vdwg.mxu0
        %1674 = vrot.lane.b32.xlu0 %v992, 16
        %v1675 = vpop.permute.xlu0 %1674
        %1676 = vrot.lane.b32.xlu0 %v997, 16
        %v1677 = vpop.permute.xlu0 %1676
        %v1679 = vsel %vm858, %v1675, 0
        %v1682 = vsel %vm858, %v1677, 0
        %1684 = vmatpush.bf16.xpose.msra.mxu0 0
        %1685 = vmatpush.bf16.xpose.msra.mxu0 0
        %1686 = vmatpush.bf16.xpose.msra.mxu0 0
        %1687 = vmatpush.bf16.xpose.msra.mxu0 0
        %1688 = vmatpush.bf16.xpose.msra.mxu0 0
        %1689 = vmatpush.bf16.xpose.msra.mxu0 0
        %1690 = vmatpush.bf16.xpose.msra.mxu0 0
        %1691 = vmatpush.bf16.xpose.msra.mxu0 %v1682
        %1692 = vmatmul.bf16.gmra.mxu0 %v1679
        %v1693 = vpop.f32.mrf.mxu0
        %v1694 = vadd.f32 0.0, %v1693
        %v1695 = vpop.f32.mrf.mxu0
        %1696 = vdwg.mxu0
        %v1697 = vsel %vm897, %v1671, -inf
        %1698 = vmax.xlane.f32.xlu0 %v1697
        %v1699 = vpop.xlane.xlu0 %1698
        %v1700 = vsel %vm897, %v1694, -inf
        %1701 = vmax.xlane.f32.xlu0 %v1700
        %v1702 = vpop.xlane.xlu0 %1701
        %v1703 = vsub.f32 %v1671, %v1699
        %v1704 = vsub.f32 %v1694, %v1702
        %v1705 = vmul.f32 %v1703, 1.442695
        %v1706 = vpow.pop %v1705
        %v1707 = vmul.f32 %v1704, 1.442695
        %v1708 = vpow.pop %v1707
        %v1709 = vsel %vm897, %v1706, 0.0
        %1710 = vadd.xlane.f32.xlu0 %v1709
        %v1711 = vpop.xlane.xlu0 %1710
        %v1712 = vsel %vm897, %v1708, 0.0
        %1713 = vadd.xlane.f32.xlu0 %v1712
        %v1714 = vpop.xlane.xlu0 %1713
        %v1715 = vrcp.pop %v1711
        %v1716 = vrcp.pop %v1714
        %v1717 = vmul.f32 %v1706, %v1715
        %v1718 = vmul.f32 %v1708, %v1716
        %v1719 = vpack.c.bf16 %v1717, %v1717
        %v1720 = vpack.c.bf16 %v1718, %v1718
        %1721 = vrot.lane.b32.xlu0 %v1045, 16
        %v1722 = vpop.permute.xlu0 %1721
        %v1724 = vsel %vm897, %v1719, 0
        %v1727 = vsel %vm925, %v1722, 0
        %1729 = vmatpush.bf16.msra.mxu0 0
        %1730 = vmatpush.bf16.msra.mxu0 0
        %1731 = vmatpush.bf16.msra.mxu0 0
        %1732 = vmatpush.bf16.msra.mxu0 0
        %1733 = vmatpush.bf16.msra.mxu0 0
        %1734 = vmatpush.bf16.msra.mxu0 0
        %1735 = vmatpush.bf16.msra.mxu0 0
        %1736 = vmatpush.bf16.msra.mxu0 %v1727
        %1737 = vmatmul.bf16.gmra.mxu0 %v1724
        %v1738 = vpop.f32.mrf.mxu0
        %v1739 = vadd.f32 0.0, %v1738
        %v1740 = vpop.f32.mrf.mxu0
        %1741 = vdwg.mxu0
        %1742 = vrot.lane.b32.xlu0 %v1069, 16
        %v1743 = vpop.permute.xlu0 %1742
        %v1745 = vsel %vm897, %v1720, 0
        %v1748 = vsel %vm925, %v1743, 0
        %1750 = vmatpush.bf16.msra.mxu0 0
        %1751 = vmatpush.bf16.msra.mxu0 0
        %1752 = vmatpush.bf16.msra.mxu0 0
        %1753 = vmatpush.bf16.msra.mxu0 0
        %1754 = vmatpush.bf16.msra.mxu0 0
        %1755 = vmatpush.bf16.msra.mxu0 0
        %1756 = vmatpush.bf16.msra.mxu0 0
        %1757 = vmatpush.bf16.msra.mxu0 %v1748
        %1758 = vmatmul.bf16.gmra.mxu0 %v1745
        %v1759 = vpop.f32.mrf.mxu0
        %v1760 = vadd.f32 0.0, %v1759
        %v1761 = vpop.f32.mrf.mxu0
        %1762 = vdwg.mxu0
        %1765 = vrot.lane.b32.xlu0 %v1064, 16
        %v1766 = vpop.permute.xlu0 %1765
        %1767 = vrot.lane.b32.xlu0 %v1088, 16
        %v1768 = vpop.permute.xlu0 %1767
        %1773 = vrot.lane.b32.xlu0 %v1179, 32
        %v1774 = vpop.permute.xlu0 %1773
        %1775 = vrot.lane.b32.xlu0 %v1200, 32
        %v1776 = vpop.permute.xlu0 %1775
        %1781 = vrot.lane.b32.xlu0 %v1291, 48
        %v1782 = vpop.permute.xlu0 %1781
        %1783 = vrot.lane.b32.xlu0 %v1312, 48
        %v1784 = vpop.permute.xlu0 %1783
        %1789 = vrot.lane.b32.xlu0 %v1403, 64
        %v1790 = vpop.permute.xlu0 %1789
        %1791 = vrot.lane.b32.xlu0 %v1424, 64
        %v1792 = vpop.permute.xlu0 %1791
        %1797 = vrot.lane.b32.xlu0 %v1515, 80
        %v1798 = vpop.permute.xlu0 %1797
        %1799 = vrot.lane.b32.xlu0 %v1536, 80
        %v1800 = vpop.permute.xlu0 %1799
        %1805 = vrot.lane.b32.xlu0 %v1627, 96
        %v1806 = vpop.permute.xlu0 %1805
        %1807 = vrot.lane.b32.xlu0 %v1648, 96
        %v1808 = vpop.permute.xlu0 %1807
        %1813 = vrot.lane.b32.xlu0 %v1739, 112
        %v1814 = vpop.permute.xlu0 %1813
        %1815 = vrot.lane.b32.xlu0 %v1760, 112
        %v1816 = vpop.permute.xlu0 %1815
        %v1819 = vsel %vm858, %v939, %v1766
        %v1820 = vsel %vm858, %v958, %v1768
        %vm1821 = vcmask 261120
        %v1822 = vsel %vm1821, %v1819, %v1774
        %v1823 = vsel %vm1821, %v1820, %v1776
        %vm1824 = vcmask 392192
        %v1825 = vsel %vm1824, %v1822, %v1782
        %v1826 = vsel %vm1824, %v1823, %v1784
        %vm1827 = vcmask 523264
        %v1828 = vsel %vm1827, %v1825, %v1790
        %v1829 = vsel %vm1827, %v1826, %v1792
        %vm1830 = vcmask 654336
        %v1831 = vsel %vm1830, %v1828, %v1798
        %v1832 = vsel %vm1830, %v1829, %v1800
        %vm1833 = vcmask 785408
        %v1834 = vsel %vm1833, %v1831, %v1806
        %v1835 = vsel %vm1833, %v1832, %v1808
        %vm1836 = vcmask 916480
        %v1837 = vsel %vm1836, %v1834, %v1814
        %v1838 = vsel %vm1836, %v1835, %v1816
        %v1839 = vpack.c.bf16 %v1838, %v1837
        %v1840 = vperm.slane %v657, 3
        %v1857 = vunpack.c.l.b16 %v593
        %v1858 = vunpack.c.l.b16 %v594
        %v1859 = vunpack.c.l.b16 %v595
        %v1860 = vunpack.c.l.b16 %v596
        %v1861 = vunpack.c.l.b16 %v597
        %v1862 = vunpack.c.l.b16 %v598
        %v1863 = vunpack.c.l.b16 %v599
        %v1864 = vunpack.c.l.b16 %v600
        %v1865 = vunpack.c.l.b16 %v601
        %v1866 = vunpack.c.l.b16 %v602
        %v1867 = vunpack.c.l.b16 %v603
        %v1868 = vunpack.c.l.b16 %v604
        %v1869 = vunpack.c.l.b16 %v605
        %v1870 = vunpack.c.l.b16 %v606
        %v1871 = vunpack.c.l.b16 %v607
        %v1872 = vunpack.c.l.b16 %v608
        %v1873 = vpack.c.b16 %v1858, %v1857
        %v1874 = vpack.c.b16 %v1860, %v1859
        %v1875 = vpack.c.b16 %v1862, %v1861
        %v1876 = vpack.c.b16 %v1864, %v1863
        %v1877 = vpack.c.b16 %v1866, %v1865
        %v1878 = vpack.c.b16 %v1868, %v1867
        %v1879 = vpack.c.b16 %v1870, %v1869
        %v1880 = vpack.c.b16 %v1872, %v1871
        %1889 = vmatpush.bf16.msra.mxu0 %v1880
        %1890 = vmatpush.bf16.msra.mxu0 %v1879
        %1891 = vmatpush.bf16.msra.mxu0 %v1878
        %1892 = vmatpush.bf16.msra.mxu0 %v1877
        %1893 = vmatpush.bf16.msra.mxu0 %v1876
        %1894 = vmatpush.bf16.msra.mxu0 %v1875
        %1895 = vmatpush.bf16.msra.mxu0 %v1874
        %1896 = vmatpush.bf16.msra.mxu0 %v1873
        %1897 = vmatmul.bf16.gmra.mxu0 %v1839
        %v1898 = vpop.f32.mrf.mxu0
        %v1899 = vadd.f32 %v1840, %v1898
        %v1900 = vpop.f32.mrf.mxu0
        %v1901 = vadd.f32 %v1840, %v1900
        %1902 = vdwg.mxu0
        %v1903 = vadd.f32 %v672, %v1899
        %v1904 = vadd.f32 %v673, %v1901
        %1905 = vadd.xlane.f32.xlu0 %v1903
        %v1906 = vpop.xlane.xlu0 %1905
        %1907 = vadd.xlane.f32.xlu0 %v1904
        %v1908 = vpop.xlane.xlu0 %1907
        %v1909 = vrcp.pop 128.0
        %v1910 = vmul.f32 128.0, %v1909
        %v1911 = vsub.f32 1.0, %v1910
        %v1912 = vmul.f32 %v1909, %v1911
        %v1913 = vadd.f32 %v1909, %v1912
        %vm1914 = vweird.f32 %v1909
        %v1915 = vsel %vm1914, %v1909, %v1913
        %v1916 = vmul.f32 %v1906, %v1915
        %v1917 = vmul.f32 %v1908, %v1915
        %v1918 = vsub.f32 %v1903, %v1916
        %v1919 = vsub.f32 %v1904, %v1917
        %v1920 = vmul.f32 %v1918, %v1918
        %v1921 = vmul.f32 %v1919, %v1919
        %1922 = vadd.xlane.f32.xlu0 %v1920
        %v1923 = vpop.xlane.xlu0 %1922
        %1924 = vadd.xlane.f32.xlu0 %v1921
        %v1925 = vpop.xlane.xlu0 %1924
        %v1926 = vmul.f32 %v1923, %v1915
        %v1927 = vmul.f32 %v1925, %v1915
        %v1928 = vadd.f32 %v1926, 1e-05
        %v1929 = vadd.f32 %v1927, 1e-05
        %v1930 = vrsqrt.pop %v1928
        %v1931 = vmul.f32 %v1930, %v1928
        %v1932 = vmul.f32 %v1931, %v1930
        %v1933 = vmul.f32 0.5, %v1932
        %v1934 = vsub.f32 1.5, %v1933
        %v1935 = vmul.f32 %v1930, %v1934
        %vm1936 = vweird.f32 %v1928
        %vm1937 = vweird.f32 %v1930
        %vm1938 = vmor %vm1936, %vm1937
        %v1939 = vsel %vm1938, %v1930, %v1935
        %v1940 = vrsqrt.pop %v1929
        %v1941 = vmul.f32 %v1940, %v1929
        %v1942 = vmul.f32 %v1941, %v1940
        %v1943 = vmul.f32 0.5, %v1942
        %v1944 = vsub.f32 1.5, %v1943
        %v1945 = vmul.f32 %v1940, %v1944
        %vm1946 = vweird.f32 %v1929
        %vm1947 = vweird.f32 %v1940
        %vm1948 = vmor %vm1946, %vm1947
        %v1949 = vsel %vm1948, %v1940, %v1945
        %v1950 = vmul.f32 %v1918, %v1939
        %v1951 = vmul.f32 %v1919, %v1949
        %v1952 = vperm.slane %v657, 5
        %v1953 = vmul.f32 %v1950, %v1952
        %v1954 = vmul.f32 %v1951, %v1952
        %v1955 = vperm.slane %v657, 6
        %v1956 = vadd.f32 %v1953, %v1955
        %v1957 = vadd.f32 %v1954, %v1955
        %v1958 = vpack.c.bf16 %v1957, %v1956
        %v1960 = vperm.slane %v659, 0
        %v1961 = vperm.slane %v659, 1
        %v1980 = vunpack.c.l.b16 %v609
        %v1981 = vunpack.c.h.b16 %v609
        %v1982 = vunpack.c.l.b16 %v610
        %v1983 = vunpack.c.h.b16 %v610
        %v1984 = vunpack.c.l.b16 %v611
        %v1985 = vunpack.c.h.b16 %v611
        %v1986 = vunpack.c.l.b16 %v612
        %v1987 = vunpack.c.h.b16 %v612
        %v1988 = vunpack.c.l.b16 %v613
        %v1989 = vunpack.c.h.b16 %v613
        %v1990 = vunpack.c.l.b16 %v614
        %v1991 = vunpack.c.h.b16 %v614
        %v1992 = vunpack.c.l.b16 %v615
        %v1993 = vunpack.c.h.b16 %v615
        %v1994 = vunpack.c.l.b16 %v616
        %v1995 = vunpack.c.h.b16 %v616
        %v1996 = vunpack.c.l.b16 %v617
        %v1997 = vunpack.c.h.b16 %v617
        %v1998 = vunpack.c.l.b16 %v618
        %v1999 = vunpack.c.h.b16 %v618
        %v2000 = vunpack.c.l.b16 %v619
        %v2001 = vunpack.c.h.b16 %v619
        %v2002 = vunpack.c.l.b16 %v620
        %v2003 = vunpack.c.h.b16 %v620
        %v2004 = vunpack.c.l.b16 %v621
        %v2005 = vunpack.c.h.b16 %v621
        %v2006 = vunpack.c.l.b16 %v622
        %v2007 = vunpack.c.h.b16 %v622
        %v2008 = vunpack.c.l.b16 %v623
        %v2009 = vunpack.c.h.b16 %v623
        %v2010 = vunpack.c.l.b16 %v624
        %v2011 = vunpack.c.h.b16 %v624
        %v2012 = vpack.c.b16 %v1982, %v1980
        %v2013 = vpack.c.b16 %v1983, %v1981
        %v2014 = vpack.c.b16 %v1986, %v1984
        %v2015 = vpack.c.b16 %v1987, %v1985
        %v2016 = vpack.c.b16 %v1990, %v1988
        %v2017 = vpack.c.b16 %v1991, %v1989
        %v2018 = vpack.c.b16 %v1994, %v1992
        %v2019 = vpack.c.b16 %v1995, %v1993
        %v2020 = vpack.c.b16 %v1998, %v1996
        %v2021 = vpack.c.b16 %v1999, %v1997
        %v2022 = vpack.c.b16 %v2002, %v2000
        %v2023 = vpack.c.b16 %v2003, %v2001
        %v2024 = vpack.c.b16 %v2006, %v2004
        %v2025 = vpack.c.b16 %v2007, %v2005
        %v2026 = vpack.c.b16 %v2010, %v2008
        %v2027 = vpack.c.b16 %v2011, %v2009
        %2044 = vmatpush.bf16.msra.mxu0 %v2026
        %2045 = vmatpush.bf16.msra.mxu0 %v2024
        %2046 = vmatpush.bf16.msra.mxu0 %v2022
        %2047 = vmatpush.bf16.msra.mxu0 %v2020
        %2048 = vmatpush.bf16.msra.mxu0 %v2018
        %2049 = vmatpush.bf16.msra.mxu0 %v2016
        %2050 = vmatpush.bf16.msra.mxu0 %v2014
        %2051 = vmatpush.bf16.msra.mxu0 %v2012
        %2052 = vmatmul.bf16.gmra.mxu0 %v1958
        %v2053 = vpop.f32.mrf.mxu0
        %v2054 = vadd.f32 %v1960, %v2053
        %v2055 = vpop.f32.mrf.mxu0
        %v2056 = vadd.f32 %v1960, %v2055
        %2057 = vdwg.mxu0
        %2058 = vmatpush.bf16.msra.mxu0 %v2027
        %2059 = vmatpush.bf16.msra.mxu0 %v2025
        %2060 = vmatpush.bf16.msra.mxu0 %v2023
        %2061 = vmatpush.bf16.msra.mxu0 %v2021
        %2062 = vmatpush.bf16.msra.mxu0 %v2019
        %2063 = vmatpush.bf16.msra.mxu0 %v2017
        %2064 = vmatpush.bf16.msra.mxu0 %v2015
        %2065 = vmatpush.bf16.msra.mxu0 %v2013
        %2066 = vmatmul.bf16.gmra.mxu0 %v1958
        %v2067 = vpop.f32.mrf.mxu0
        %v2068 = vadd.f32 %v1961, %v2067
        %v2069 = vpop.f32.mrf.mxu0
        %v2070 = vadd.f32 %v1961, %v2069
        %2071 = vdwg.mxu0
        %v2072 = vmax.f32 %v2054, 0.0
        %v2073 = vmax.f32 %v2068, 0.0
        %v2074 = vmax.f32 %v2056, 0.0
        %v2075 = vmax.f32 %v2070, 0.0
        %v2076 = vpack.c.bf16 %v2074, %v2072
        %v2077 = vpack.c.bf16 %v2075, %v2073
        %v2078 = vperm.slane %v657, 4
        %v2111 = vunpack.c.l.b16 %v625
        %v2112 = vunpack.c.l.b16 %v626
        %v2113 = vunpack.c.l.b16 %v627
        %v2114 = vunpack.c.l.b16 %v628
        %v2115 = vunpack.c.l.b16 %v629
        %v2116 = vunpack.c.l.b16 %v630
        %v2117 = vunpack.c.l.b16 %v631
        %v2118 = vunpack.c.l.b16 %v632
        %v2119 = vunpack.c.l.b16 %v633
        %v2120 = vunpack.c.l.b16 %v634
        %v2121 = vunpack.c.l.b16 %v635
        %v2122 = vunpack.c.l.b16 %v636
        %v2123 = vunpack.c.l.b16 %v637
        %v2124 = vunpack.c.l.b16 %v638
        %v2125 = vunpack.c.l.b16 %v639
        %v2126 = vunpack.c.l.b16 %v640
        %v2127 = vunpack.c.l.b16 %v641
        %v2128 = vunpack.c.l.b16 %v642
        %v2129 = vunpack.c.l.b16 %v643
        %v2130 = vunpack.c.l.b16 %v644
        %v2131 = vunpack.c.l.b16 %v645
        %v2132 = vunpack.c.l.b16 %v646
        %v2133 = vunpack.c.l.b16 %v647
        %v2134 = vunpack.c.l.b16 %v648
        %v2135 = vunpack.c.l.b16 %v649
        %v2136 = vunpack.c.l.b16 %v650
        %v2137 = vunpack.c.l.b16 %v651
        %v2138 = vunpack.c.l.b16 %v652
        %v2139 = vunpack.c.l.b16 %v653
        %v2140 = vunpack.c.l.b16 %v654
        %v2141 = vunpack.c.l.b16 %v655
        %v2142 = vunpack.c.l.b16 %v656
        %v2143 = vpack.c.b16 %v2112, %v2111
        %v2144 = vpack.c.b16 %v2114, %v2113
        %v2145 = vpack.c.b16 %v2116, %v2115
        %v2146 = vpack.c.b16 %v2118, %v2117
        %v2147 = vpack.c.b16 %v2120, %v2119
        %v2148 = vpack.c.b16 %v2122, %v2121
        %v2149 = vpack.c.b16 %v2124, %v2123
        %v2150 = vpack.c.b16 %v2126, %v2125
        %v2151 = vpack.c.b16 %v2128, %v2127
        %v2152 = vpack.c.b16 %v2130, %v2129
        %v2153 = vpack.c.b16 %v2132, %v2131
        %v2154 = vpack.c.b16 %v2134, %v2133
        %v2155 = vpack.c.b16 %v2136, %v2135
        %v2156 = vpack.c.b16 %v2138, %v2137
        %v2157 = vpack.c.b16 %v2140, %v2139
        %v2158 = vpack.c.b16 %v2142, %v2141
        %2175 = vmatpush.bf16.msra.mxu0 %v2150
        %2176 = vmatpush.bf16.msra.mxu0 %v2149
        %2177 = vmatpush.bf16.msra.mxu0 %v2148
        %2178 = vmatpush.bf16.msra.mxu0 %v2147
        %2179 = vmatpush.bf16.msra.mxu0 %v2146
        %2180 = vmatpush.bf16.msra.mxu0 %v2145
        %2181 = vmatpush.bf16.msra.mxu0 %v2144
        %2182 = vmatpush.bf16.msra.mxu0 %v2143
        %2183 = vmatmul.bf16.gmra.mxu0 %v2076
        %v2184 = vpop.f32.mrf.mxu0
        %v2185 = vadd.f32 %v2078, %v2184
        %v2186 = vpop.f32.mrf.mxu0
        %v2187 = vadd.f32 %v2078, %v2186
        %2188 = vdwg.mxu0
        %2189 = vmatpush.bf16.msra.mxu0 %v2158
        %2190 = vmatpush.bf16.msra.mxu0 %v2157
        %2191 = vmatpush.bf16.msra.mxu0 %v2156
        %2192 = vmatpush.bf16.msra.mxu0 %v2155
        %2193 = vmatpush.bf16.msra.mxu0 %v2154
        %2194 = vmatpush.bf16.msra.mxu0 %v2153
        %2195 = vmatpush.bf16.msra.mxu0 %v2152
        %2196 = vmatpush.bf16.msra.mxu0 %v2151
        %2197 = vmatmul.bf16.gmra.mxu0 %v2077
        %v2198 = vpop.f32.mrf.mxu0
        %v2199 = vadd.f32 %v2185, %v2198
        %v2200 = vpop.f32.mrf.mxu0
        %v2201 = vadd.f32 %v2187, %v2200
        %2202 = vdwg.mxu0
        %v2203 = vadd.f32 %v672, %v2199
        %v2204 = vadd.f32 %v673, %v2201
        %2205 = vadd.xlane.f32.xlu0 %v2203
        %v2206 = vpop.xlane.xlu0 %2205
        %2207 = vadd.xlane.f32.xlu0 %v2204
        %v2208 = vpop.xlane.xlu0 %2207
        %v2209 = vmul.f32 %v2206, %v1915
        %v2210 = vmul.f32 %v2208, %v1915
        %v2211 = vsub.f32 %v2203, %v2209
        %v2212 = vsub.f32 %v2204, %v2210
        %v2213 = vmul.f32 %v2211, %v2211
        %v2214 = vmul.f32 %v2212, %v2212
        %2215 = vadd.xlane.f32.xlu0 %v2213
        %v2216 = vpop.xlane.xlu0 %2215
        %2217 = vadd.xlane.f32.xlu0 %v2214
        %v2218 = vpop.xlane.xlu0 %2217
        %v2219 = vmul.f32 %v2216, %v1915
        %v2220 = vmul.f32 %v2218, %v1915
        %v2221 = vadd.f32 %v2219, 1e-05
        %v2222 = vadd.f32 %v2220, 1e-05
        %v2223 = vrsqrt.pop %v2221
        %v2224 = vmul.f32 %v2223, %v2221
        %v2225 = vmul.f32 %v2224, %v2223
        %v2226 = vmul.f32 0.5, %v2225
        %v2227 = vsub.f32 1.5, %v2226
        %v2228 = vmul.f32 %v2223, %v2227
        %vm2229 = vweird.f32 %v2221
        %vm2230 = vweird.f32 %v2223
        %vm2231 = vmor %vm2229, %vm2230
        %v2232 = vsel %vm2231, %v2223, %v2228
        %v2233 = vrsqrt.pop %v2222
        %v2234 = vmul.f32 %v2233, %v2222
        %v2235 = vmul.f32 %v2234, %v2233
        %v2236 = vmul.f32 0.5, %v2235
        %v2237 = vsub.f32 1.5, %v2236
        %v2238 = vmul.f32 %v2233, %v2237
        %vm2239 = vweird.f32 %v2222
        %vm2240 = vweird.f32 %v2233
        %vm2241 = vmor %vm2239, %vm2240
        %v2242 = vsel %vm2241, %v2233, %v2238
        %v2243 = vmul.f32 %v2211, %v2232
        %v2244 = vmul.f32 %v2212, %v2242
        %v2245 = vperm.slane %v657, 7
        %v2246 = vmul.f32 %v2243, %v2245
        %v2247 = vmul.f32 %v2244, %v2245
        %v2248 = vperm.slane %v658, 0
        %v2249 = vadd.f32 %v2246, %v2248
        %v2250 = vadd.f32 %v2247, %v2248
        // Predicated region
        $region61: #{sgasga_forward.1} parent=59 // pred_check
          %p2251 = pneg %p664
        $region62: #{sgasga_forward.1} parent=59 // pred_check_branch
          %2253 = sbr.rel (%p2251) target = $region64
        $region63: #{sgasga_forward.1} parent=59 // pred_region
          %2254 = vst [vmem:[#allocation2] sm:$0xff] %v2249
          %2255 = vst [vmem:[#allocation2 + $0x8] sm:$0xff] %v2250
          %2256 = vst [vmem:[#allocation3] sm:$0xff] %v1956
          %2257 = vst [vmem:[#allocation3 + $0x8] sm:$0xff] %v1957
        $region64: #{sgasga_forward.1} parent=59 // pred_fallthru
          _
        %p2258 = scmp.eq.s32.totalorder %s25, 1
        // Predicated region
        $region65: #{sgasga_forward.1} parent=59 // pred_check
          %p2259 = pneg %p2258
        $region66: #{sgasga_forward.1} parent=59 // pred_check_branch
          %2261 = sbr.rel (%p2259) target = $region68
        $region67: #{sgasga_forward.1} parent=59 // pred_region
          %s2262 = scalar_lea.vmem [#allocation2], 16
          %2263 = vst [vmem:[%s2262] sm:$0xff] %v2249
          %2264 = vst [vmem:[%s2262 + $0x8] sm:$0xff] %v2250
          %s2265 = scalar_lea.vmem [#allocation3], 16
          %2266 = vst [vmem:[%s2265] sm:$0xff] %v1956
          %2267 = vst [vmem:[%s2265 + $0x8] sm:$0xff] %v1957
        $region68: #{sgasga_forward.1} parent=59 // pred_fallthru
          _
        %2268 = vst [vmem:[%s559] sm:$0xff] %v2249
        %2269 = vst [vmem:[%s559 + $0x8] sm:$0xff] %v2250
      $region60: #{sgasga_forward.1} parent=55 // pred_fallthru
        _
      %p2270 = scmp.eq.s32.totalorder %s24, 1
      // Predicated region
      $region69: #{sgasga_forward.1} parent=55 // pred_check
        %p2271 = pneg %p2270
      $region70: #{sgasga_forward.1} parent=55 // pred_check_branch
        %2273 = sbr.rel (%p2271) target = $region72
      $region71: #{sgasga_forward.1} parent=55 // pred_region
        %s2274 = smul.u32 %s25, 16
        %s2275 = scalar_lea.vmem [#allocation2], %s2274
        %v2276 = vld [vmem:[%s2275] sm:$0xff]
        %v2277 = vld [vmem:[%s2275 + $0x8] sm:$0xff]
        %s2278 = ssub.s32 1, %s25
        %s2279 = smul.u32 %s2278, 16
        %s2280 = scalar_lea.vmem [#allocation3], %s2279
        %v2281 = vld [vmem:[%s2280] sm:$0xff]
        %v2282 = vld [vmem:[%s2280 + $0x8] sm:$0xff]
        %v2283 = vpack.c.bf16 %v2277, %v2276
        %v2284 = vperm.slane %v657, 0
        %v2301 = vunpack.c.l.b16 %v561
        %v2302 = vunpack.c.l.b16 %v562
        %v2303 = vunpack.c.l.b16 %v563
        %v2304 = vunpack.c.l.b16 %v564
        %v2305 = vunpack.c.l.b16 %v565
        %v2306 = vunpack.c.l.b16 %v566
        %v2307 = vunpack.c.l.b16 %v567
        %v2308 = vunpack.c.l.b16 %v568
        %v2309 = vunpack.c.l.b16 %v569
        %v2310 = vunpack.c.l.b16 %v570
        %v2311 = vunpack.c.l.b16 %v571
        %v2312 = vunpack.c.l.b16 %v572
        %v2313 = vunpack.c.l.b16 %v573
        %v2314 = vunpack.c.l.b16 %v574
        %v2315 = vunpack.c.l.b16 %v575
        %v2316 = vunpack.c.l.b16 %v576
        %v2317 = vpack.c.b16 %v2302, %v2301
        %v2318 = vpack.c.b16 %v2304, %v2303
        %v2319 = vpack.c.b16 %v2306, %v2305
        %v2320 = vpack.c.b16 %v2308, %v2307
        %v2321 = vpack.c.b16 %v2310, %v2309
        %v2322 = vpack.c.b16 %v2312, %v2311
        %v2323 = vpack.c.b16 %v2314, %v2313
        %v2324 = vpack.c.b16 %v2316, %v2315
        %2333 = vmatpush.bf16.msra.mxu0 %v2324
        %2334 = vmatpush.bf16.msra.mxu0 %v2323
        %2335 = vmatpush.bf16.msra.mxu0 %v2322
        %2336 = vmatpush.bf16.msra.mxu0 %v2321
        %2337 = vmatpush.bf16.msra.mxu0 %v2320
        %2338 = vmatpush.bf16.msra.mxu0 %v2319
        %2339 = vmatpush.bf16.msra.mxu0 %v2318
        %2340 = vmatpush.bf16.msra.mxu0 %v2317
        %2341 = vmatmul.bf16.gmra.mxu0 %v2283
        %v2342 = vpop.f32.mrf.mxu0
        %v2343 = vadd.f32 %v2284, %v2342
        %v2344 = vpop.f32.mrf.mxu0
        %v2345 = vadd.f32 %v2284, %v2344
        %2346 = vdwg.mxu0
        %v2347 = vpack.c.bf16 %v2282, %v2281
        %v2364 = vunpack.c.l.b16 %v577
        %v2365 = vunpack.c.h.b16 %v577
        %v2366 = vunpack.c.l.b16 %v578
        %v2367 = vunpack.c.h.b16 %v578
        %v2368 = vunpack.c.l.b16 %v579
        %v2369 = vunpack.c.h.b16 %v579
        %v2370 = vunpack.c.l.b16 %v580
        %v2371 = vunpack.c.h.b16 %v580
        %v2372 = vunpack.c.l.b16 %v581
        %v2373 = vunpack.c.h.b16 %v581
        %v2374 = vunpack.c.l.b16 %v582
        %v2375 = vunpack.c.h.b16 %v582
        %v2376 = vunpack.c.l.b16 %v583
        %v2377 = vunpack.c.h.b16 %v583
        %v2378 = vunpack.c.l.b16 %v584
        %v2379 = vunpack.c.h.b16 %v584
        %v2380 = vunpack.c.l.b16 %v585
        %v2381 = vunpack.c.h.b16 %v585
        %v2382 = vunpack.c.l.b16 %v586
        %v2383 = vunpack.c.h.b16 %v586
        %v2384 = vunpack.c.l.b16 %v587
        %v2385 = vunpack.c.h.b16 %v587
        %v2386 = vunpack.c.l.b16 %v588
        %v2387 = vunpack.c.h.b16 %v588
        %v2388 = vunpack.c.l.b16 %v589
        %v2389 = vunpack.c.h.b16 %v589
        %v2390 = vunpack.c.l.b16 %v590
        %v2391 = vunpack.c.h.b16 %v590
        %v2392 = vunpack.c.l.b16 %v591
        %v2393 = vunpack.c.h.b16 %v591
        %v2394 = vunpack.c.l.b16 %v592
        %v2395 = vunpack.c.h.b16 %v592
        %v2396 = vpack.c.b16 %v2366, %v2364
        %v2397 = vpack.c.b16 %v2367, %v2365
        %v2398 = vpack.c.b16 %v2370, %v2368
        %v2399 = vpack.c.b16 %v2371, %v2369
        %v2400 = vpack.c.b16 %v2374, %v2372
        %v2401 = vpack.c.b16 %v2375, %v2373
        %v2402 = vpack.c.b16 %v2378, %v2376
        %v2403 = vpack.c.b16 %v2379, %v2377
        %v2404 = vpack.c.b16 %v2382, %v2380
        %v2405 = vpack.c.b16 %v2383, %v2381
        %v2406 = vpack.c.b16 %v2386, %v2384
        %v2407 = vpack.c.b16 %v2387, %v2385
        %v2408 = vpack.c.b16 %v2390, %v2388
        %v2409 = vpack.c.b16 %v2391, %v2389
        %v2410 = vpack.c.b16 %v2394, %v2392
        %v2411 = vpack.c.b16 %v2395, %v2393
        %2428 = vmatpush.bf16.msra.mxu0 %v2410
        %2429 = vmatpush.bf16.msra.mxu0 %v2408
        %2430 = vmatpush.bf16.msra.mxu0 %v2406
        %2431 = vmatpush.bf16.msra.mxu0 %v2404
        %2432 = vmatpush.bf16.msra.mxu0 %v2402
        %2433 = vmatpush.bf16.msra.mxu0 %v2400
        %2434 = vmatpush.bf16.msra.mxu0 %v2398
        %2435 = vmatpush.bf16.msra.mxu0 %v2396
        %2436 = vmatmul.bf16.gmra.mxu0 %v2347
        %v2437 = vpop.f32.mrf.mxu0
        %v2438 = vadd.f32 0.0, %v2437
        %v2439 = vpop.f32.mrf.mxu0
        %v2440 = vadd.f32 0.0, %v2439
        %2441 = vdwg.mxu0
        %2442 = vmatpush.bf16.msra.mxu0 %v2411
        %2443 = vmatpush.bf16.msra.mxu0 %v2409
        %2444 = vmatpush.bf16.msra.mxu0 %v2407
        %2445 = vmatpush.bf16.msra.mxu0 %v2405
        %2446 = vmatpush.bf16.msra.mxu0 %v2403
        %2447 = vmatpush.bf16.msra.mxu0 %v2401
        %2448 = vmatpush.bf16.msra.mxu0 %v2399
        %2449 = vmatpush.bf16.msra.mxu0 %v2397
        %2450 = vmatmul.bf16.gmra.mxu0 %v2347
        %v2451 = vpop.f32.mrf.mxu0
        %v2452 = vadd.f32 0.0, %v2451
        %v2453 = vpop.f32.mrf.mxu0
        %v2454 = vadd.f32 0.0, %v2453
        %2455 = vdwg.mxu0
        %v2456 = vperm.slane %v657, 1
        %v2457 = vadd.f32 %v2438, %v2456
        %v2458 = vadd.f32 %v2440, %v2456
        %v2459 = vperm.slane %v657, 2
        %v2460 = vadd.f32 %v2452, %v2459
        %v2461 = vadd.f32 %v2454, %v2459
        %v2462 = vpack.c.bf16 %v2343, %v2343
        %v2463 = vpack.c.bf16 %v2345, %v2345
        %v2464 = vpack.c.bf16 %v2457, %v2457
        %v2465 = vpack.c.bf16 %v2458, %v2458
        %v2466 = vpack.c.bf16 %v2460, %v2460
        %v2467 = vpack.c.bf16 %v2461, %v2461
        %vm2468 = vcmask 130048
        %v2470 = vsel %vm2468, %v2462, 0
        %v2473 = vsel %vm2468, %v2464, 0
        %2475 = vmatpush.bf16.xpose.msra.mxu0 0
        %2476 = vmatpush.bf16.xpose.msra.mxu0 0
        %2477 = vmatpush.bf16.xpose.msra.mxu0 0
        %2478 = vmatpush.bf16.xpose.msra.mxu0 0
        %2479 = vmatpush.bf16.xpose.msra.mxu0 0
        %2480 = vmatpush.bf16.xpose.msra.mxu0 0
        %2481 = vmatpush.bf16.xpose.msra.mxu0 0
        %2482 = vmatpush.bf16.xpose.msra.mxu0 %v2473
        %2483 = vmatmul.bf16.gmra.mxu0 %v2470
        %v2484 = vpop.f32.mrf.mxu0
        %v2485 = vadd.f32 0.0, %v2484
        %v2486 = vpop.f32.mrf.mxu0
        %2487 = vdwg.mxu0
        %v2489 = vsel %vm2468, %v2463, 0
        %v2492 = vsel %vm2468, %v2465, 0
        %2494 = vmatpush.bf16.xpose.msra.mxu0 0
        %2495 = vmatpush.bf16.xpose.msra.mxu0 0
        %2496 = vmatpush.bf16.xpose.msra.mxu0 0
        %2497 = vmatpush.bf16.xpose.msra.mxu0 0
        %2498 = vmatpush.bf16.xpose.msra.mxu0 0
        %2499 = vmatpush.bf16.xpose.msra.mxu0 0
        %2500 = vmatpush.bf16.xpose.msra.mxu0 0
        %2501 = vmatpush.bf16.xpose.msra.mxu0 %v2492
        %2502 = vmatmul.bf16.gmra.mxu0 %v2489
        %v2503 = vpop.f32.mrf.mxu0
        %v2504 = vadd.f32 0.0, %v2503
        %v2505 = vpop.f32.mrf.mxu0
        %2506 = vdwg.mxu0
        %vm2507 = vcmask 64512
        %v2508 = vsel %vm2507, %v2485, -inf
        %2509 = vmax.xlane.f32.xlu0 %v2508
        %v2510 = vpop.xlane.xlu0 %2509
        %v2511 = vsel %vm2507, %v2504, -inf
        %2512 = vmax.xlane.f32.xlu0 %v2511
        %v2513 = vpop.xlane.xlu0 %2512
        %v2514 = vsub.f32 %v2485, %v2510
        %v2515 = vsub.f32 %v2504, %v2513
        %v2516 = vmul.f32 %v2514, 1.442695
        %v2517 = vpow.pop %v2516
        %v2518 = vmul.f32 %v2515, 1.442695
        %v2519 = vpow.pop %v2518
        %v2520 = vsel %vm2507, %v2517, 0.0
        %2521 = vadd.xlane.f32.xlu0 %v2520
        %v2522 = vpop.xlane.xlu0 %2521
        %v2523 = vsel %vm2507, %v2519, 0.0
        %2524 = vadd.xlane.f32.xlu0 %v2523
        %v2525 = vpop.xlane.xlu0 %2524
        %v2526 = vrcp.pop %v2522
        %v2527 = vrcp.pop %v2525
        %v2528 = vmul.f32 %v2517, %v2526
        %v2529 = vmul.f32 %v2519, %v2527
        %v2530 = vpack.c.bf16 %v2528, %v2528
        %v2531 = vpack.c.bf16 %v2529, %v2529
        %v2533 = vsel %vm2507, %v2530, 0
        %vm2535 = vcmask 1043456
        %v2537 = vsel %vm2535, %v2466, 0
        %2539 = vmatpush.bf16.msra.mxu0 0
        %2540 = vmatpush.bf16.msra.mxu0 0
        %2541 = vmatpush.bf16.msra.mxu0 0
        %2542 = vmatpush.bf16.msra.mxu0 0
        %2543 = vmatpush.bf16.msra.mxu0 0
        %2544 = vmatpush.bf16.msra.mxu0 0
        %2545 = vmatpush.bf16.msra.mxu0 0
        %2546 = vmatpush.bf16.msra.mxu0 %v2537
        %2547 = vmatmul.bf16.gmra.mxu0 %v2533
        %v2548 = vpop.f32.mrf.mxu0
        %v2549 = vadd.f32 0.0, %v2548
        %v2550 = vpop.f32.mrf.mxu0
        %2551 = vdwg.mxu0
        %v2553 = vsel %vm2507, %v2531, 0
        %v2556 = vsel %vm2535, %v2467, 0
        %2558 = vmatpush.bf16.msra.mxu0 0
        %2559 = vmatpush.bf16.msra.mxu0 0
        %2560 = vmatpush.bf16.msra.mxu0 0
        %2561 = vmatpush.bf16.msra.mxu0 0
        %2562 = vmatpush.bf16.msra.mxu0 0
        %2563 = vmatpush.bf16.msra.mxu0 0
        %2564 = vmatpush.bf16.msra.mxu0 0
        %2565 = vmatpush.bf16.msra.mxu0 %v2556
        %2566 = vmatmul.bf16.gmra.mxu0 %v2553
        %v2567 = vpop.f32.mrf.mxu0
        %v2568 = vadd.f32 0.0, %v2567
        %v2569 = vpop.f32.mrf.mxu0
        %2570 = vdwg.mxu0
        %v2572 = vunpack.c.l.b16 %v2462
        %v2573 = vpack.c.b16 %v2572, %v2572
        %2574 = vrot.lane.b32.xlu0 %v2573, 112
        %v2575 = vpop.permute.xlu0 %2574
        %v2577 = vunpack.c.l.b16 %v2464
        %v2578 = vpack.c.b16 %v2577, %v2577
        %2579 = vrot.lane.b32.xlu0 %v2578, 112
        %v2580 = vpop.permute.xlu0 %2579
        %v2582 = vsel %vm2468, %v2575, 0
        %v2585 = vsel %vm2468, %v2580, 0
        %2587 = vmatpush.bf16.xpose.msra.mxu0 0
        %2588 = vmatpush.bf16.xpose.msra.mxu0 0
        %2589 = vmatpush.bf16.xpose.msra.mxu0 0
        %2590 = vmatpush.bf16.xpose.msra.mxu0 0
        %2591 = vmatpush.bf16.xpose.msra.mxu0 0
        %2592 = vmatpush.bf16.xpose.msra.mxu0 0
        %2593 = vmatpush.bf16.xpose.msra.mxu0 0
        %2594 = vmatpush.bf16.xpose.msra.mxu0 %v2585
        %2595 = vmatmul.bf16.gmra.mxu0 %v2582
        %v2596 = vpop.f32.mrf.mxu0
        %v2597 = vadd.f32 0.0, %v2596
        %v2598 = vpop.f32.mrf.mxu0
        %2599 = vdwg.mxu0
        %v2601 = vunpack.c.l.b16 %v2463
        %v2602 = vpack.c.b16 %v2601, %v2601
        %2603 = vrot.lane.b32.xlu0 %v2602, 112
        %v2604 = vpop.permute.xlu0 %2603
        %v2606 = vunpack.c.l.b16 %v2465
        %v2607 = vpack.c.b16 %v2606, %v2606
        %2608 = vrot.lane.b32.xlu0 %v2607, 112
        %v2609 = vpop.permute.xlu0 %2608
        %v2611 = vsel %vm2468, %v2604, 0
        %v2614 = vsel %vm2468, %v2609, 0
        %2616 = vmatpush.bf16.xpose.msra.mxu0 0
        %2617 = vmatpush.bf16.xpose.msra.mxu0 0
        %2618 = vmatpush.bf16.xpose.msra.mxu0 0
        %2619 = vmatpush.bf16.xpose.msra.mxu0 0
        %2620 = vmatpush.bf16.xpose.msra.mxu0 0
        %2621 = vmatpush.bf16.xpose.msra.mxu0 0
        %2622 = vmatpush.bf16.xpose.msra.mxu0 0
        %2623 = vmatpush.bf16.xpose.msra.mxu0 %v2614
        %2624 = vmatmul.bf16.gmra.mxu0 %v2611
        %v2625 = vpop.f32.mrf.mxu0
        %v2626 = vadd.f32 0.0, %v2625
        %v2627 = vpop.f32.mrf.mxu0
        %2628 = vdwg.mxu0
        %v2629 = vsel %vm2507, %v2597, -inf
        %2630 = vmax.xlane.f32.xlu0 %v2629
        %v2631 = vpop.xlane.xlu0 %2630
        %v2632 = vsel %vm2507, %v2626, -inf
        %2633 = vmax.xlane.f32.xlu0 %v2632
        %v2634 = vpop.xlane.xlu0 %2633
        %v2635 = vsub.f32 %v2597, %v2631
        %v2636 = vsub.f32 %v2626, %v2634
        %v2637 = vmul.f32 %v2635, 1.442695
        %v2638 = vpow.pop %v2637
        %v2639 = vmul.f32 %v2636, 1.442695
        %v2640 = vpow.pop %v2639
        %v2641 = vsel %vm2507, %v2638, 0.0
        %2642 = vadd.xlane.f32.xlu0 %v2641
        %v2643 = vpop.xlane.xlu0 %2642
        %v2644 = vsel %vm2507, %v2640, 0.0
        %2645 = vadd.xlane.f32.xlu0 %v2644
        %v2646 = vpop.xlane.xlu0 %2645
        %v2647 = vrcp.pop %v2643
        %v2648 = vrcp.pop %v2646
        %v2649 = vmul.f32 %v2638, %v2647
        %v2650 = vmul.f32 %v2640, %v2648
        %v2651 = vpack.c.bf16 %v2649, %v2649
        %v2652 = vpack.c.bf16 %v2650, %v2650
        %v2654 = vunpack.c.l.b16 %v2466
        %v2655 = vpack.c.b16 %v2654, %v2654
        %2656 = vrot.lane.b32.xlu0 %v2655, 112
        %v2657 = vpop.permute.xlu0 %2656
        %v2659 = vsel %vm2507, %v2651, 0
        %v2662 = vsel %vm2535, %v2657, 0
        %2664 = vmatpush.bf16.msra.mxu0 0
        %2665 = vmatpush.bf16.msra.mxu0 0
        %2666 = vmatpush.bf16.msra.mxu0 0
        %2667 = vmatpush.bf16.msra.mxu0 0
        %2668 = vmatpush.bf16.msra.mxu0 0
        %2669 = vmatpush.bf16.msra.mxu0 0
        %2670 = vmatpush.bf16.msra.mxu0 0
        %2671 = vmatpush.bf16.msra.mxu0 %v2662
        %2672 = vmatmul.bf16.gmra.mxu0 %v2659
        %v2673 = vpop.f32.mrf.mxu0
        %v2674 = vadd.f32 0.0, %v2673
        %v2675 = vpop.f32.mrf.mxu0
        %2676 = vdwg.mxu0
        %v2678 = vunpack.c.l.b16 %v2467
        %v2679 = vpack.c.b16 %v2678, %v2678
        %2680 = vrot.lane.b32.xlu0 %v2679, 112
        %v2681 = vpop.permute.xlu0 %2680
        %v2683 = vsel %vm2507, %v2652, 0
        %v2686 = vsel %vm2535, %v2681, 0
        %2688 = vmatpush.bf16.msra.mxu0 0
        %2689 = vmatpush.bf16.msra.mxu0 0
        %2690 = vmatpush.bf16.msra.mxu0 0
        %2691 = vmatpush.bf16.msra.mxu0 0
        %2692 = vmatpush.bf16.msra.mxu0 0
        %2693 = vmatpush.bf16.msra.mxu0 0
        %2694 = vmatpush.bf16.msra.mxu0 0
        %2695 = vmatpush.bf16.msra.mxu0 %v2686
        %2696 = vmatmul.bf16.gmra.mxu0 %v2683
        %v2697 = vpop.f32.mrf.mxu0
        %v2698 = vadd.f32 0.0, %v2697
        %v2699 = vpop.f32.mrf.mxu0
        %2700 = vdwg.mxu0
        %2701 = vrot.lane.b32.xlu0 %v2573, 96
        %v2702 = vpop.permute.xlu0 %2701
        %2703 = vrot.lane.b32.xlu0 %v2578, 96
        %v2704 = vpop.permute.xlu0 %2703
        %v2706 = vsel %vm2468, %v2702, 0
        %v2709 = vsel %vm2468, %v2704, 0
        %2711 = vmatpush.bf16.xpose.msra.mxu0 0
        %2712 = vmatpush.bf16.xpose.msra.mxu0 0
        %2713 = vmatpush.bf16.xpose.msra.mxu0 0
        %2714 = vmatpush.bf16.xpose.msra.mxu0 0
        %2715 = vmatpush.bf16.xpose.msra.mxu0 0
        %2716 = vmatpush.bf16.xpose.msra.mxu0 0
        %2717 = vmatpush.bf16.xpose.msra.mxu0 0
        %2718 = vmatpush.bf16.xpose.msra.mxu0 %v2709
        %2719 = vmatmul.bf16.gmra.mxu0 %v2706
        %v2720 = vpop.f32.mrf.mxu0
        %v2721 = vadd.f32 0.0, %v2720
        %v2722 = vpop.f32.mrf.mxu0
        %2723 = vdwg.mxu0
        %2724 = vrot.lane.b32.xlu0 %v2602, 96
        %v2725 = vpop.permute.xlu0 %2724
        %2726 = vrot.lane.b32.xlu0 %v2607, 96
        %v2727 = vpop.permute.xlu0 %2726
        %v2729 = vsel %vm2468, %v2725, 0
        %v2732 = vsel %vm2468, %v2727, 0
        %2734 = vmatpush.bf16.xpose.msra.mxu0 0
        %2735 = vmatpush.bf16.xpose.msra.mxu0 0
        %2736 = vmatpush.bf16.xpose.msra.mxu0 0
        %2737 = vmatpush.bf16.xpose.msra.mxu0 0
        %2738 = vmatpush.bf16.xpose.msra.mxu0 0
        %2739 = vmatpush.bf16.xpose.msra.mxu0 0
        %2740 = vmatpush.bf16.xpose.msra.mxu0 0
        %2741 = vmatpush.bf16.xpose.msra.mxu0 %v2732
        %2742 = vmatmul.bf16.gmra.mxu0 %v2729
        %v2743 = vpop.f32.mrf.mxu0
        %v2744 = vadd.f32 0.0, %v2743
        %v2745 = vpop.f32.mrf.mxu0
        %2746 = vdwg.mxu0
        %v2747 = vsel %vm2507, %v2721, -inf
        %2748 = vmax.xlane.f32.xlu0 %v2747
        %v2749 = vpop.xlane.xlu0 %2748
        %v2750 = vsel %vm2507, %v2744, -inf
        %2751 = vmax.xlane.f32.xlu0 %v2750
        %v2752 = vpop.xlane.xlu0 %2751
        %v2753 = vsub.f32 %v2721, %v2749
        %v2754 = vsub.f32 %v2744, %v2752
        %v2755 = vmul.f32 %v2753, 1.442695
        %v2756 = vpow.pop %v2755
        %v2757 = vmul.f32 %v2754, 1.442695
        %v2758 = vpow.pop %v2757
        %v2759 = vsel %vm2507, %v2756, 0.0
        %2760 = vadd.xlane.f32.xlu0 %v2759
        %v2761 = vpop.xlane.xlu0 %2760
        %v2762 = vsel %vm2507, %v2758, 0.0
        %2763 = vadd.xlane.f32.xlu0 %v2762
        %v2764 = vpop.xlane.xlu0 %2763
        %v2765 = vrcp.pop %v2761
        %v2766 = vrcp.pop %v2764
        %v2767 = vmul.f32 %v2756, %v2765
        %v2768 = vmul.f32 %v2758, %v2766
        %v2769 = vpack.c.bf16 %v2767, %v2767
        %v2770 = vpack.c.bf16 %v2768, %v2768
        %2771 = vrot.lane.b32.xlu0 %v2655, 96
        %v2772 = vpop.permute.xlu0 %2771
        %v2774 = vsel %vm2507, %v2769, 0
        %v2777 = vsel %vm2535, %v2772, 0
        %2779 = vmatpush.bf16.msra.mxu0 0
        %2780 = vmatpush.bf16.msra.mxu0 0
        %2781 = vmatpush.bf16.msra.mxu0 0
        %2782 = vmatpush.bf16.msra.mxu0 0
        %2783 = vmatpush.bf16.msra.mxu0 0
        %2784 = vmatpush.bf16.msra.mxu0 0
        %2785 = vmatpush.bf16.msra.mxu0 0
        %2786 = vmatpush.bf16.msra.mxu0 %v2777
        %2787 = vmatmul.bf16.gmra.mxu0 %v2774
        %v2788 = vpop.f32.mrf.mxu0
        %v2789 = vadd.f32 0.0, %v2788
        %v2790 = vpop.f32.mrf.mxu0
        %2791 = vdwg.mxu0
        %2792 = vrot.lane.b32.xlu0 %v2679, 96
        %v2793 = vpop.permute.xlu0 %2792
        %v2795 = vsel %vm2507, %v2770, 0
        %v2798 = vsel %vm2535, %v2793, 0
        %2800 = vmatpush.bf16.msra.mxu0 0
        %2801 = vmatpush.bf16.msra.mxu0 0
        %2802 = vmatpush.bf16.msra.mxu0 0
        %2803 = vmatpush.bf16.msra.mxu0 0
        %2804 = vmatpush.bf16.msra.mxu0 0
        %2805 = vmatpush.bf16.msra.mxu0 0
        %2806 = vmatpush.bf16.msra.mxu0 0
        %2807 = vmatpush.bf16.msra.mxu0 %v2798
        %2808 = vmatmul.bf16.gmra.mxu0 %v2795
        %v2809 = vpop.f32.mrf.mxu0
        %v2810 = vadd.f32 0.0, %v2809
        %v2811 = vpop.f32.mrf.mxu0
        %2812 = vdwg.mxu0
        %2813 = vrot.lane.b32.xlu0 %v2573, 80
        %v2814 = vpop.permute.xlu0 %2813
        %2815 = vrot.lane.b32.xlu0 %v2578, 80
        %v2816 = vpop.permute.xlu0 %2815
        %v2818 = vsel %vm2468, %v2814, 0
        %v2821 = vsel %vm2468, %v2816, 0
        %2823 = vmatpush.bf16.xpose.msra.mxu0 0
        %2824 = vmatpush.bf16.xpose.msra.mxu0 0
        %2825 = vmatpush.bf16.xpose.msra.mxu0 0
        %2826 = vmatpush.bf16.xpose.msra.mxu0 0
        %2827 = vmatpush.bf16.xpose.msra.mxu0 0
        %2828 = vmatpush.bf16.xpose.msra.mxu0 0
        %2829 = vmatpush.bf16.xpose.msra.mxu0 0
        %2830 = vmatpush.bf16.xpose.msra.mxu0 %v2821
        %2831 = vmatmul.bf16.gmra.mxu0 %v2818
        %v2832 = vpop.f32.mrf.mxu0
        %v2833 = vadd.f32 0.0, %v2832
        %v2834 = vpop.f32.mrf.mxu0
        %2835 = vdwg.mxu0
        %2836 = vrot.lane.b32.xlu0 %v2602, 80
        %v2837 = vpop.permute.xlu0 %2836
        %2838 = vrot.lane.b32.xlu0 %v2607, 80
        %v2839 = vpop.permute.xlu0 %2838
        %v2841 = vsel %vm2468, %v2837, 0
        %v2844 = vsel %vm2468, %v2839, 0
        %2846 = vmatpush.bf16.xpose.msra.mxu0 0
        %2847 = vmatpush.bf16.xpose.msra.mxu0 0
        %2848 = vmatpush.bf16.xpose.msra.mxu0 0
        %2849 = vmatpush.bf16.xpose.msra.mxu0 0
        %2850 = vmatpush.bf16.xpose.msra.mxu0 0
        %2851 = vmatpush.bf16.xpose.msra.mxu0 0
        %2852 = vmatpush.bf16.xpose.msra.mxu0 0
        %2853 = vmatpush.bf16.xpose.msra.mxu0 %v2844
        %2854 = vmatmul.bf16.gmra.mxu0 %v2841
        %v2855 = vpop.f32.mrf.mxu0
        %v2856 = vadd.f32 0.0, %v2855
        %v2857 = vpop.f32.mrf.mxu0
        %2858 = vdwg.mxu0
        %v2859 = vsel %vm2507, %v2833, -inf
        %2860 = vmax.xlane.f32.xlu0 %v2859
        %v2861 = vpop.xlane.xlu0 %2860
        %v2862 = vsel %vm2507, %v2856, -inf
        %2863 = vmax.xlane.f32.xlu0 %v2862
        %v2864 = vpop.xlane.xlu0 %2863
        %v2865 = vsub.f32 %v2833, %v2861
        %v2866 = vsub.f32 %v2856, %v2864
        %v2867 = vmul.f32 %v2865, 1.442695
        %v2868 = vpow.pop %v2867
        %v2869 = vmul.f32 %v2866, 1.442695
        %v2870 = vpow.pop %v2869
        %v2871 = vsel %vm2507, %v2868, 0.0
        %2872 = vadd.xlane.f32.xlu0 %v2871
        %v2873 = vpop.xlane.xlu0 %2872
        %v2874 = vsel %vm2507, %v2870, 0.0
        %2875 = vadd.xlane.f32.xlu0 %v2874
        %v2876 = vpop.xlane.xlu0 %2875
        %v2877 = vrcp.pop %v2873
        %v2878 = vrcp.pop %v2876
        %v2879 = vmul.f32 %v2868, %v2877
        %v2880 = vmul.f32 %v2870, %v2878
        %v2881 = vpack.c.bf16 %v2879, %v2879
        %v2882 = vpack.c.bf16 %v2880, %v2880
        %2883 = vrot.lane.b32.xlu0 %v2655, 80
        %v2884 = vpop.permute.xlu0 %2883
        %v2886 = vsel %vm2507, %v2881, 0
        %v2889 = vsel %vm2535, %v2884, 0
        %2891 = vmatpush.bf16.msra.mxu0 0
        %2892 = vmatpush.bf16.msra.mxu0 0
        %2893 = vmatpush.bf16.msra.mxu0 0
        %2894 = vmatpush.bf16.msra.mxu0 0
        %2895 = vmatpush.bf16.msra.mxu0 0
        %2896 = vmatpush.bf16.msra.mxu0 0
        %2897 = vmatpush.bf16.msra.mxu0 0
        %2898 = vmatpush.bf16.msra.mxu0 %v2889
        %2899 = vmatmul.bf16.gmra.mxu0 %v2886
        %v2900 = vpop.f32.mrf.mxu0
        %v2901 = vadd.f32 0.0, %v2900
        %v2902 = vpop.f32.mrf.mxu0
        %2903 = vdwg.mxu0
        %2904 = vrot.lane.b32.xlu0 %v2679, 80
        %v2905 = vpop.permute.xlu0 %2904
        %v2907 = vsel %vm2507, %v2882, 0
        %v2910 = vsel %vm2535, %v2905, 0
        %2912 = vmatpush.bf16.msra.mxu0 0
        %2913 = vmatpush.bf16.msra.mxu0 0
        %2914 = vmatpush.bf16.msra.mxu0 0
        %2915 = vmatpush.bf16.msra.mxu0 0
        %2916 = vmatpush.bf16.msra.mxu0 0
        %2917 = vmatpush.bf16.msra.mxu0 0
        %2918 = vmatpush.bf16.msra.mxu0 0
        %2919 = vmatpush.bf16.msra.mxu0 %v2910
        %2920 = vmatmul.bf16.gmra.mxu0 %v2907
        %v2921 = vpop.f32.mrf.mxu0
        %v2922 = vadd.f32 0.0, %v2921
        %v2923 = vpop.f32.mrf.mxu0
        %2924 = vdwg.mxu0
        %2925 = vrot.lane.b32.xlu0 %v2573, 64
        %v2926 = vpop.permute.xlu0 %2925
        %2927 = vrot.lane.b32.xlu0 %v2578, 64
        %v2928 = vpop.permute.xlu0 %2927
        %v2930 = vsel %vm2468, %v2926, 0
        %v2933 = vsel %vm2468, %v2928, 0
        %2935 = vmatpush.bf16.xpose.msra.mxu0 0
        %2936 = vmatpush.bf16.xpose.msra.mxu0 0
        %2937 = vmatpush.bf16.xpose.msra.mxu0 0
        %2938 = vmatpush.bf16.xpose.msra.mxu0 0
        %2939 = vmatpush.bf16.xpose.msra.mxu0 0
        %2940 = vmatpush.bf16.xpose.msra.mxu0 0
        %2941 = vmatpush.bf16.xpose.msra.mxu0 0
        %2942 = vmatpush.bf16.xpose.msra.mxu0 %v2933
        %2943 = vmatmul.bf16.gmra.mxu0 %v2930
        %v2944 = vpop.f32.mrf.mxu0
        %v2945 = vadd.f32 0.0, %v2944
        %v2946 = vpop.f32.mrf.mxu0
        %2947 = vdwg.mxu0
        %2948 = vrot.lane.b32.xlu0 %v2602, 64
        %v2949 = vpop.permute.xlu0 %2948
        %2950 = vrot.lane.b32.xlu0 %v2607, 64
        %v2951 = vpop.permute.xlu0 %2950
        %v2953 = vsel %vm2468, %v2949, 0
        %v2956 = vsel %vm2468, %v2951, 0
        %2958 = vmatpush.bf16.xpose.msra.mxu0 0
        %2959 = vmatpush.bf16.xpose.msra.mxu0 0
        %2960 = vmatpush.bf16.xpose.msra.mxu0 0
        %2961 = vmatpush.bf16.xpose.msra.mxu0 0
        %2962 = vmatpush.bf16.xpose.msra.mxu0 0
        %2963 = vmatpush.bf16.xpose.msra.mxu0 0
        %2964 = vmatpush.bf16.xpose.msra.mxu0 0
        %2965 = vmatpush.bf16.xpose.msra.mxu0 %v2956
        %2966 = vmatmul.bf16.gmra.mxu0 %v2953
        %v2967 = vpop.f32.mrf.mxu0
        %v2968 = vadd.f32 0.0, %v2967
        %v2969 = vpop.f32.mrf.mxu0
        %2970 = vdwg.mxu0
        %v2971 = vsel %vm2507, %v2945, -inf
        %2972 = vmax.xlane.f32.xlu0 %v2971
        %v2973 = vpop.xlane.xlu0 %2972
        %v2974 = vsel %vm2507, %v2968, -inf
        %2975 = vmax.xlane.f32.xlu0 %v2974
        %v2976 = vpop.xlane.xlu0 %2975
        %v2977 = vsub.f32 %v2945, %v2973
        %v2978 = vsub.f32 %v2968, %v2976
        %v2979 = vmul.f32 %v2977, 1.442695
        %v2980 = vpow.pop %v2979
        %v2981 = vmul.f32 %v2978, 1.442695
        %v2982 = vpow.pop %v2981
        %v2983 = vsel %vm2507, %v2980, 0.0
        %2984 = vadd.xlane.f32.xlu0 %v2983
        %v2985 = vpop.xlane.xlu0 %2984
        %v2986 = vsel %vm2507, %v2982, 0.0
        %2987 = vadd.xlane.f32.xlu0 %v2986
        %v2988 = vpop.xlane.xlu0 %2987
        %v2989 = vrcp.pop %v2985
        %v2990 = vrcp.pop %v2988
        %v2991 = vmul.f32 %v2980, %v2989
        %v2992 = vmul.f32 %v2982, %v2990
        %v2993 = vpack.c.bf16 %v2991, %v2991
        %v2994 = vpack.c.bf16 %v2992, %v2992
        %2995 = vrot.lane.b32.xlu0 %v2655, 64
        %v2996 = vpop.permute.xlu0 %2995
        %v2998 = vsel %vm2507, %v2993, 0
        %v3001 = vsel %vm2535, %v2996, 0
        %3003 = vmatpush.bf16.msra.mxu0 0
        %3004 = vmatpush.bf16.msra.mxu0 0
        %3005 = vmatpush.bf16.msra.mxu0 0
        %3006 = vmatpush.bf16.msra.mxu0 0
        %3007 = vmatpush.bf16.msra.mxu0 0
        %3008 = vmatpush.bf16.msra.mxu0 0
        %3009 = vmatpush.bf16.msra.mxu0 0
        %3010 = vmatpush.bf16.msra.mxu0 %v3001
        %3011 = vmatmul.bf16.gmra.mxu0 %v2998
        %v3012 = vpop.f32.mrf.mxu0
        %v3013 = vadd.f32 0.0, %v3012
        %v3014 = vpop.f32.mrf.mxu0
        %3015 = vdwg.mxu0
        %3016 = vrot.lane.b32.xlu0 %v2679, 64
        %v3017 = vpop.permute.xlu0 %3016
        %v3019 = vsel %vm2507, %v2994, 0
        %v3022 = vsel %vm2535, %v3017, 0
        %3024 = vmatpush.bf16.msra.mxu0 0
        %3025 = vmatpush.bf16.msra.mxu0 0
        %3026 = vmatpush.bf16.msra.mxu0 0
        %3027 = vmatpush.bf16.msra.mxu0 0
        %3028 = vmatpush.bf16.msra.mxu0 0
        %3029 = vmatpush.bf16.msra.mxu0 0
        %3030 = vmatpush.bf16.msra.mxu0 0
        %3031 = vmatpush.bf16.msra.mxu0 %v3022
        %3032 = vmatmul.bf16.gmra.mxu0 %v3019
        %v3033 = vpop.f32.mrf.mxu0
        %v3034 = vadd.f32 0.0, %v3033
        %v3035 = vpop.f32.mrf.mxu0
        %3036 = vdwg.mxu0
        %3037 = vrot.lane.b32.xlu0 %v2573, 48
        %v3038 = vpop.permute.xlu0 %3037
        %3039 = vrot.lane.b32.xlu0 %v2578, 48
        %v3040 = vpop.permute.xlu0 %3039
        %v3042 = vsel %vm2468, %v3038, 0
        %v3045 = vsel %vm2468, %v3040, 0
        %3047 = vmatpush.bf16.xpose.msra.mxu0 0
        %3048 = vmatpush.bf16.xpose.msra.mxu0 0
        %3049 = vmatpush.bf16.xpose.msra.mxu0 0
        %3050 = vmatpush.bf16.xpose.msra.mxu0 0
        %3051 = vmatpush.bf16.xpose.msra.mxu0 0
        %3052 = vmatpush.bf16.xpose.msra.mxu0 0
        %3053 = vmatpush.bf16.xpose.msra.mxu0 0
        %3054 = vmatpush.bf16.xpose.msra.mxu0 %v3045
        %3055 = vmatmul.bf16.gmra.mxu0 %v3042
        %v3056 = vpop.f32.mrf.mxu0
        %v3057 = vadd.f32 0.0, %v3056
        %v3058 = vpop.f32.mrf.mxu0
        %3059 = vdwg.mxu0
        %3060 = vrot.lane.b32.xlu0 %v2602, 48
        %v3061 = vpop.permute.xlu0 %3060
        %3062 = vrot.lane.b32.xlu0 %v2607, 48
        %v3063 = vpop.permute.xlu0 %3062
        %v3065 = vsel %vm2468, %v3061, 0
        %v3068 = vsel %vm2468, %v3063, 0
        %3070 = vmatpush.bf16.xpose.msra.mxu0 0
        %3071 = vmatpush.bf16.xpose.msra.mxu0 0
        %3072 = vmatpush.bf16.xpose.msra.mxu0 0
        %3073 = vmatpush.bf16.xpose.msra.mxu0 0
        %3074 = vmatpush.bf16.xpose.msra.mxu0 0
        %3075 = vmatpush.bf16.xpose.msra.mxu0 0
        %3076 = vmatpush.bf16.xpose.msra.mxu0 0
        %3077 = vmatpush.bf16.xpose.msra.mxu0 %v3068
        %3078 = vmatmul.bf16.gmra.mxu0 %v3065
        %v3079 = vpop.f32.mrf.mxu0
        %v3080 = vadd.f32 0.0, %v3079
        %v3081 = vpop.f32.mrf.mxu0
        %3082 = vdwg.mxu0
        %v3083 = vsel %vm2507, %v3057, -inf
        %3084 = vmax.xlane.f32.xlu0 %v3083
        %v3085 = vpop.xlane.xlu0 %3084
        %v3086 = vsel %vm2507, %v3080, -inf
        %3087 = vmax.xlane.f32.xlu0 %v3086
        %v3088 = vpop.xlane.xlu0 %3087
        %v3089 = vsub.f32 %v3057, %v3085
        %v3090 = vsub.f32 %v3080, %v3088
        %v3091 = vmul.f32 %v3089, 1.442695
        %v3092 = vpow.pop %v3091
        %v3093 = vmul.f32 %v3090, 1.442695
        %v3094 = vpow.pop %v3093
        %v3095 = vsel %vm2507, %v3092, 0.0
        %3096 = vadd.xlane.f32.xlu0 %v3095
        %v3097 = vpop.xlane.xlu0 %3096
        %v3098 = vsel %vm2507, %v3094, 0.0
        %3099 = vadd.xlane.f32.xlu0 %v3098
        %v3100 = vpop.xlane.xlu0 %3099
        %v3101 = vrcp.pop %v3097
        %v3102 = vrcp.pop %v3100
        %v3103 = vmul.f32 %v3092, %v3101
        %v3104 = vmul.f32 %v3094, %v3102
        %v3105 = vpack.c.bf16 %v3103, %v3103
        %v3106 = vpack.c.bf16 %v3104, %v3104
        %3107 = vrot.lane.b32.xlu0 %v2655, 48
        %v3108 = vpop.permute.xlu0 %3107
        %v3110 = vsel %vm2507, %v3105, 0
        %v3113 = vsel %vm2535, %v3108, 0
        %3115 = vmatpush.bf16.msra.mxu0 0
        %3116 = vmatpush.bf16.msra.mxu0 0
        %3117 = vmatpush.bf16.msra.mxu0 0
        %3118 = vmatpush.bf16.msra.mxu0 0
        %3119 = vmatpush.bf16.msra.mxu0 0
        %3120 = vmatpush.bf16.msra.mxu0 0
        %3121 = vmatpush.bf16.msra.mxu0 0
        %3122 = vmatpush.bf16.msra.mxu0 %v3113
        %3123 = vmatmul.bf16.gmra.mxu0 %v3110
        %v3124 = vpop.f32.mrf.mxu0
        %v3125 = vadd.f32 0.0, %v3124
        %v3126 = vpop.f32.mrf.mxu0
        %3127 = vdwg.mxu0
        %3128 = vrot.lane.b32.xlu0 %v2679, 48
        %v3129 = vpop.permute.xlu0 %3128
        %v3131 = vsel %vm2507, %v3106, 0
        %v3134 = vsel %vm2535, %v3129, 0
        %3136 = vmatpush.bf16.msra.mxu0 0
        %3137 = vmatpush.bf16.msra.mxu0 0
        %3138 = vmatpush.bf16.msra.mxu0 0
        %3139 = vmatpush.bf16.msra.mxu0 0
        %3140 = vmatpush.bf16.msra.mxu0 0
        %3141 = vmatpush.bf16.msra.mxu0 0
        %3142 = vmatpush.bf16.msra.mxu0 0
        %3143 = vmatpush.bf16.msra.mxu0 %v3134
        %3144 = vmatmul.bf16.gmra.mxu0 %v3131
        %v3145 = vpop.f32.mrf.mxu0
        %v3146 = vadd.f32 0.0, %v3145
        %v3147 = vpop.f32.mrf.mxu0
        %3148 = vdwg.mxu0
        %3149 = vrot.lane.b32.xlu0 %v2573, 32
        %v3150 = vpop.permute.xlu0 %3149
        %3151 = vrot.lane.b32.xlu0 %v2578, 32
        %v3152 = vpop.permute.xlu0 %3151
        %v3154 = vsel %vm2468, %v3150, 0
        %v3157 = vsel %vm2468, %v3152, 0
        %3159 = vmatpush.bf16.xpose.msra.mxu0 0
        %3160 = vmatpush.bf16.xpose.msra.mxu0 0
        %3161 = vmatpush.bf16.xpose.msra.mxu0 0
        %3162 = vmatpush.bf16.xpose.msra.mxu0 0
        %3163 = vmatpush.bf16.xpose.msra.mxu0 0
        %3164 = vmatpush.bf16.xpose.msra.mxu0 0
        %3165 = vmatpush.bf16.xpose.msra.mxu0 0
        %3166 = vmatpush.bf16.xpose.msra.mxu0 %v3157
        %3167 = vmatmul.bf16.gmra.mxu0 %v3154
        %v3168 = vpop.f32.mrf.mxu0
        %v3169 = vadd.f32 0.0, %v3168
        %v3170 = vpop.f32.mrf.mxu0
        %3171 = vdwg.mxu0
        %3172 = vrot.lane.b32.xlu0 %v2602, 32
        %v3173 = vpop.permute.xlu0 %3172
        %3174 = vrot.lane.b32.xlu0 %v2607, 32
        %v3175 = vpop.permute.xlu0 %3174
        %v3177 = vsel %vm2468, %v3173, 0
        %v3180 = vsel %vm2468, %v3175, 0
        %3182 = vmatpush.bf16.xpose.msra.mxu0 0
        %3183 = vmatpush.bf16.xpose.msra.mxu0 0
        %3184 = vmatpush.bf16.xpose.msra.mxu0 0
        %3185 = vmatpush.bf16.xpose.msra.mxu0 0
        %3186 = vmatpush.bf16.xpose.msra.mxu0 0
        %3187 = vmatpush.bf16.xpose.msra.mxu0 0
        %3188 = vmatpush.bf16.xpose.msra.mxu0 0
        %3189 = vmatpush.bf16.xpose.msra.mxu0 %v3180
        %3190 = vmatmul.bf16.gmra.mxu0 %v3177
        %v3191 = vpop.f32.mrf.mxu0
        %v3192 = vadd.f32 0.0, %v3191
        %v3193 = vpop.f32.mrf.mxu0
        %3194 = vdwg.mxu0
        %v3195 = vsel %vm2507, %v3169, -inf
        %3196 = vmax.xlane.f32.xlu0 %v3195
        %v3197 = vpop.xlane.xlu0 %3196
        %v3198 = vsel %vm2507, %v3192, -inf
        %3199 = vmax.xlane.f32.xlu0 %v3198
        %v3200 = vpop.xlane.xlu0 %3199
        %v3201 = vsub.f32 %v3169, %v3197
        %v3202 = vsub.f32 %v3192, %v3200
        %v3203 = vmul.f32 %v3201, 1.442695
        %v3204 = vpow.pop %v3203
        %v3205 = vmul.f32 %v3202, 1.442695
        %v3206 = vpow.pop %v3205
        %v3207 = vsel %vm2507, %v3204, 0.0
        %3208 = vadd.xlane.f32.xlu0 %v3207
        %v3209 = vpop.xlane.xlu0 %3208
        %v3210 = vsel %vm2507, %v3206, 0.0
        %3211 = vadd.xlane.f32.xlu0 %v3210
        %v3212 = vpop.xlane.xlu0 %3211
        %v3213 = vrcp.pop %v3209
        %v3214 = vrcp.pop %v3212
        %v3215 = vmul.f32 %v3204, %v3213
        %v3216 = vmul.f32 %v3206, %v3214
        %v3217 = vpack.c.bf16 %v3215, %v3215
        %v3218 = vpack.c.bf16 %v3216, %v3216
        %3219 = vrot.lane.b32.xlu0 %v2655, 32
        %v3220 = vpop.permute.xlu0 %3219
        %v3222 = vsel %vm2507, %v3217, 0
        %v3225 = vsel %vm2535, %v3220, 0
        %3227 = vmatpush.bf16.msra.mxu0 0
        %3228 = vmatpush.bf16.msra.mxu0 0
        %3229 = vmatpush.bf16.msra.mxu0 0
        %3230 = vmatpush.bf16.msra.mxu0 0
        %3231 = vmatpush.bf16.msra.mxu0 0
        %3232 = vmatpush.bf16.msra.mxu0 0
        %3233 = vmatpush.bf16.msra.mxu0 0
        %3234 = vmatpush.bf16.msra.mxu0 %v3225
        %3235 = vmatmul.bf16.gmra.mxu0 %v3222
        %v3236 = vpop.f32.mrf.mxu0
        %v3237 = vadd.f32 0.0, %v3236
        %v3238 = vpop.f32.mrf.mxu0
        %3239 = vdwg.mxu0
        %3240 = vrot.lane.b32.xlu0 %v2679, 32
        %v3241 = vpop.permute.xlu0 %3240
        %v3243 = vsel %vm2507, %v3218, 0
        %v3246 = vsel %vm2535, %v3241, 0
        %3248 = vmatpush.bf16.msra.mxu0 0
        %3249 = vmatpush.bf16.msra.mxu0 0
        %3250 = vmatpush.bf16.msra.mxu0 0
        %3251 = vmatpush.bf16.msra.mxu0 0
        %3252 = vmatpush.bf16.msra.mxu0 0
        %3253 = vmatpush.bf16.msra.mxu0 0
        %3254 = vmatpush.bf16.msra.mxu0 0
        %3255 = vmatpush.bf16.msra.mxu0 %v3246
        %3256 = vmatmul.bf16.gmra.mxu0 %v3243
        %v3257 = vpop.f32.mrf.mxu0
        %v3258 = vadd.f32 0.0, %v3257
        %v3259 = vpop.f32.mrf.mxu0
        %3260 = vdwg.mxu0
        %3261 = vrot.lane.b32.xlu0 %v2573, 16
        %v3262 = vpop.permute.xlu0 %3261
        %3263 = vrot.lane.b32.xlu0 %v2578, 16
        %v3264 = vpop.permute.xlu0 %3263
        %v3266 = vsel %vm2468, %v3262, 0
        %v3269 = vsel %vm2468, %v3264, 0
        %3271 = vmatpush.bf16.xpose.msra.mxu0 0
        %3272 = vmatpush.bf16.xpose.msra.mxu0 0
        %3273 = vmatpush.bf16.xpose.msra.mxu0 0
        %3274 = vmatpush.bf16.xpose.msra.mxu0 0
        %3275 = vmatpush.bf16.xpose.msra.mxu0 0
        %3276 = vmatpush.bf16.xpose.msra.mxu0 0
        %3277 = vmatpush.bf16.xpose.msra.mxu0 0
        %3278 = vmatpush.bf16.xpose.msra.mxu0 %v3269
        %3279 = vmatmul.bf16.gmra.mxu0 %v3266
        %v3280 = vpop.f32.mrf.mxu0
        %v3281 = vadd.f32 0.0, %v3280
        %v3282 = vpop.f32.mrf.mxu0
        %3283 = vdwg.mxu0
        %3284 = vrot.lane.b32.xlu0 %v2602, 16
        %v3285 = vpop.permute.xlu0 %3284
        %3286 = vrot.lane.b32.xlu0 %v2607, 16
        %v3287 = vpop.permute.xlu0 %3286
        %v3289 = vsel %vm2468, %v3285, 0
        %v3292 = vsel %vm2468, %v3287, 0
        %3294 = vmatpush.bf16.xpose.msra.mxu0 0
        %3295 = vmatpush.bf16.xpose.msra.mxu0 0
        %3296 = vmatpush.bf16.xpose.msra.mxu0 0
        %3297 = vmatpush.bf16.xpose.msra.mxu0 0
        %3298 = vmatpush.bf16.xpose.msra.mxu0 0
        %3299 = vmatpush.bf16.xpose.msra.mxu0 0
        %3300 = vmatpush.bf16.xpose.msra.mxu0 0
        %3301 = vmatpush.bf16.xpose.msra.mxu0 %v3292
        %3302 = vmatmul.bf16.gmra.mxu0 %v3289
        %v3303 = vpop.f32.mrf.mxu0
        %v3304 = vadd.f32 0.0, %v3303
        %v3305 = vpop.f32.mrf.mxu0
        %3306 = vdwg.mxu0
        %v3307 = vsel %vm2507, %v3281, -inf
        %3308 = vmax.xlane.f32.xlu0 %v3307
        %v3309 = vpop.xlane.xlu0 %3308
        %v3310 = vsel %vm2507, %v3304, -inf
        %3311 = vmax.xlane.f32.xlu0 %v3310
        %v3312 = vpop.xlane.xlu0 %3311
        %v3313 = vsub.f32 %v3281, %v3309
        %v3314 = vsub.f32 %v3304, %v3312
        %v3315 = vmul.f32 %v3313, 1.442695
        %v3316 = vpow.pop %v3315
        %v3317 = vmul.f32 %v3314, 1.442695
        %v3318 = vpow.pop %v3317
        %v3319 = vsel %vm2507, %v3316, 0.0
        %3320 = vadd.xlane.f32.xlu0 %v3319
        %v3321 = vpop.xlane.xlu0 %3320
        %v3322 = vsel %vm2507, %v3318, 0.0
        %3323 = vadd.xlane.f32.xlu0 %v3322
        %v3324 = vpop.xlane.xlu0 %3323
        %v3325 = vrcp.pop %v3321
        %v3326 = vrcp.pop %v3324
        %v3327 = vmul.f32 %v3316, %v3325
        %v3328 = vmul.f32 %v3318, %v3326
        %v3329 = vpack.c.bf16 %v3327, %v3327
        %v3330 = vpack.c.bf16 %v3328, %v3328
        %3331 = vrot.lane.b32.xlu0 %v2655, 16
        %v3332 = vpop.permute.xlu0 %3331
        %v3334 = vsel %vm2507, %v3329, 0
        %v3337 = vsel %vm2535, %v3332, 0
        %3339 = vmatpush.bf16.msra.mxu0 0
        %3340 = vmatpush.bf16.msra.mxu0 0
        %3341 = vmatpush.bf16.msra.mxu0 0
        %3342 = vmatpush.bf16.msra.mxu0 0
        %3343 = vmatpush.bf16.msra.mxu0 0
        %3344 = vmatpush.bf16.msra.mxu0 0
        %3345 = vmatpush.bf16.msra.mxu0 0
        %3346 = vmatpush.bf16.msra.mxu0 %v3337
        %3347 = vmatmul.bf16.gmra.mxu0 %v3334
        %v3348 = vpop.f32.mrf.mxu0
        %v3349 = vadd.f32 0.0, %v3348
        %v3350 = vpop.f32.mrf.mxu0
        %3351 = vdwg.mxu0
        %3352 = vrot.lane.b32.xlu0 %v2679, 16
        %v3353 = vpop.permute.xlu0 %3352
        %v3355 = vsel %vm2507, %v3330, 0
        %v3358 = vsel %vm2535, %v3353, 0
        %3360 = vmatpush.bf16.msra.mxu0 0
        %3361 = vmatpush.bf16.msra.mxu0 0
        %3362 = vmatpush.bf16.msra.mxu0 0
        %3363 = vmatpush.bf16.msra.mxu0 0
        %3364 = vmatpush.bf16.msra.mxu0 0
        %3365 = vmatpush.bf16.msra.mxu0 0
        %3366 = vmatpush.bf16.msra.mxu0 0
        %3367 = vmatpush.bf16.msra.mxu0 %v3358
        %3368 = vmatmul.bf16.gmra.mxu0 %v3355
        %v3369 = vpop.f32.mrf.mxu0
        %v3370 = vadd.f32 0.0, %v3369
        %v3371 = vpop.f32.mrf.mxu0
        %3372 = vdwg.mxu0
        %3375 = vrot.lane.b32.xlu0 %v2674, 16
        %v3376 = vpop.permute.xlu0 %3375
        %3377 = vrot.lane.b32.xlu0 %v2698, 16
        %v3378 = vpop.permute.xlu0 %3377
        %3383 = vrot.lane.b32.xlu0 %v2789, 32
        %v3384 = vpop.permute.xlu0 %3383
        %3385 = vrot.lane.b32.xlu0 %v2810, 32
        %v3386 = vpop.permute.xlu0 %3385
        %3391 = vrot.lane.b32.xlu0 %v2901, 48
        %v3392 = vpop.permute.xlu0 %3391
        %3393 = vrot.lane.b32.xlu0 %v2922, 48
        %v3394 = vpop.permute.xlu0 %3393
        %3399 = vrot.lane.b32.xlu0 %v3013, 64
        %v3400 = vpop.permute.xlu0 %3399
        %3401 = vrot.lane.b32.xlu0 %v3034, 64
        %v3402 = vpop.permute.xlu0 %3401
        %3407 = vrot.lane.b32.xlu0 %v3125, 80
        %v3408 = vpop.permute.xlu0 %3407
        %3409 = vrot.lane.b32.xlu0 %v3146, 80
        %v3410 = vpop.permute.xlu0 %3409
        %3415 = vrot.lane.b32.xlu0 %v3237, 96
        %v3416 = vpop.permute.xlu0 %3415
        %3417 = vrot.lane.b32.xlu0 %v3258, 96
        %v3418 = vpop.permute.xlu0 %3417
        %3423 = vrot.lane.b32.xlu0 %v3349, 112
        %v3424 = vpop.permute.xlu0 %3423
        %3425 = vrot.lane.b32.xlu0 %v3370, 112
        %v3426 = vpop.permute.xlu0 %3425
        %v3429 = vsel %vm2468, %v2549, %v3376
        %v3430 = vsel %vm2468, %v2568, %v3378
        %vm3431 = vcmask 261120
        %v3432 = vsel %vm3431, %v3429, %v3384
        %v3433 = vsel %vm3431, %v3430, %v3386
        %vm3434 = vcmask 392192
        %v3435 = vsel %vm3434, %v3432, %v3392
        %v3436 = vsel %vm3434, %v3433, %v3394
        %vm3437 = vcmask 523264
        %v3438 = vsel %vm3437, %v3435, %v3400
        %v3439 = vsel %vm3437, %v3436, %v3402
        %vm3440 = vcmask 654336
        %v3441 = vsel %vm3440, %v3438, %v3408
        %v3442 = vsel %vm3440, %v3439, %v3410
        %vm3443 = vcmask 785408
        %v3444 = vsel %vm3443, %v3441, %v3416
        %v3445 = vsel %vm3443, %v3442, %v3418
        %vm3446 = vcmask 916480
        %v3447 = vsel %vm3446, %v3444, %v3424
        %v3448 = vsel %vm3446, %v3445, %v3426
        %v3449 = vpack.c.bf16 %v3448, %v3447
        %v3450 = vperm.slane %v657, 3
        %v3467 = vunpack.c.l.b16 %v593
        %v3468 = vunpack.c.l.b16 %v594
        %v3469 = vunpack.c.l.b16 %v595
        %v3470 = vunpack.c.l.b16 %v596
        %v3471 = vunpack.c.l.b16 %v597
        %v3472 = vunpack.c.l.b16 %v598
        %v3473 = vunpack.c.l.b16 %v599
        %v3474 = vunpack.c.l.b16 %v600
        %v3475 = vunpack.c.l.b16 %v601
        %v3476 = vunpack.c.l.b16 %v602
        %v3477 = vunpack.c.l.b16 %v603
        %v3478 = vunpack.c.l.b16 %v604
        %v3479 = vunpack.c.l.b16 %v605
        %v3480 = vunpack.c.l.b16 %v606
        %v3481 = vunpack.c.l.b16 %v607
        %v3482 = vunpack.c.l.b16 %v608
        %v3483 = vpack.c.b16 %v3468, %v3467
        %v3484 = vpack.c.b16 %v3470, %v3469
        %v3485 = vpack.c.b16 %v3472, %v3471
        %v3486 = vpack.c.b16 %v3474, %v3473
        %v3487 = vpack.c.b16 %v3476, %v3475
        %v3488 = vpack.c.b16 %v3478, %v3477
        %v3489 = vpack.c.b16 %v3480, %v3479
        %v3490 = vpack.c.b16 %v3482, %v3481
        %3499 = vmatpush.bf16.msra.mxu0 %v3490
        %3500 = vmatpush.bf16.msra.mxu0 %v3489
        %3501 = vmatpush.bf16.msra.mxu0 %v3488
        %3502 = vmatpush.bf16.msra.mxu0 %v3487
        %3503 = vmatpush.bf16.msra.mxu0 %v3486
        %3504 = vmatpush.bf16.msra.mxu0 %v3485
        %3505 = vmatpush.bf16.msra.mxu0 %v3484
        %3506 = vmatpush.bf16.msra.mxu0 %v3483
        %3507 = vmatmul.bf16.gmra.mxu0 %v3449
        %v3508 = vpop.f32.mrf.mxu0
        %v3509 = vadd.f32 %v3450, %v3508
        %v3510 = vpop.f32.mrf.mxu0
        %v3511 = vadd.f32 %v3450, %v3510
        %3512 = vdwg.mxu0
        %v3513 = vadd.f32 %v2276, %v3509
        %v3514 = vadd.f32 %v2277, %v3511
        %3515 = vadd.xlane.f32.xlu0 %v3513
        %v3516 = vpop.xlane.xlu0 %3515
        %3517 = vadd.xlane.f32.xlu0 %v3514
        %v3518 = vpop.xlane.xlu0 %3517
        %v3519 = vrcp.pop 128.0
        %v3520 = vmul.f32 128.0, %v3519
        %v3521 = vsub.f32 1.0, %v3520
        %v3522 = vmul.f32 %v3519, %v3521
        %v3523 = vadd.f32 %v3519, %v3522
        %vm3524 = vweird.f32 %v3519
        %v3525 = vsel %vm3524, %v3519, %v3523
        %v3526 = vmul.f32 %v3516, %v3525
        %v3527 = vmul.f32 %v3518, %v3525
        %v3528 = vsub.f32 %v3513, %v3526
        %v3529 = vsub.f32 %v3514, %v3527
        %v3530 = vmul.f32 %v3528, %v3528
        %v3531 = vmul.f32 %v3529, %v3529
        %3532 = vadd.xlane.f32.xlu0 %v3530
        %v3533 = vpop.xlane.xlu0 %3532
        %3534 = vadd.xlane.f32.xlu0 %v3531
        %v3535 = vpop.xlane.xlu0 %3534
        %v3536 = vmul.f32 %v3533, %v3525
        %v3537 = vmul.f32 %v3535, %v3525
        %v3538 = vadd.f32 %v3536, 1e-05
        %v3539 = vadd.f32 %v3537, 1e-05
        %v3540 = vrsqrt.pop %v3538
        %v3541 = vmul.f32 %v3540, %v3538
        %v3542 = vmul.f32 %v3541, %v3540
        %v3543 = vmul.f32 0.5, %v3542
        %v3544 = vsub.f32 1.5, %v3543
        %v3545 = vmul.f32 %v3540, %v3544
        %vm3546 = vweird.f32 %v3538
        %vm3547 = vweird.f32 %v3540
        %vm3548 = vmor %vm3546, %vm3547
        %v3549 = vsel %vm3548, %v3540, %v3545
        %v3550 = vrsqrt.pop %v3539
        %v3551 = vmul.f32 %v3550, %v3539
        %v3552 = vmul.f32 %v3551, %v3550
        %v3553 = vmul.f32 0.5, %v3552
        %v3554 = vsub.f32 1.5, %v3553
        %v3555 = vmul.f32 %v3550, %v3554
        %vm3556 = vweird.f32 %v3539
        %vm3557 = vweird.f32 %v3550
        %vm3558 = vmor %vm3556, %vm3557
        %v3559 = vsel %vm3558, %v3550, %v3555
        %v3560 = vmul.f32 %v3528, %v3549
        %v3561 = vmul.f32 %v3529, %v3559
        %v3562 = vperm.slane %v657, 5
        %v3563 = vmul.f32 %v3560, %v3562
        %v3564 = vmul.f32 %v3561, %v3562
        %v3565 = vperm.slane %v657, 6
        %v3566 = vadd.f32 %v3563, %v3565
        %v3567 = vadd.f32 %v3564, %v3565
        %v3568 = vpack.c.bf16 %v3567, %v3566
        %v3570 = vperm.slane %v659, 0
        %v3571 = vperm.slane %v659, 1
        %v3590 = vunpack.c.l.b16 %v609
        %v3591 = vunpack.c.h.b16 %v609
        %v3592 = vunpack.c.l.b16 %v610
        %v3593 = vunpack.c.h.b16 %v610
        %v3594 = vunpack.c.l.b16 %v611
        %v3595 = vunpack.c.h.b16 %v611
        %v3596 = vunpack.c.l.b16 %v612
        %v3597 = vunpack.c.h.b16 %v612
        %v3598 = vunpack.c.l.b16 %v613
        %v3599 = vunpack.c.h.b16 %v613
        %v3600 = vunpack.c.l.b16 %v614
        %v3601 = vunpack.c.h.b16 %v614
        %v3602 = vunpack.c.l.b16 %v615
        %v3603 = vunpack.c.h.b16 %v615
        %v3604 = vunpack.c.l.b16 %v616
        %v3605 = vunpack.c.h.b16 %v616
        %v3606 = vunpack.c.l.b16 %v617
        %v3607 = vunpack.c.h.b16 %v617
        %v3608 = vunpack.c.l.b16 %v618
        %v3609 = vunpack.c.h.b16 %v618
        %v3610 = vunpack.c.l.b16 %v619
        %v3611 = vunpack.c.h.b16 %v619
        %v3612 = vunpack.c.l.b16 %v620
        %v3613 = vunpack.c.h.b16 %v620
        %v3614 = vunpack.c.l.b16 %v621
        %v3615 = vunpack.c.h.b16 %v621
        %v3616 = vunpack.c.l.b16 %v622
        %v3617 = vunpack.c.h.b16 %v622
        %v3618 = vunpack.c.l.b16 %v623
        %v3619 = vunpack.c.h.b16 %v623
        %v3620 = vunpack.c.l.b16 %v624
        %v3621 = vunpack.c.h.b16 %v624
        %v3622 = vpack.c.b16 %v3592, %v3590
        %v3623 = vpack.c.b16 %v3593, %v3591
        %v3624 = vpack.c.b16 %v3596, %v3594
        %v3625 = vpack.c.b16 %v3597, %v3595
        %v3626 = vpack.c.b16 %v3600, %v3598
        %v3627 = vpack.c.b16 %v3601, %v3599
        %v3628 = vpack.c.b16 %v3604, %v3602
        %v3629 = vpack.c.b16 %v3605, %v3603
        %v3630 = vpack.c.b16 %v3608, %v3606
        %v3631 = vpack.c.b16 %v3609, %v3607
        %v3632 = vpack.c.b16 %v3612, %v3610
        %v3633 = vpack.c.b16 %v3613, %v3611
        %v3634 = vpack.c.b16 %v3616, %v3614
        %v3635 = vpack.c.b16 %v3617, %v3615
        %v3636 = vpack.c.b16 %v3620, %v3618
        %v3637 = vpack.c.b16 %v3621, %v3619
        %3654 = vmatpush.bf16.msra.mxu0 %v3636
        %3655 = vmatpush.bf16.msra.mxu0 %v3634
        %3656 = vmatpush.bf16.msra.mxu0 %v3632
        %3657 = vmatpush.bf16.msra.mxu0 %v3630
        %3658 = vmatpush.bf16.msra.mxu0 %v3628
        %3659 = vmatpush.bf16.msra.mxu0 %v3626
        %3660 = vmatpush.bf16.msra.mxu0 %v3624
        %3661 = vmatpush.bf16.msra.mxu0 %v3622
        %3662 = vmatmul.bf16.gmra.mxu0 %v3568
        %v3663 = vpop.f32.mrf.mxu0
        %v3664 = vadd.f32 %v3570, %v3663
        %v3665 = vpop.f32.mrf.mxu0
        %v3666 = vadd.f32 %v3570, %v3665
        %3667 = vdwg.mxu0
        %3668 = vmatpush.bf16.msra.mxu0 %v3637
        %3669 = vmatpush.bf16.msra.mxu0 %v3635
        %3670 = vmatpush.bf16.msra.mxu0 %v3633
        %3671 = vmatpush.bf16.msra.mxu0 %v3631
        %3672 = vmatpush.bf16.msra.mxu0 %v3629
        %3673 = vmatpush.bf16.msra.mxu0 %v3627
        %3674 = vmatpush.bf16.msra.mxu0 %v3625
        %3675 = vmatpush.bf16.msra.mxu0 %v3623
        %3676 = vmatmul.bf16.gmra.mxu0 %v3568
        %v3677 = vpop.f32.mrf.mxu0
        %v3678 = vadd.f32 %v3571, %v3677
        %v3679 = vpop.f32.mrf.mxu0
        %v3680 = vadd.f32 %v3571, %v3679
        %3681 = vdwg.mxu0
        %v3682 = vmax.f32 %v3664, 0.0
        %v3683 = vmax.f32 %v3678, 0.0
        %v3684 = vmax.f32 %v3666, 0.0
        %v3685 = vmax.f32 %v3680, 0.0
        %v3686 = vpack.c.bf16 %v3684, %v3682
        %v3687 = vpack.c.bf16 %v3685, %v3683
        %v3688 = vperm.slane %v657, 4
        %v3721 = vunpack.c.l.b16 %v625
        %v3722 = vunpack.c.l.b16 %v626
        %v3723 = vunpack.c.l.b16 %v627
        %v3724 = vunpack.c.l.b16 %v628
        %v3725 = vunpack.c.l.b16 %v629
        %v3726 = vunpack.c.l.b16 %v630
        %v3727 = vunpack.c.l.b16 %v631
        %v3728 = vunpack.c.l.b16 %v632
        %v3729 = vunpack.c.l.b16 %v633
        %v3730 = vunpack.c.l.b16 %v634
        %v3731 = vunpack.c.l.b16 %v635
        %v3732 = vunpack.c.l.b16 %v636
        %v3733 = vunpack.c.l.b16 %v637
        %v3734 = vunpack.c.l.b16 %v638
        %v3735 = vunpack.c.l.b16 %v639
        %v3736 = vunpack.c.l.b16 %v640
        %v3737 = vunpack.c.l.b16 %v641
        %v3738 = vunpack.c.l.b16 %v642
        %v3739 = vunpack.c.l.b16 %v643
        %v3740 = vunpack.c.l.b16 %v644
        %v3741 = vunpack.c.l.b16 %v645
        %v3742 = vunpack.c.l.b16 %v646
        %v3743 = vunpack.c.l.b16 %v647
        %v3744 = vunpack.c.l.b16 %v648
        %v3745 = vunpack.c.l.b16 %v649
        %v3746 = vunpack.c.l.b16 %v650
        %v3747 = vunpack.c.l.b16 %v651
        %v3748 = vunpack.c.l.b16 %v652
        %v3749 = vunpack.c.l.b16 %v653
        %v3750 = vunpack.c.l.b16 %v654
        %v3751 = vunpack.c.l.b16 %v655
        %v3752 = vunpack.c.l.b16 %v656
        %v3753 = vpack.c.b16 %v3722, %v3721
        %v3754 = vpack.c.b16 %v3724, %v3723
        %v3755 = vpack.c.b16 %v3726, %v3725
        %v3756 = vpack.c.b16 %v3728, %v3727
        %v3757 = vpack.c.b16 %v3730, %v3729
        %v3758 = vpack.c.b16 %v3732, %v3731
        %v3759 = vpack.c.b16 %v3734, %v3733
        %v3760 = vpack.c.b16 %v3736, %v3735
        %v3761 = vpack.c.b16 %v3738, %v3737
        %v3762 = vpack.c.b16 %v3740, %v3739
        %v3763 = vpack.c.b16 %v3742, %v3741
        %v3764 = vpack.c.b16 %v3744, %v3743
        %v3765 = vpack.c.b16 %v3746, %v3745
        %v3766 = vpack.c.b16 %v3748, %v3747
        %v3767 = vpack.c.b16 %v3750, %v3749
        %v3768 = vpack.c.b16 %v3752, %v3751
        %3785 = vmatpush.bf16.msra.mxu0 %v3760
        %3786 = vmatpush.bf16.msra.mxu0 %v3759
        %3787 = vmatpush.bf16.msra.mxu0 %v3758
        %3788 = vmatpush.bf16.msra.mxu0 %v3757
        %3789 = vmatpush.bf16.msra.mxu0 %v3756
        %3790 = vmatpush.bf16.msra.mxu0 %v3755
        %3791 = vmatpush.bf16.msra.mxu0 %v3754
        %3792 = vmatpush.bf16.msra.mxu0 %v3753
        %3793 = vmatmul.bf16.gmra.mxu0 %v3686
        %v3794 = vpop.f32.mrf.mxu0
        %v3795 = vadd.f32 %v3688, %v3794
        %v3796 = vpop.f32.mrf.mxu0
        %v3797 = vadd.f32 %v3688, %v3796
        %3798 = vdwg.mxu0
        %3799 = vmatpush.bf16.msra.mxu0 %v3768
        %3800 = vmatpush.bf16.msra.mxu0 %v3767
        %3801 = vmatpush.bf16.msra.mxu0 %v3766
        %3802 = vmatpush.bf16.msra.mxu0 %v3765
        %3803 = vmatpush.bf16.msra.mxu0 %v3764
        %3804 = vmatpush.bf16.msra.mxu0 %v3763
        %3805 = vmatpush.bf16.msra.mxu0 %v3762
        %3806 = vmatpush.bf16.msra.mxu0 %v3761
        %3807 = vmatmul.bf16.gmra.mxu0 %v3687
        %v3808 = vpop.f32.mrf.mxu0
        %v3809 = vadd.f32 %v3795, %v3808
        %v3810 = vpop.f32.mrf.mxu0
        %v3811 = vadd.f32 %v3797, %v3810
        %3812 = vdwg.mxu0
        %v3813 = vadd.f32 %v3566, %v3809
        %v3814 = vadd.f32 %v3567, %v3811
        %3815 = vadd.xlane.f32.xlu0 %v3813
        %v3816 = vpop.xlane.xlu0 %3815
        %3817 = vadd.xlane.f32.xlu0 %v3814
        %v3818 = vpop.xlane.xlu0 %3817
        %v3819 = vmul.f32 %v3816, %v3525
        %v3820 = vmul.f32 %v3818, %v3525
        %v3821 = vsub.f32 %v3813, %v3819
        %v3822 = vsub.f32 %v3814, %v3820
        %v3823 = vmul.f32 %v3821, %v3821
        %v3824 = vmul.f32 %v3822, %v3822
        %3825 = vadd.xlane.f32.xlu0 %v3823
        %v3826 = vpop.xlane.xlu0 %3825
        %3827 = vadd.xlane.f32.xlu0 %v3824
        %v3828 = vpop.xlane.xlu0 %3827
        %v3829 = vmul.f32 %v3826, %v3525
        %v3830 = vmul.f32 %v3828, %v3525
        %v3831 = vadd.f32 %v3829, 1e-05
        %v3832 = vadd.f32 %v3830, 1e-05
        %v3833 = vrsqrt.pop %v3831
        %v3834 = vmul.f32 %v3833, %v3831
        %v3835 = vmul.f32 %v3834, %v3833
        %v3836 = vmul.f32 0.5, %v3835
        %v3837 = vsub.f32 1.5, %v3836
        %v3838 = vmul.f32 %v3833, %v3837
        %vm3839 = vweird.f32 %v3831
        %vm3840 = vweird.f32 %v3833
        %vm3841 = vmor %vm3839, %vm3840
        %v3842 = vsel %vm3841, %v3833, %v3838
        %v3843 = vrsqrt.pop %v3832
        %v3844 = vmul.f32 %v3843, %v3832
        %v3845 = vmul.f32 %v3844, %v3843
        %v3846 = vmul.f32 0.5, %v3845
        %v3847 = vsub.f32 1.5, %v3846
        %v3848 = vmul.f32 %v3843, %v3847
        %vm3849 = vweird.f32 %v3832
        %vm3850 = vweird.f32 %v3843
        %vm3851 = vmor %vm3849, %vm3850
        %v3852 = vsel %vm3851, %v3843, %v3848
        %v3853 = vmul.f32 %v3821, %v3842
        %v3854 = vmul.f32 %v3822, %v3852
        %v3855 = vperm.slane %v657, 7
        %v3856 = vmul.f32 %v3853, %v3855
        %v3857 = vmul.f32 %v3854, %v3855
        %v3858 = vperm.slane %v658, 0
        %v3859 = vadd.f32 %v3856, %v3858
        %v3860 = vadd.f32 %v3857, %v3858
        %3861 = vst [vmem:[%s559] sm:$0xff] %v3859
        %3862 = vst [vmem:[%s559 + $0x8] sm:$0xff] %v3860
      $region72: #{sgasga_forward.1} parent=55 // pred_fallthru
        _
      %p3863 = scmp.lt.s32.totalorder %s25, 1
      %s3864 = scalar_select %p3863, %s25, 1
      %s3865 = smul.addr %s3864, 2
      %s3866 = smul.addr %s3865, 8
      %s3867 = scalar_lea.vmem %s9, %s3866
      // Predicated region
      $region73: #{sgasga_forward.1} parent=55 // pred_check
        %p3868 = pneg %p288
      $region74: #{sgasga_forward.1} parent=55 // pred_check_branch
        %3870 = sbr.rel (%p3868) target = $region76
      $region75: #{sgasga_forward.1} parent=55 // pred_region
        _
      $region76: #{sgasga_forward.1} parent=55 // pred_fallthru
        _
    $region56: #{sgasga_forward.1} parent=5 // pred_fallthru
      _
    %p3871 = scmp.le.s32.totalorder 2, %s15
    // Predicated region
    $region77: #{sgasga_forward.1} parent=5 // pred_check
      %p3872 = pneg %p3871
    $region78: #{sgasga_forward.1} parent=5 // pred_check_branch
      %3874 = sbr.rel (%p3872) target = $region80
    $region79: #{sgasga_forward.1} parent=5 // pred_region
      %s3875 = ssub.s32 %s15, 2
      // Predicated region
      $region81: #{sgasga_forward.1} parent=79 // pred_check
        %p3876 = pneg %p294
      $region82: #{sgasga_forward.1} parent=79 // pred_check_branch
        %3878 = sbr.rel (%p3876) target = $region84
      $region83: #{sgasga_forward.1} parent=79 // pred_region
        %p3879 = scmp.lt.s32.totalorder %s27, 1
        %s3880 = scalar_select %p3879, %s27, 1
        %s3881 = smul.addr %s3880, 2
        %s3882 = smul.addr %s3881, 8
        %s3883 = scalar_lea.vmem %s9, %s3882
      $region84: #{sgasga_forward.1} parent=79 // pred_fallthru
        _
    $region80: #{sgasga_forward.1} parent=5 // pred_fallthru
      _
  $region6: #{sgasga_forward.1} parent=0 // loop_footer
    %s19 = sadd.s32 1, %s15
  $region7: #{sgasga_forward.1} parent=0 // loop_footer_branch
    %14 = sbr.rel target = $region3
  $region8: #{sgasga_forward.1} parent=0 // loop_exit
    _

</llo_original>
